<compile_context>
chip_gen: v7x
topology: tpu7x:2x2x1
jax: 0.10.0
libtpu: 0.0.40
codegen_flags: <defaults>
</compile_context>

<pallas_src>
import functools

import jax
import jax.numpy as jnp
from jax.experimental import pallas as pl
from jax.experimental.pallas import tpu as pltpu


def _round_up(x, m):
    return (x + m - 1) // m * m


def _activation(name, y):
    if name == "relu":
        return jnp.maximum(y, 0.0)
    elif name == "sigmoid":
        return jax.nn.sigmoid(y)
    elif name == "tanh":
        return jnp.tanh(y)
    elif name == "leaky_relu":
        return jnp.where(y >= 0.0, y, 0.2 * y)  # matches nn.LeakyReLU(0.2) in the spec
    elif name == "elu":
        return jnp.where(y >= 0.0, y, jnp.expm1(y))
    elif name == "softplus":
        return jax.nn.softplus(y)
    else:
        raise ValueError(f"Unknown activation function: {name}")


def _fused_conv_block_kernel(x_ref, w1_ref, b1_ref, w2_ref, b2_ref,
                             o_ref, xs_ref, mid_ref, *, activation):
    # x_ref:   (1, H, W, Cin)      input image block (one batch element)
    # w1_ref:  (9*Cin, Cp)         layer-1 im2col weights (BN scale folded in, Cout padded to Cp)
    # b1_ref:  (1, Cp)             layer-1 folded shift (conv bias + BN)
    # w2_ref:  (9*Cp, Cp)          layer-2 im2col weights (BN scale folded in)
    # b2_ref:  (1, Cp)             layer-2 folded shift
    # o_ref:   (1, H, W, Cp)       output block (lane-dense; padding sliced off outside)
    # xs_ref:  VMEM (H+2, Wp, Cin) padded layer-1 input  (image at rows 1:H+1, cols 0:W)
    # mid_ref: VMEM (H+2, Wp, Cp)  padded layer-1 activation (same layout)
    H, W = o_ref.shape[1], o_ref.shape[2]
    Cp = o_ref.shape[3]
    Wp = xs_ref.shape[1]          # round_up(W + 2, 8) -> sublane-aligned row slices
    n_rows = H * Wp

    def zero_pad_border(ref):
        # Only the halo needs to be zero; the interior is stored exactly once below.
        C = ref.shape[2]
        ref[0:1] = jnp.zeros((1, Wp, C), ref.dtype)                      # top pad row
        ref[H + 1:H + 2] = jnp.zeros((1, Wp, C), ref.dtype)              # bottom pad row
        ref[:, W:Wp, :] = jnp.zeros((H + 2, Wp - W, C), ref.dtype)       # right pad cols

    def conv3x3_im2col(src_ref, w_ref):
        # 'same' 3x3 conv of the padded scratch as one MXU matmul.
        # Tap (dy, dx) of output (h, w) reads src_padded[h + dy, w + dx - 1]; the dx
        # shift is a cyclic roll of the flattened (H*Wp, C) view — wraparound only
        # ever lands in the zero padding (or in padded output columns that are
        # discarded), so no masking is needed.
        C = src_ref.shape[2]
        cols = []
        for dy in range(3):
            flat = src_ref[dy:dy + H].reshape(n_rows, C)   # aligned: Wp % 8 == 0
            for dx in range(3):
                if dx == 1:
                    cols.append(flat)
                else:
                    cols.append(pltpu.roll(flat, shift=(1 - dx) % n_rows, axis=0))
        patch = jnp.concatenate(cols, axis=1)              # (H*Wp, 9*C)
        # bf16 (or f32) MXU operands, f32 accumulation.
        return jnp.dot(patch.astype(w_ref.dtype), w_ref[...],
                       preferred_element_type=jnp.float32)  # (H*Wp, Cp) f32

    # ---- layer 1: in-kernel 'same' padding (no jnp.pad / extra HBM pass) ----
    zero_pad_border(xs_ref)
    xs_ref[1:H + 1, 0:W, :] = x_ref[0]

    y1 = conv3x3_im2col(xs_ref, w1_ref)
    y1 = _activation(activation, y1 + b1_ref[...])          # BN scale already in weights

    # layer-1 activation stays in VMEM (padded for layer 2) — no HBM round trip.
    zero_pad_border(mid_ref)
    mid_ref[1:H + 1, 0:W, :] = y1.reshape(H, Wp, Cp)[:, 0:W, :]

    # ---- layer 2 ----
    y2 = conv3x3_im2col(mid_ref, w2_ref)
    y2 = _activation(activation, y2 + b2_ref[...])
    o_ref[0] = y2.reshape(H, Wp, Cp)[:, 0:W, :].astype(o_ref.dtype)


def _fold_bn(conv_bias, gamma, beta, running_mean, running_var, eps=1e-5):
    """Fold conv bias + eval-mode BatchNorm into per-channel scale/shift."""
    scale = gamma / jnp.sqrt(running_var + eps)
    shift = beta + scale * (conv_bias - running_mean)
    return scale, shift


def conv_block_forward(x_nchw, params, activation="relu", matmul_dtype=jnp.float32):
    """Pallas implementation of ConvBlock.forward (NCHW in, NCHW out)."""
    N, Cin, H, W = x_nchw.shape
    Cout = params["w1"].shape[-1]
    Cp = _round_up(max(Cout, 128), 128)   # lane-dense channel padding
    Wp = _round_up(W + 2, 8)              # sublane-aligned padded width

    x = jnp.transpose(x_nchw, (0, 2, 3, 1))   # NCHW -> NHWC (channels on the lane axis)

    s1, b1 = _fold_bn(params["b1"], params["gamma1"], params["beta1"],
                      params["mean1"], params["var1"])
    s2, b2 = _fold_bn(params["b2"], params["gamma2"], params["beta2"],
                      params["mean2"], params["var2"])

    # Fold the BN scale into the conv weights (tiny, done once in the wrapper):
    #   scale*(conv_w(x)+bias-mean)+beta == conv_{w*scale}(x) + shift
    w1 = params["w1"] * s1[None, None, None, :]
    w2 = params["w2"] * s2[None, None, None, :]

    def pad_c(v):   # zero-pad the trailing channel dim to Cp (tiny, params only)
        return jnp.pad(v, [(0, 0)] * (v.ndim - 1) + [(0, Cp - Cout)])

    # im2col weight layout: (3, 3, C, Cout) -> (9*C, Cp), row order (dy, dx, c).
    w1 = pad_c(w1).reshape(9 * Cin, Cp).astype(matmul_dtype)
    w2 = jnp.pad(w2, ((0, 0), (0, 0), (0, Cp - Cout), (0, Cp - Cout)))
    w2 = w2.reshape(9 * Cp, Cp).astype(matmul_dtype)
    b1 = pad_c(b1)[None, :].astype(jnp.float32)
    b2 = pad_c(b2)[None, :].astype(jnp.float32)

    kernel = functools.partial(_fused_conv_block_kernel, activation=activation)
    out = pl.pallas_call(
        kernel,
        out_shape=jax.ShapeDtypeStruct((N, H, W, Cp), jnp.float32),
        grid_spec=pltpu.PrefetchScalarGridSpec(
            num_scalar_prefetch=0,
            grid=(N,),
            in_specs=[
                pl.BlockSpec((1, H, W, Cin), lambda n: (n, 0, 0, 0)),
                pl.BlockSpec((9 * Cin, Cp), lambda n: (0, 0)),
                pl.BlockSpec((1, Cp), lambda n: (0, 0)),
                pl.BlockSpec((9 * Cp, Cp), lambda n: (0, 0)),
                pl.BlockSpec((1, Cp), lambda n: (0, 0)),
            ],
            out_specs=pl.BlockSpec((1, H, W, Cp), lambda n: (n, 0, 0, 0)),
            scratch_shapes=[
                pltpu.VMEM((H + 2, Wp, Cin), jnp.float32),  # padded layer-1 input
                pltpu.VMEM((H + 2, Wp, Cp), jnp.float32),   # padded layer-1 activation
            ],
        ),
        compiler_params=pltpu.CompilerParams(
            dimension_semantics=("parallel",),       # N >= 2 keeps both v7x TCs busy
            vmem_limit_bytes=32 * 1024 * 1024,       # safe on v5e/v6e/v7x; usage ~ a few MiB
        ),
    )(x, w1, b1, w2, b2)

    out = out[..., :Cout]                       # drop lane padding
    return jnp.transpose(out, (0, 3, 1, 2))     # NHWC -> NCHW


def init_conv_block_params(key, inp, oup):
    """Deterministic parameter init (shapes match the PyTorch module)."""
    ks = jax.random.split(key, 8)

    def conv_init(kw, kb, cin, cout):
        fan_in = cin * 3 * 3
        bound = 1.0 / jnp.sqrt(fan_in)
        w = jax.random.uniform(kw, (3, 3, cin, cout), jnp.float32, -bound, bound)
        b = jax.random.uniform(kb, (cout,), jnp.float32, -bound, bound)
        return w, b

    w1, b1 = conv_init(ks[0], ks[1], inp, oup)
    w2, b2 = conv_init(ks[2], ks[3], oup, oup)
    gamma1 = 1.0 + 0.1 * jax.random.normal(ks[4], (oup,), jnp.float32)
    beta1 = 0.1 * jax.random.normal(ks[5], (oup,), jnp.float32)
    mean1 = 0.05 * jax.random.normal(ks[6], (oup,), jnp.float32)
    var1 = 1.0 + 0.1 * jnp.abs(jax.random.normal(ks[7], (oup,), jnp.float32))
    gamma2, beta2, mean2, var2 = gamma1 * 0.9, beta1 * 0.5, mean1 * 0.3, var1 * 1.1
    return dict(
        w1=w1, b1=b1, gamma1=gamma1, beta1=beta1, mean1=mean1, var1=var1,
        w2=w2, b2=b2, gamma2=gamma2, beta2=beta2, mean2=mean2, var2=var2,
    )


def _reference_forward(x_nchw, params, activation="relu"):
    """Pure-JAX reference (lax.conv) for correctness check."""
    def layer(x, w, b, g, be, m, v):
        w_oihw = jnp.transpose(w, (3, 2, 0, 1))
        y = jax.lax.conv_general_dilated(
            x, w_oihw, window_strides=(1, 1), padding="SAME",
            dimension_numbers=("NCHW", "OIHW", "NCHW"))
        y = y + b[None, :, None, None]
        scale = g / jnp.sqrt(v + 1e-5)
        y = scale[None, :, None, None] * (y - m[None, :, None, None]) + be[None, :, None, None]
        return _activation(activation, y)

    x = layer(x_nchw, params["w1"], params["b1"], params["gamma1"],
              params["beta1"], params["mean1"], params["var1"])
    x = layer(x, params["w2"], params["b2"], params["gamma2"],
              params["beta2"], params["mean2"], params["var2"])
    return x


if __name__ == "__main__":
    key = jax.random.PRNGKey(0)
    k_x, k_p = jax.random.split(key)

    N, inp, oup, H, W = 2, 4, 8, 16, 16
    x = jax.random.normal(k_x, (N, inp, H, W), jnp.float32)
    params = init_conv_block_params(k_p, inp, oup)

    ref = _reference_forward(x, params, activation="relu")

    # f32 MXU operands: tight check against the f32 reference.
    out = conv_block_forward(x, params, activation="relu", matmul_dtype=jnp.float32)
    out = jax.block_until_ready(out)
    assert out.shape == (N, oup, H, W), out.shape
    assert jnp.allclose(out, ref, atol=1e-3, rtol=1e-3), (
        float(jnp.max(jnp.abs(out - ref))))

    # bf16 MXU operands (2x MXU throughput, half the weight DMA), f32 accumulation:
    # looser tolerance against the f32 reference.
    out_bf16 = jax.block_until_ready(
        conv_block_forward(x, params, activation="relu", matmul_dtype=jnp.bfloat16))
    assert jnp.allclose(out_bf16, ref, atol=5e-2, rtol=5e-2), (
        float(jnp.max(jnp.abs(out_bf16 - ref))))

    print("KERNEL_OK")
</pallas_src>

<mosaic_0001>
module attributes {stable_mosaic.version = 11 : i64} {
  func.func @_fused_conv_block_kernel(%arg0: i32, %arg1: memref<1x16x16x4xf32, #tpu.memory_space<vmem>>, %arg2: memref<36x128xf32, #tpu.memory_space<vmem>>, %arg3: memref<1x128xf32, #tpu.memory_space<vmem>>, %arg4: memref<1152x128xf32, #tpu.memory_space<vmem>>, %arg5: memref<1x128xf32, #tpu.memory_space<vmem>>, %arg6: memref<1x16x16x128xf32, #tpu.memory_space<vmem>>, %arg7: memref<18x24x4xf32, #tpu.memory_space<vmem>>, %arg8: memref<18x24x128xf32, #tpu.memory_space<vmem>>) attributes {dimension_semantics = [#tpu.dimension_semantics<parallel>], iteration_bounds = array<i64: 2>, scalar_prefetch = 0 : i64, scratch_operands = 2 : i64, tpu.core_type = #tpu.core_type<tc>, window_params = [{transform_indices = @transform_0, window_bounds = array<i64: 1, 16, 16, 4>}, {pipeline_mode = #tpu.pipeline_mode<synchronous>, transform_indices = @transform_1, window_bounds = array<i64: 36, 128>}, {pipeline_mode = #tpu.pipeline_mode<synchronous>, transform_indices = @transform_2, window_bounds = array<i64: 1, 128>}, {pipeline_mode = #tpu.pipeline_mode<synchronous>, transform_indices = @transform_3, window_bounds = array<i64: 1152, 128>}, {pipeline_mode = #tpu.pipeline_mode<synchronous>, transform_indices = @transform_4, window_bounds = array<i64: 1, 128>}, {transform_indices = @transform_5, window_bounds = array<i64: 1, 16, 16, 128>}]} {
    %cst = arith.constant 0.000000e+00 : f32
    %0 = vector.broadcast %cst : f32 to vector<1x24x4xf32>
    %c0 = arith.constant 0 : index
    %c0_0 = arith.constant 0 : index
    %c0_1 = arith.constant 0 : index
    %1 = vector.load %arg7[%c0, %c0_0, %c0_1] : memref<18x24x4xf32, #tpu.memory_space<vmem>>, vector<1x24x4xf32>
    tpu.vector_store %arg7[%c0, %c0_0, %c0_1], %0 {strides = array<i32>} : memref<18x24x4xf32, #tpu.memory_space<vmem>>, vector<1x24x4xf32>,
    %cst_2 = arith.constant 0.000000e+00 : f32
    %2 = vector.broadcast %cst_2 : f32 to vector<1x24x4xf32>
    %c17 = arith.constant 17 : index
    %c0_3 = arith.constant 0 : index
    %c0_4 = arith.constant 0 : index
    %3 = vector.load %arg7[%c17, %c0_3, %c0_4] : memref<18x24x4xf32, #tpu.memory_space<vmem>>, vector<1x24x4xf32>
    tpu.vector_store %arg7[%c17, %c0_3, %c0_4], %2 {strides = array<i32>} : memref<18x24x4xf32, #tpu.memory_space<vmem>>, vector<1x24x4xf32>,
    %cst_5 = arith.constant 0.000000e+00 : f32
    %4 = vector.broadcast %cst_5 : f32 to vector<18x8x4xf32>
    %c0_6 = arith.constant 0 : index
    %c16 = arith.constant 16 : index
    %c0_7 = arith.constant 0 : index
    %5 = vector.load %arg7[%c0_6, %c16, %c0_7] : memref<18x24x4xf32, #tpu.memory_space<vmem>>, vector<18x8x4xf32>
    tpu.vector_store %arg7[%c0_6, %c16, %c0_7], %4 {strides = array<i32>} : memref<18x24x4xf32, #tpu.memory_space<vmem>>, vector<18x8x4xf32>,
    %c0_8 = arith.constant 0 : index
    %c0_9 = arith.constant 0 : index
    %c0_10 = arith.constant 0 : index
    %c0_11 = arith.constant 0 : index
    %6 = vector.load %arg1[%c0_8, %c0_9, %c0_10, %c0_11] : memref<1x16x16x4xf32, #tpu.memory_space<vmem>>, vector<1x16x16x4xf32>
    %7 = vector.shape_cast %6 : vector<1x16x16x4xf32> to vector<16x16x4xf32>
    %c1 = arith.constant 1 : index
    %c0_12 = arith.constant 0 : index
    %c0_13 = arith.constant 0 : index
    %8 = vector.load %arg7[%c1, %c0_12, %c0_13] : memref<18x24x4xf32, #tpu.memory_space<vmem>>, vector<16x16x4xf32>
    tpu.vector_store %arg7[%c1, %c0_12, %c0_13], %7 {strides = array<i32>} : memref<18x24x4xf32, #tpu.memory_space<vmem>>, vector<16x16x4xf32>,
    %c0_14 = arith.constant 0 : index
    %c0_15 = arith.constant 0 : index
    %c0_16 = arith.constant 0 : index
    %9 = vector.load %arg7[%c0_14, %c0_15, %c0_16] : memref<18x24x4xf32, #tpu.memory_space<vmem>>, vector<16x24x4xf32>
    %10 = vector.shape_cast %9 : vector<16x24x4xf32> to vector<384x4xf32>
    %c1_i32 = arith.constant 1 : i32
    %11 = tpu.dynamic_rotate %10 by %c1_i32 dim 0 : vector<384x4xf32>, i32 -> vector<384x4xf32>
    %c383_i32 = arith.constant 383 : i32
    %12 = tpu.dynamic_rotate %10 by %c383_i32 dim 0 : vector<384x4xf32>, i32 -> vector<384x4xf32>
    %c1_17 = arith.constant 1 : index
    %c0_18 = arith.constant 0 : index
    %c0_19 = arith.constant 0 : index
    %13 = vector.load %arg7[%c1_17, %c0_18, %c0_19] : memref<18x24x4xf32, #tpu.memory_space<vmem>>, vector<16x24x4xf32>
    %14 = vector.shape_cast %13 : vector<16x24x4xf32> to vector<384x4xf32>
    %c1_i32_20 = arith.constant 1 : i32
    %15 = tpu.dynamic_rotate %14 by %c1_i32_20 dim 0 : vector<384x4xf32>, i32 -> vector<384x4xf32>
    %c383_i32_21 = arith.constant 383 : i32
    %16 = tpu.dynamic_rotate %14 by %c383_i32_21 dim 0 : vector<384x4xf32>, i32 -> vector<384x4xf32>
    %c2 = arith.constant 2 : index
    %c0_22 = arith.constant 0 : index
    %c0_23 = arith.constant 0 : index
    %17 = vector.load %arg7[%c2, %c0_22, %c0_23] : memref<18x24x4xf32, #tpu.memory_space<vmem>>, vector<16x24x4xf32>
    %18 = vector.shape_cast %17 : vector<16x24x4xf32> to vector<384x4xf32>
    %c1_i32_24 = arith.constant 1 : i32
    %19 = tpu.dynamic_rotate %18 by %c1_i32_24 dim 0 : vector<384x4xf32>, i32 -> vector<384x4xf32>
    %c383_i32_25 = arith.constant 383 : i32
    %20 = tpu.dynamic_rotate %18 by %c383_i32_25 dim 0 : vector<384x4xf32>, i32 -> vector<384x4xf32>
    %21 = tpu.concatenate %11, %10, %12, %15, %14, %16, %19, %18, %20 in 1 : vector<384x4xf32>, vector<384x4xf32>, vector<384x4xf32>, vector<384x4xf32>, vector<384x4xf32>, vector<384x4xf32>, vector<384x4xf32>, vector<384x4xf32>, vector<384x4xf32> -> vector<384x36xf32>
    %c0_26 = arith.constant 0 : index
    %c0_27 = arith.constant 0 : index
    %22 = vector.load %arg2[%c0_26, %c0_27] : memref<36x128xf32, #tpu.memory_space<vmem>>, vector<36x128xf32>
    %cst_28 = arith.constant dense<0.000000e+00> : vector<384x128xf32>
    %23 = tpu.matmul %21, %22, %cst_28 {dimension_numbers = #tpu.dot_dimension_numbers<[1], [0], [0], [1], [0, 0, 1, 1], [], []>} : vector<384x36xf32>, vector<36x128xf32>, vector<384x128xf32> -> vector<384x128xf32>
    %c0_29 = arith.constant 0 : index
    %c0_30 = arith.constant 0 : index
    %24 = vector.load %arg3[%c0_29, %c0_30] : memref<1x128xf32, #tpu.memory_space<vmem>>, vector<1x128xf32>
    %25 = vector.broadcast %24 : vector<1x128xf32> to vector<384x128xf32>
    %26 = arith.addf %23, %25 : vector<384x128xf32>
    %cst_31 = arith.constant 0.000000e+00 : f32
    %27 = vector.broadcast %cst_31 : f32 to vector<384x128xf32>
    %28 = arith.maximumf %26, %27 : vector<384x128xf32>
    %cst_32 = arith.constant 0.000000e+00 : f32
    %29 = vector.broadcast %cst_32 : f32 to vector<1x24x128xf32>
    %c0_33 = arith.constant 0 : index
    %c0_34 = arith.constant 0 : index
    %c0_35 = arith.constant 0 : index
    %30 = vector.load %arg8[%c0_33, %c0_34, %c0_35] : memref<18x24x128xf32, #tpu.memory_space<vmem>>, vector<1x24x128xf32>
    tpu.vector_store %arg8[%c0_33, %c0_34, %c0_35], %29 {strides = array<i32>} : memref<18x24x128xf32, #tpu.memory_space<vmem>>, vector<1x24x128xf32>,
    %cst_36 = arith.constant 0.000000e+00 : f32
    %31 = vector.broadcast %cst_36 : f32 to vector<1x24x128xf32>
    %c17_37 = arith.constant 17 : index
    %c0_38 = arith.constant 0 : index
    %c0_39 = arith.constant 0 : index
    %32 = vector.load %arg8[%c17_37, %c0_38, %c0_39] : memref<18x24x128xf32, #tpu.memory_space<vmem>>, vector<1x24x128xf32>
    tpu.vector_store %arg8[%c17_37, %c0_38, %c0_39], %31 {strides = array<i32>} : memref<18x24x128xf32, #tpu.memory_space<vmem>>, vector<1x24x128xf32>,
    %cst_40 = arith.constant 0.000000e+00 : f32
    %33 = vector.broadcast %cst_40 : f32 to vector<18x8x128xf32>
    %c0_41 = arith.constant 0 : index
    %c16_42 = arith.constant 16 : index
    %c0_43 = arith.constant 0 : index
    %34 = vector.load %arg8[%c0_41, %c16_42, %c0_43] : memref<18x24x128xf32, #tpu.memory_space<vmem>>, vector<18x8x128xf32>
    tpu.vector_store %arg8[%c0_41, %c16_42, %c0_43], %33 {strides = array<i32>} : memref<18x24x128xf32, #tpu.memory_space<vmem>>, vector<18x8x128xf32>,
    %35 = vector.shape_cast %28 : vector<384x128xf32> to vector<16x24x128xf32>
    %36 = vector.extract_strided_slice %35 {offsets = [0, 0, 0], sizes = [16, 16, 128], strides = [1, 1, 1]} : vector<16x24x128xf32> to vector<16x16x128xf32>
    %c1_44 = arith.constant 1 : index
    %c0_45 = arith.constant 0 : index
    %c0_46 = arith.constant 0 : index
    %37 = vector.load %arg8[%c1_44, %c0_45, %c0_46] : memref<18x24x128xf32, #tpu.memory_space<vmem>>, vector<16x16x128xf32>
    tpu.vector_store %arg8[%c1_44, %c0_45, %c0_46], %36 {strides = array<i32>} : memref<18x24x128xf32, #tpu.memory_space<vmem>>, vector<16x16x128xf32>,
    %c0_47 = arith.constant 0 : index
    %c0_48 = arith.constant 0 : index
    %c0_49 = arith.constant 0 : index
    %38 = vector.load %arg8[%c0_47, %c0_48, %c0_49] : memref<18x24x128xf32, #tpu.memory_space<vmem>>, vector<16x24x128xf32>
    %39 = vector.shape_cast %38 : vector<16x24x128xf32> to vector<384x128xf32>
    %c1_i32_50 = arith.constant 1 : i32
    %40 = tpu.dynamic_rotate %39 by %c1_i32_50 dim 0 : vector<384x128xf32>, i32 -> vector<384x128xf32>
    %c383_i32_51 = arith.constant 383 : i32
    %41 = tpu.dynamic_rotate %39 by %c383_i32_51 dim 0 : vector<384x128xf32>, i32 -> vector<384x128xf32>
    %c1_52 = arith.constant 1 : index
    %c0_53 = arith.constant 0 : index
    %c0_54 = arith.constant 0 : index
    %42 = vector.load %arg8[%c1_52, %c0_53, %c0_54] : memref<18x24x128xf32, #tpu.memory_space<vmem>>, vector<16x24x128xf32>
    %43 = vector.shape_cast %42 : vector<16x24x128xf32> to vector<384x128xf32>
    %c1_i32_55 = arith.constant 1 : i32
    %44 = tpu.dynamic_rotate %43 by %c1_i32_55 dim 0 : vector<384x128xf32>, i32 -> vector<384x128xf32>
    %c383_i32_56 = arith.constant 383 : i32
    %45 = tpu.dynamic_rotate %43 by %c383_i32_56 dim 0 : vector<384x128xf32>, i32 -> vector<384x128xf32>
    %c2_57 = arith.constant 2 : index
    %c0_58 = arith.constant 0 : index
    %c0_59 = arith.constant 0 : index
    %46 = vector.load %arg8[%c2_57, %c0_58, %c0_59] : memref<18x24x128xf32, #tpu.memory_space<vmem>>, vector<16x24x128xf32>
    %47 = vector.shape_cast %46 : vector<16x24x128xf32> to vector<384x128xf32>
    %c1_i32_60 = arith.constant 1 : i32
    %48 = tpu.dynamic_rotate %47 by %c1_i32_60 dim 0 : vector<384x128xf32>, i32 -> vector<384x128xf32>
    %c383_i32_61 = arith.constant 383 : i32
    %49 = tpu.dynamic_rotate %47 by %c383_i32_61 dim 0 : vector<384x128xf32>, i32 -> vector<384x128xf32>
    %50 = tpu.concatenate %40, %39, %41, %44, %43, %45, %48, %47, %49 in 1 : vector<384x128xf32>, vector<384x128xf32>, vector<384x128xf32>, vector<384x128xf32>, vector<384x128xf32>, vector<384x128xf32>, vector<384x128xf32>, vector<384x128xf32>, vector<384x128xf32> -> vector<384x1152xf32>
    %c0_62 = arith.constant 0 : index
    %c0_63 = arith.constant 0 : index
    %51 = vector.load %arg4[%c0_62, %c0_63] : memref<1152x128xf32, #tpu.memory_space<vmem>>, vector<1152x128xf32>
    %cst_64 = arith.constant dense<0.000000e+00> : vector<384x128xf32>
    %52 = tpu.matmul %50, %51, %cst_64 {dimension_numbers = #tpu.dot_dimension_numbers<[1], [0], [0], [1], [0, 0, 1, 1], [], []>} : vector<384x1152xf32>, vector<1152x128xf32>, vector<384x128xf32> -> vector<384x128xf32>
    %c0_65 = arith.constant 0 : index
    %c0_66 = arith.constant 0 : index
    %53 = vector.load %arg5[%c0_65, %c0_66] : memref<1x128xf32, #tpu.memory_space<vmem>>, vector<1x128xf32>
    %54 = vector.broadcast %53 : vector<1x128xf32> to vector<384x128xf32>
    %55 = arith.addf %52, %54 : vector<384x128xf32>
    %cst_67 = arith.constant 0.000000e+00 : f32
    %56 = vector.broadcast %cst_67 : f32 to vector<384x128xf32>
    %57 = arith.maximumf %55, %56 : vector<384x128xf32>
    %58 = vector.shape_cast %57 : vector<384x128xf32> to vector<16x24x128xf32>
    %59 = vector.extract_strided_slice %58 {offsets = [0, 0, 0], sizes = [16, 16, 128], strides = [1, 1, 1]} : vector<16x24x128xf32> to vector<16x16x128xf32>
    %c0_68 = arith.constant 0 : index
    %c0_69 = arith.constant 0 : index
    %c0_70 = arith.constant 0 : index
    %c0_71 = arith.constant 0 : index
    %60 = vector.load %arg6[%c0_68, %c0_69, %c0_70, %c0_71] : memref<1x16x16x128xf32, #tpu.memory_space<vmem>>, vector<1x16x16x128xf32>
    %61 = vector.shape_cast %60 : vector<1x16x16x128xf32> to vector<16x16x128xf32>
    %62 = vector.shape_cast %59 : vector<16x16x128xf32> to vector<1x16x16x128xf32>
    tpu.vector_store %arg6[%c0_68, %c0_69, %c0_70, %c0_71], %62 {strides = array<i32>} : memref<1x16x16x128xf32, #tpu.memory_space<vmem>>, vector<1x16x16x128xf32>,
    return
  }
  func.func @transform_0(%arg0: i32) -> (i32, i32, i32, i32) {
    %c0_i32 = arith.constant 0 : i32
    %c0_i32_0 = arith.constant 0 : i32
    %c0_i32_1 = arith.constant 0 : i32
    %c0_i32_2 = arith.constant 0 : i32
    return %arg0, %c0_i32, %c0_i32_0, %c0_i32_1 : i32, i32, i32, i32
  }
  func.func @transform_1(%arg0: i32) -> (i32, i32) {
    %c0_i32 = arith.constant 0 : i32
    %c0_i32_0 = arith.constant 0 : i32
    %c0_i32_1 = arith.constant 0 : i32
    return %c0_i32, %c0_i32_0 : i32, i32
  }
  func.func @transform_2(%arg0: i32) -> (i32, i32) {
    %c0_i32 = arith.constant 0 : i32
    %c0_i32_0 = arith.constant 0 : i32
    %c0_i32_1 = arith.constant 0 : i32
    return %c0_i32, %c0_i32_0 : i32, i32
  }
  func.func @transform_3(%arg0: i32) -> (i32, i32) {
    %c0_i32 = arith.constant 0 : i32
    %c0_i32_0 = arith.constant 0 : i32
    %c0_i32_1 = arith.constant 0 : i32
    return %c0_i32, %c0_i32_0 : i32, i32
  }
  func.func @transform_4(%arg0: i32) -> (i32, i32) {
    %c0_i32 = arith.constant 0 : i32
    %c0_i32_0 = arith.constant 0 : i32
    %c0_i32_1 = arith.constant 0 : i32
    return %c0_i32, %c0_i32_0 : i32, i32
  }
  func.func @transform_5(%arg0: i32) -> (i32, i32, i32, i32) {
    %c0_i32 = arith.constant 0 : i32
    %c0_i32_0 = arith.constant 0 : i32
    %c0_i32_1 = arith.constant 0 : i32
    %c0_i32_2 = arith.constant 0 : i32
    return %arg0, %c0_i32, %c0_i32_0, %c0_i32_1 : i32, i32, i32, i32
  }
}

</mosaic_0001>

<llo_original>
// kernel: tpu_custom_call.1
$region0: #{tpu_custom_call.1}
  #allocation0 [shape = 'u32[]', space=smem, size = 0x4, offset = 0x4, fixed_abs, tag = 'smem constant byte address 0x4 - core index']
  #allocation1 [shape = 'u32[144,128]{1,0:T(1,128)}', space=vmem, size = 0x12000, scoped, tag = 'internal scratch']
  #allocation2 [shape = 'f32[18,24,4]{2,1,0:T(8,128)}', space=vmem, size = 0x36000, scoped, tag = 'scratch operand']
  #allocation3 [shape = 'f32[18,24,128]{2,1,0:T(8,128)}', space=vmem, size = 0x36000, scoped, tag = 'scratch operand']
  %s0 = inlined_call_operand.vmem [shape: f32[2,16,16,4], index: 0, kind: input, shape index: {}]
  %s1 = inlined_call_operand.vmem [shape: f32[36,128], index: 1, kind: input, shape index: {}]
  %s2 = inlined_call_operand.vmem [shape: f32[1,128], index: 2, kind: input, shape index: {}]
  %s3 = inlined_call_operand.hbm [shape: f32[1152,128], index: 3, kind: input, shape index: {}]
  %s4 = inlined_call_operand.vmem [shape: f32[1,128], index: 4, kind: input, shape index: {}]
  %s5 = inlined_call_operand.hbm [shape: f32[2,16,16,128], index: 5, kind: output, shape index: {}]
  %s6 = sld [smem:[#allocation0]]
  $region57: #{tpu_custom_call.1} parent=0
    _
  %s8 = ssub.s32 1, %s6
  %s9 = scalar_select 0, %s8, %s6
  $region1: #{tpu_custom_call.1} parent=0
    #allocation4 [shape = 'u8[589824]{0}', space=vmem, size = 0x90000, scoped, tag = 'input window, operand 3, single buffered']
    #allocation5 [shape = 's32[2]{0}', space=sflag, size = 0x8, scoped, tag = 'scoped memory for tpu_custom_call.1']
    #allocation6 [shape = 's32[2]{0}', space=sflag, size = 0x8, scoped, tag = 'scoped memory for tpu_custom_call.1']
    #allocation7 [shape = 'u8[262144]{0}', space=vmem, size = 0x40000, scoped, tag = 'output window, operand 0']
    %10 = vsyncpa [#allocation5], 0
    %11 = vsyncpa [#allocation6], 0
    %s12 = scalar_lea.sflag [#allocation6], 1
    %13 = vsyncpa %s12, 0
    loop: start=0, step=1, limit=4
    $region2: #{tpu_custom_call.1} parent=1 // loop_pre_header
      _
    $region3: #{tpu_custom_call.1} parent=1 // loop_header
      %s15 = sphi 0, %s19
      %p16 = scmp.ge.s32.totalorder %s15, 4
      %s25 = sphi 0, %s27
      %s28 = sphi 0, %s25
      %s29 = sphi 0, %s28
      %s45 = sphi 0, %s29
      %s49 = sphi 0, %s49
      %s51 = sphi 0, %s49
      %s52 = sphi 0, %s51
      %s66 = sphi 0, %s52
      %s70 = sphi 0, %s70
      %s72 = sphi 0, %s70
      %s73 = sphi 0, %s72
      %s87 = sphi 0, %s73
      %s91 = sphi 0, %s91
      %s93 = sphi 0, %s91
      %s94 = sphi 0, %s93
      %s108 = sphi 0, %s94
      %s112 = sphi 0, %s112
      %s114 = sphi 0, %s112
      %s115 = sphi 0, %s114
      %s129 = sphi 0, %s115
      %s135 = sphi 0, %s137
      %s138 = sphi 0, %s135
      %s139 = sphi 0, %s138
      %s155 = sphi 0, %s139
    $region4: #{tpu_custom_call.1} parent=1 // loop_header_branch
      %18 = sbr.rel (%p16) target = $region8
    $region5: #{tpu_custom_call.1} parent=1 // loop_body
      %s20 = ssub.s32 %s15, 1
      %s21 = ssub.s32 %s15, 2
      %s22 = sadd.s32 %s15, 1
      %s23 = ssub.s32 %s15, %s22
      %p24 = scmp.eq.s32.totalorder %s23, 0
      %s26 = sadd.s32 %s25, 1
      %s27 = scalar_select %p24, %s25, %s26
      %p30 = pneg %p24
      %p31 = scmp.eq.s32.totalorder %s15, 1
      %p32 = por %p30, %p31
      %p33 = scmp.ne.s32.totalorder %s25, %s28
      %p34 = scmp.eq.s32.totalorder %s15, 0
      %p35 = por %p33, %p34
      %p36 = scmp.ne.s32.totalorder %s25, %s28
      %p37 = scmp.eq.s32.totalorder %s20, 1
      %p38 = por %p36, %p37
      %p39 = scmp.ne.s32.totalorder %s28, %s29
      %p40 = scmp.eq.s32.totalorder %s20, 0
      %p41 = por %p39, %p40
      %p42 = scmp.ne.s32.totalorder %s28, %s29
      %p43 = scmp.eq.s32.totalorder %s21, 1
      %p44 = por %p42, %p43
      %p46 = scmp.ne.s32.totalorder %s29, %s45
      %p47 = scmp.eq.s32.totalorder %s21, 0
      %p48 = por %p46, %p47
      %s50 = sadd.s32 %s49, 1
      %p53 = scmp.eq.s32.totalorder %s15, 1
      %p54 = scmp.ne.s32.totalorder %s49, %s51
      %p55 = scmp.eq.s32.totalorder %s15, 0
      %p56 = por %p54, %p55
      %p57 = scmp.ne.s32.totalorder %s49, %s51
      %p58 = scmp.eq.s32.totalorder %s20, 1
      %p59 = por %p57, %p58
      %p60 = scmp.ne.s32.totalorder %s51, %s52
      %p61 = scmp.eq.s32.totalorder %s20, 0
      %p62 = por %p60, %p61
      %p63 = scmp.ne.s32.totalorder %s51, %s52
      %p64 = scmp.eq.s32.totalorder %s21, 1
      %p65 = por %p63, %p64
      %p67 = scmp.ne.s32.totalorder %s52, %s66
      %p68 = scmp.eq.s32.totalorder %s21, 0
      %p69 = por %p67, %p68
      %s71 = sadd.s32 %s70, 1
      %p74 = scmp.eq.s32.totalorder %s15, 1
      %p75 = scmp.ne.s32.totalorder %s70, %s72
      %p76 = scmp.eq.s32.totalorder %s15, 0
      %p77 = por %p75, %p76
      %p78 = scmp.ne.s32.totalorder %s70, %s72
      %p79 = scmp.eq.s32.totalorder %s20, 1
      %p80 = por %p78, %p79
      %p81 = scmp.ne.s32.totalorder %s72, %s73
      %p82 = scmp.eq.s32.totalorder %s20, 0
      %p83 = por %p81, %p82
      %p84 = scmp.ne.s32.totalorder %s72, %s73
      %p85 = scmp.eq.s32.totalorder %s21, 1
      %p86 = por %p84, %p85
      %p88 = scmp.ne.s32.totalorder %s73, %s87
      %p89 = scmp.eq.s32.totalorder %s21, 0
      %p90 = por %p88, %p89
      %s92 = sadd.s32 %s91, 1
      %p95 = scmp.eq.s32.totalorder %s15, 1
      %p96 = scmp.ne.s32.totalorder %s91, %s93
      %p97 = scmp.eq.s32.totalorder %s15, 0
      %p98 = por %p96, %p97
      %p99 = scmp.ne.s32.totalorder %s91, %s93
      %p100 = scmp.eq.s32.totalorder %s20, 1
      %p101 = por %p99, %p100
      %p102 = scmp.ne.s32.totalorder %s93, %s94
      %p103 = scmp.eq.s32.totalorder %s20, 0
      %p104 = por %p102, %p103
      %p105 = scmp.ne.s32.totalorder %s93, %s94
      %p106 = scmp.eq.s32.totalorder %s21, 1
      %p107 = por %p105, %p106
      %p109 = scmp.ne.s32.totalorder %s94, %s108
      %p110 = scmp.eq.s32.totalorder %s21, 0
      %p111 = por %p109, %p110
      %s113 = sadd.s32 %s112, 1
      %p116 = scmp.eq.s32.totalorder %s15, 1
      %p117 = scmp.ne.s32.totalorder %s112, %s114
      %p118 = scmp.eq.s32.totalorder %s15, 0
      %p119 = por %p117, %p118
      %p120 = scmp.ne.s32.totalorder %s112, %s114
      %p121 = scmp.eq.s32.totalorder %s20, 1
      %p122 = por %p120, %p121
      %p123 = scmp.ne.s32.totalorder %s114, %s115
      %p124 = scmp.eq.s32.totalorder %s20, 0
      %p125 = por %p123, %p124
      %p126 = scmp.ne.s32.totalorder %s114, %s115
      %p127 = scmp.eq.s32.totalorder %s21, 1
      %p128 = por %p126, %p127
      %p130 = scmp.ne.s32.totalorder %s115, %s129
      %p131 = scmp.eq.s32.totalorder %s21, 0
      %p132 = por %p130, %p131
      %s133 = ssub.s32 %s15, %s22
      %p134 = scmp.eq.s32.totalorder %s133, 0
      %s136 = sadd.s32 %s135, 1
      %s137 = scalar_select %p134, %s135, %s136
      %p140 = pneg %p134
      %p141 = scmp.eq.s32.totalorder %s15, 1
      %p142 = por %p140, %p141
      %p143 = scmp.ne.s32.totalorder %s135, %s138
      %p144 = scmp.eq.s32.totalorder %s15, 0
      %p145 = por %p143, %p144
      %p146 = scmp.ne.s32.totalorder %s135, %s138
      %p147 = scmp.eq.s32.totalorder %s20, 1
      %p148 = por %p146, %p147
      %p149 = scmp.ne.s32.totalorder %s138, %s139
      %p150 = scmp.eq.s32.totalorder %s20, 0
      %p151 = por %p149, %p150
      %p152 = scmp.ne.s32.totalorder %s138, %s139
      %p153 = scmp.eq.s32.totalorder %s21, 1
      %p154 = por %p152, %p153
      %p156 = scmp.ne.s32.totalorder %s139, %s155
      %p157 = scmp.eq.s32.totalorder %s21, 0
      %p158 = por %p156, %p157
      %p159 = scmp.le.s32.totalorder 1, %s15
      %p160 = scmp.lt.s32.totalorder %s15, 3
      %p161 = pnand %p159, %p160
      %p162 = pneg %p161
      // Predicated region
      $region9: #{tpu_custom_call.1} parent=5 // pred_check
        _
      $region10: #{tpu_custom_call.1} parent=5 // pred_check_branch
        %164 = sbr.rel (%p161) target = $region12
      $region11: #{tpu_custom_call.1} parent=5 // pred_region
        %s165 = ssub.s32 %s15, 1
        // Predicated region
        $region13: #{tpu_custom_call.1} parent=11 // pred_check
          %p166 = pneg %p62
        $region14: #{tpu_custom_call.1} parent=11 // pred_check_branch
          %168 = sbr.rel (%p166) target = $region16
        $region15: #{tpu_custom_call.1} parent=11 // pred_region
          _
        $region16: #{tpu_custom_call.1} parent=11 // pred_fallthru
          _
        // Predicated region
        $region17: #{tpu_custom_call.1} parent=11 // pred_check
          %p169 = pneg %p83
        $region18: #{tpu_custom_call.1} parent=11 // pred_check_branch
          %171 = sbr.rel (%p169) target = $region20
        $region19: #{tpu_custom_call.1} parent=11 // pred_region
          _
        $region20: #{tpu_custom_call.1} parent=11 // pred_fallthru
          _
        // Predicated region
        $region21: #{tpu_custom_call.1} parent=11 // pred_check
          %p172 = pneg %p104
        $region22: #{tpu_custom_call.1} parent=11 // pred_check_branch
          %174 = sbr.rel (%p172) target = $region24
        $region23: #{tpu_custom_call.1} parent=11 // pred_region
          %s176 = ssub.s32 18432, 18432
          %177 = vsyncadd [#allocation5], %s176
          %s178 = sshll.u32 [#allocation4], 4
          %s179 = int_to_ptr.vmem [resolvable:$true] %s178
          %184 = dma.hbm_to_vmem [thread:$0]  %s3, 18432, %s179, [#allocation5], 128, 128, 8
        $region24: #{tpu_custom_call.1} parent=11 // pred_fallthru
          _
        // Predicated region
        $region25: #{tpu_custom_call.1} parent=11 // pred_check
          %p185 = pneg %p125
        $region26: #{tpu_custom_call.1} parent=11 // pred_check_branch
          %187 = sbr.rel (%p185) target = $region28
        $region27: #{tpu_custom_call.1} parent=11 // pred_region
          _
        $region28: #{tpu_custom_call.1} parent=11 // pred_fallthru
          _
      $region12: #{tpu_custom_call.1} parent=5 // pred_fallthru
        _
      %p188 = scmp.lt.s32.totalorder %s15, 2
      // Predicated region
      $region29: #{tpu_custom_call.1} parent=5 // pred_check
        %p189 = pneg %p188
      $region30: #{tpu_custom_call.1} parent=5 // pred_check_branch
        %191 = sbr.rel (%p189) target = $region32
      $region31: #{tpu_custom_call.1} parent=5 // pred_region
        // Predicated region
        $region33: #{tpu_custom_call.1} parent=31 // pred_check
          %p192 = pneg %p35
        $region34: #{tpu_custom_call.1} parent=31 // pred_check_branch
          %194 = sbr.rel (%p192) target = $region36
        $region35: #{tpu_custom_call.1} parent=31 // pred_region
          %p195 = scmp.lt.s32.totalorder %s15, 1
          %s196 = scalar_select %p195, %s15, 1
          %s197 = smul.addr %s196, 32
          %s198 = smul.addr %s197, 8
          %s199 = scalar_lea.vmem %s0, %s198
        $region36: #{tpu_custom_call.1} parent=31 // pred_fallthru
          _
      $region32: #{tpu_custom_call.1} parent=5 // pred_fallthru
        _
      %p200 = scmp.le.s32.totalorder 1, %s15
      %p201 = scmp.lt.s32.totalorder %s15, 3
      %p202 = pnand %p200, %p201
      %p203 = pneg %p202
      // Predicated region
      $region37: #{tpu_custom_call.1} parent=5 // pred_check
        _
      $region38: #{tpu_custom_call.1} parent=5 // pred_check_branch
        %205 = sbr.rel (%p202) target = $region40
      $region39: #{tpu_custom_call.1} parent=5 // pred_region
        %s206 = ssub.s32 %s15, 1
        // Predicated region
        $region41: #{tpu_custom_call.1} parent=39 // pred_check
          %p207 = pneg %p104
        $region42: #{tpu_custom_call.1} parent=39 // pred_check_branch
          %209 = sbr.rel (%p207) target = $region44
        $region43: #{tpu_custom_call.1} parent=39 // pred_region
          %210 = dma.done [#allocation5], 18432
        $region44: #{tpu_custom_call.1} parent=39 // pred_fallthru
          _
        %p211 = scmp.lt.s32.totalorder %s20, 1
        %s212 = scalar_select %p211, %s20, 1
        %s213 = smul.addr %s212, 32
        %s214 = smul.addr %s213, 8
        %s215 = scalar_lea.vmem %s0, %s214
        %p216 = pneg %p41
        %p217 = pneg %p38
        %p218 = pneg %p62
        %p219 = pneg %p59
        %p220 = pneg %p83
        %p221 = pneg %p80
        %p222 = pneg %p104
        %p223 = pneg %p101
        %p224 = pneg %p125
        %p225 = pneg %p122
        %p226 = pneg %p151
        %p227 = pneg %p148
        %s228 = sand.u32 %s138, 1
        %s229 = scalar_lea.sflag [#allocation6], %s228
        %s230 = sand.u32 %s138, 1
        %s231 = smul.addr %s230, 256
        %s232 = scalar_lea.vmem [#allocation7], %s231
        %p233 = scmp.lt.s32.totalorder %s20, 1
        %s234 = scalar_select %p233, %s20, 1
        %s235 = smul.addr %s234, 32
        %s236 = smul.addr %s235, 8
        %s237 = scalar_lea.vmem %s0, %s236
        %vm238 = vcmask 31744
        %239 = vst.msk [vmem:[#allocation2] sm:$0xff] %vm238, 0.0
        %240 = vst.msk [vmem:[#allocation2 + $0x8] sm:$0xff] %vm238, 0.0
        %241 = vst.msk [vmem:[#allocation2 + $0x10] sm:$0xff] %vm238, 0.0
        %s242 = scalar_lea.vmem [#allocation2], 408
        %243 = vst.msk [vmem:[%s242] sm:$0xff] %vm238, 0.0
        %244 = vst.msk [vmem:[%s242 + $0x8] sm:$0xff] %vm238, 0.0
        %245 = vst.msk [vmem:[%s242 + $0x10] sm:$0xff] %vm238, 0.0
        %246 = vst.msk [vmem:[#allocation2 + $0x10] sm:$0xff] %vm238, 0.0
        %247 = vst.msk [vmem:[#allocation2 + $0x28] sm:$0xff] %vm238, 0.0
        %248 = vst.msk [vmem:[#allocation2 + $0x40] sm:$0xff] %vm238, 0.0
        %249 = vst.msk [vmem:[#allocation2 + $0x58] sm:$0xff] %vm238, 0.0
        %250 = vst.msk [vmem:[#allocation2 + $0x70] sm:$0xff] %vm238, 0.0
        %251 = vst.msk [vmem:[#allocation2 + $0x88] sm:$0xff] %vm238, 0.0
        %252 = vst.msk [vmem:[#allocation2 + $0xa0] sm:$0xff] %vm238, 0.0
        %253 = vst.msk [vmem:[#allocation2 + $0xb8] sm:$0xff] %vm238, 0.0
        %254 = vst.msk [vmem:[#allocation2 + $0xd0] sm:$0xff] %vm238, 0.0
        %255 = vst.msk [vmem:[#allocation2 + $0xe8] sm:$0xff] %vm238, 0.0
        %256 = vst.msk [vmem:[#allocation2 + $0x100] sm:$0xff] %vm238, 0.0
        %257 = vst.msk [vmem:[#allocation2 + $0x118] sm:$0xff] %vm238, 0.0
        %258 = vst.msk [vmem:[#allocation2 + $0x130] sm:$0xff] %vm238, 0.0
        %259 = vst.msk [vmem:[#allocation2 + $0x148] sm:$0xff] %vm238, 0.0
        %260 = vst.msk [vmem:[#allocation2 + $0x160] sm:$0xff] %vm238, 0.0
        %261 = vst.msk [vmem:[#allocation2 + $0x178] sm:$0xff] %vm238, 0.0
        %262 = vst.msk [vmem:[#allocation2 + $0x190] sm:$0xff] %vm238, 0.0
        %263 = vst.msk [vmem:[#allocation2 + $0x1a8] sm:$0xff] %vm238, 0.0
        %v264 = vld [vmem:[%s237] sm:$0xff]
        %v265 = vld [vmem:[%s237 + $0x8] sm:$0xff]
        %v266 = vld [vmem:[%s237 + $0x10] sm:$0xff]
        %v267 = vld [vmem:[%s237 + $0x18] sm:$0xff]
        %v268 = vld [vmem:[%s237 + $0x20] sm:$0xff]
        %v269 = vld [vmem:[%s237 + $0x28] sm:$0xff]
        %v270 = vld [vmem:[%s237 + $0x30] sm:$0xff]
        %v271 = vld [vmem:[%s237 + $0x38] sm:$0xff]
        %v272 = vld [vmem:[%s237 + $0x40] sm:$0xff]
        %v273 = vld [vmem:[%s237 + $0x48] sm:$0xff]
        %v274 = vld [vmem:[%s237 + $0x50] sm:$0xff]
        %v275 = vld [vmem:[%s237 + $0x58] sm:$0xff]
        %v276 = vld [vmem:[%s237 + $0x60] sm:$0xff]
        %v277 = vld [vmem:[%s237 + $0x68] sm:$0xff]
        %v278 = vld [vmem:[%s237 + $0x70] sm:$0xff]
        %v279 = vld [vmem:[%s237 + $0x78] sm:$0xff]
        %v280 = vld [vmem:[%s237 + $0x80] sm:$0xff]
        %v281 = vld [vmem:[%s237 + $0x88] sm:$0xff]
        %v282 = vld [vmem:[%s237 + $0x90] sm:$0xff]
        %v283 = vld [vmem:[%s237 + $0x98] sm:$0xff]
        %v284 = vld [vmem:[%s237 + $0xa0] sm:$0xff]
        %v285 = vld [vmem:[%s237 + $0xa8] sm:$0xff]
        %v286 = vld [vmem:[%s237 + $0xb0] sm:$0xff]
        %v287 = vld [vmem:[%s237 + $0xb8] sm:$0xff]
        %v288 = vld [vmem:[%s237 + $0xc0] sm:$0xff]
        %v289 = vld [vmem:[%s237 + $0xc8] sm:$0xff]
        %v290 = vld [vmem:[%s237 + $0xd0] sm:$0xff]
        %v291 = vld [vmem:[%s237 + $0xd8] sm:$0xff]
        %v292 = vld [vmem:[%s237 + $0xe0] sm:$0xff]
        %v293 = vld [vmem:[%s237 + $0xe8] sm:$0xff]
        %v294 = vld [vmem:[%s237 + $0xf0] sm:$0xff]
        %v295 = vld [vmem:[%s237 + $0xf8] sm:$0xff]
        %s296 = scalar_lea.vmem [#allocation2], 24
        %297 = vst.msk [vmem:[%s296] sm:$0xff] %vm238, %v264
        %298 = vst.msk [vmem:[%s296 + $0x8] sm:$0xff] %vm238, %v265
        %299 = vst.msk [vmem:[%s296 + $0x18] sm:$0xff] %vm238, %v266
        %300 = vst.msk [vmem:[%s296 + $0x20] sm:$0xff] %vm238, %v267
        %301 = vst.msk [vmem:[%s296 + $0x30] sm:$0xff] %vm238, %v268
        %302 = vst.msk [vmem:[%s296 + $0x38] sm:$0xff] %vm238, %v269
        %303 = vst.msk [vmem:[%s296 + $0x48] sm:$0xff] %vm238, %v270
        %304 = vst.msk [vmem:[%s296 + $0x50] sm:$0xff] %vm238, %v271
        %305 = vst.msk [vmem:[%s296 + $0x60] sm:$0xff] %vm238, %v272
        %306 = vst.msk [vmem:[%s296 + $0x68] sm:$0xff] %vm238, %v273
        %307 = vst.msk [vmem:[%s296 + $0x78] sm:$0xff] %vm238, %v274
        %308 = vst.msk [vmem:[%s296 + $0x80] sm:$0xff] %vm238, %v275
        %309 = vst.msk [vmem:[%s296 + $0x90] sm:$0xff] %vm238, %v276
        %310 = vst.msk [vmem:[%s296 + $0x98] sm:$0xff] %vm238, %v277
        %311 = vst.msk [vmem:[%s296 + $0xa8] sm:$0xff] %vm238, %v278
        %312 = vst.msk [vmem:[%s296 + $0xb0] sm:$0xff] %vm238, %v279
        %313 = vst.msk [vmem:[%s296 + $0xc0] sm:$0xff] %vm238, %v280
        %314 = vst.msk [vmem:[%s296 + $0xc8] sm:$0xff] %vm238, %v281
        %315 = vst.msk [vmem:[%s296 + $0xd8] sm:$0xff] %vm238, %v282
        %316 = vst.msk [vmem:[%s296 + $0xe0] sm:$0xff] %vm238, %v283
        %317 = vst.msk [vmem:[%s296 + $0xf0] sm:$0xff] %vm238, %v284
        %318 = vst.msk [vmem:[%s296 + $0xf8] sm:$0xff] %vm238, %v285
        %319 = vst.msk [vmem:[%s296 + $0x108] sm:$0xff] %vm238, %v286
        %320 = vst.msk [vmem:[%s296 + $0x110] sm:$0xff] %vm238, %v287
        %321 = vst.msk [vmem:[%s296 + $0x120] sm:$0xff] %vm238, %v288
        %322 = vst.msk [vmem:[%s296 + $0x128] sm:$0xff] %vm238, %v289
        %323 = vst.msk [vmem:[%s296 + $0x138] sm:$0xff] %vm238, %v290
        %324 = vst.msk [vmem:[%s296 + $0x140] sm:$0xff] %vm238, %v291
        %325 = vst.msk [vmem:[%s296 + $0x150] sm:$0xff] %vm238, %v292
        %326 = vst.msk [vmem:[%s296 + $0x158] sm:$0xff] %vm238, %v293
        %327 = vst.msk [vmem:[%s296 + $0x168] sm:$0xff] %vm238, %v294
        %328 = vst.msk [vmem:[%s296 + $0x170] sm:$0xff] %vm238, %v295
        %v329 = vld [vmem:[#allocation2] sm:$0xff]
        %v330 = vld [vmem:[#allocation2 + $0x8] sm:$0xff]
        %v331 = vld [vmem:[#allocation2 + $0x10] sm:$0xff]
        %v332 = vld [vmem:[#allocation2 + $0x18] sm:$0xff]
        %v333 = vld [vmem:[#allocation2 + $0x20] sm:$0xff]
        %v334 = vld [vmem:[#allocation2 + $0x28] sm:$0xff]
        %v335 = vld [vmem:[#allocation2 + $0x30] sm:$0xff]
        %v336 = vld [vmem:[#allocation2 + $0x38] sm:$0xff]
        %v337 = vld [vmem:[#allocation2 + $0x40] sm:$0xff]
        %v338 = vld [vmem:[#allocation2 + $0x48] sm:$0xff]
        %v339 = vld [vmem:[#allocation2 + $0x50] sm:$0xff]
        %v340 = vld [vmem:[#allocation2 + $0x58] sm:$0xff]
        %v341 = vld [vmem:[#allocation2 + $0x60] sm:$0xff]
        %v342 = vld [vmem:[#allocation2 + $0x68] sm:$0xff]
        %v343 = vld [vmem:[#allocation2 + $0x70] sm:$0xff]
        %v344 = vld [vmem:[#allocation2 + $0x78] sm:$0xff]
        %v345 = vld [vmem:[#allocation2 + $0x80] sm:$0xff]
        %v346 = vld [vmem:[#allocation2 + $0x88] sm:$0xff]
        %v347 = vld [vmem:[#allocation2 + $0x90] sm:$0xff]
        %v348 = vld [vmem:[#allocation2 + $0x98] sm:$0xff]
        %v349 = vld [vmem:[#allocation2 + $0xa0] sm:$0xff]
        %v350 = vld [vmem:[#allocation2 + $0xa8] sm:$0xff]
        %v351 = vld [vmem:[#allocation2 + $0xb0] sm:$0xff]
        %v352 = vld [vmem:[#allocation2 + $0xb8] sm:$0xff]
        %v353 = vld [vmem:[#allocation2 + $0xc0] sm:$0xff]
        %v354 = vld [vmem:[#allocation2 + $0xc8] sm:$0xff]
        %v355 = vld [vmem:[#allocation2 + $0xd0] sm:$0xff]
        %v356 = vld [vmem:[#allocation2 + $0xd8] sm:$0xff]
        %v357 = vld [vmem:[#allocation2 + $0xe0] sm:$0xff]
        %v358 = vld [vmem:[#allocation2 + $0xe8] sm:$0xff]
        %v359 = vld [vmem:[#allocation2 + $0xf0] sm:$0xff]
        %v360 = vld [vmem:[#allocation2 + $0xf8] sm:$0xff]
        %v361 = vld [vmem:[#allocation2 + $0x100] sm:$0xff]
        %v362 = vld [vmem:[#allocation2 + $0x108] sm:$0xff]
        %v363 = vld [vmem:[#allocation2 + $0x110] sm:$0xff]
        %v364 = vld [vmem:[#allocation2 + $0x118] sm:$0xff]
        %v365 = vld [vmem:[#allocation2 + $0x120] sm:$0xff]
        %v366 = vld [vmem:[#allocation2 + $0x128] sm:$0xff]
        %v367 = vld [vmem:[#allocation2 + $0x130] sm:$0xff]
        %v368 = vld [vmem:[#allocation2 + $0x138] sm:$0xff]
        %v369 = vld [vmem:[#allocation2 + $0x140] sm:$0xff]
        %v370 = vld [vmem:[#allocation2 + $0x148] sm:$0xff]
        %v371 = vld [vmem:[#allocation2 + $0x150] sm:$0xff]
        %v372 = vld [vmem:[#allocation2 + $0x158] sm:$0xff]
        %v373 = vld [vmem:[#allocation2 + $0x160] sm:$0xff]
        %v374 = vld [vmem:[#allocation2 + $0x168] sm:$0xff]
        %v375 = vld [vmem:[#allocation2 + $0x170] sm:$0xff]
        %v376 = vld [vmem:[#allocation2 + $0x178] sm:$0xff]
        %v377 = vrot.slane %v329, 7
        %v378 = vrot.slane %v330, 7
        %v379 = vrot.slane %v331, 7
        %v380 = vrot.slane %v332, 7
        %v381 = vrot.slane %v333, 7
        %v382 = vrot.slane %v334, 7
        %v383 = vrot.slane %v335, 7
        %v384 = vrot.slane %v336, 7
        %v385 = vrot.slane %v337, 7
        %v386 = vrot.slane %v338, 7
        %v387 = vrot.slane %v339, 7
        %v388 = vrot.slane %v340, 7
        %v389 = vrot.slane %v341, 7
        %v390 = vrot.slane %v342, 7
        %v391 = vrot.slane %v343, 7
        %v392 = vrot.slane %v344, 7
        %v393 = vrot.slane %v345, 7
        %v394 = vrot.slane %v346, 7
        %v395 = vrot.slane %v347, 7
        %v396 = vrot.slane %v348, 7
        %v397 = vrot.slane %v349, 7
        %v398 = vrot.slane %v350, 7
        %v399 = vrot.slane %v351, 7
        %v400 = vrot.slane %v352, 7
        %v401 = vrot.slane %v353, 7
        %v402 = vrot.slane %v354, 7
        %v403 = vrot.slane %v355, 7
        %v404 = vrot.slane %v356, 7
        %v405 = vrot.slane %v357, 7
        %v406 = vrot.slane %v358, 7
        %v407 = vrot.slane %v359, 7
        %v408 = vrot.slane %v360, 7
        %v409 = vrot.slane %v361, 7
        %v410 = vrot.slane %v362, 7
        %v411 = vrot.slane %v363, 7
        %v412 = vrot.slane %v364, 7
        %v413 = vrot.slane %v365, 7
        %v414 = vrot.slane %v366, 7
        %v415 = vrot.slane %v367, 7
        %v416 = vrot.slane %v368, 7
        %v417 = vrot.slane %v369, 7
        %v418 = vrot.slane %v370, 7
        %v419 = vrot.slane %v371, 7
        %v420 = vrot.slane %v372, 7
        %v421 = vrot.slane %v373, 7
        %v422 = vrot.slane %v374, 7
        %v423 = vrot.slane %v375, 7
        %v424 = vrot.slane %v376, 7
        %v425 = vlaneseq
        %v426 = vshrl.u32 %v425, 7
        %vm427 = vcmp.lt.s32.totalorder %v426, 1
        %v428 = vsel %vm427, %v423, %v424
        %v429 = vsel %vm427, %v422, %v423
        %v430 = vsel %vm427, %v421, %v422
        %v431 = vsel %vm427, %v420, %v421
        %v432 = vsel %vm427, %v419, %v420
        %v433 = vsel %vm427, %v418, %v419
        %v434 = vsel %vm427, %v417, %v418
        %v435 = vsel %vm427, %v416, %v417
        %v436 = vsel %vm427, %v415, %v416
        %v437 = vsel %vm427, %v414, %v415
        %v438 = vsel %vm427, %v413, %v414
        %v439 = vsel %vm427, %v412, %v413
        %v440 = vsel %vm427, %v411, %v412
        %v441 = vsel %vm427, %v410, %v411
        %v442 = vsel %vm427, %v409, %v410
        %v443 = vsel %vm427, %v408, %v409
        %v444 = vsel %vm427, %v407, %v408
        %v445 = vsel %vm427, %v406, %v407
        %v446 = vsel %vm427, %v405, %v406
        %v447 = vsel %vm427, %v404, %v405
        %v448 = vsel %vm427, %v403, %v404
        %v449 = vsel %vm427, %v402, %v403
        %v450 = vsel %vm427, %v401, %v402
        %v451 = vsel %vm427, %v400, %v401
        %v452 = vsel %vm427, %v399, %v400
        %v453 = vsel %vm427, %v398, %v399
        %v454 = vsel %vm427, %v397, %v398
        %v455 = vsel %vm427, %v396, %v397
        %v456 = vsel %vm427, %v395, %v396
        %v457 = vsel %vm427, %v394, %v395
        %v458 = vsel %vm427, %v393, %v394
        %v459 = vsel %vm427, %v392, %v393
        %v460 = vsel %vm427, %v391, %v392
        %v461 = vsel %vm427, %v390, %v391
        %v462 = vsel %vm427, %v389, %v390
        %v463 = vsel %vm427, %v388, %v389
        %v464 = vsel %vm427, %v387, %v388
        %v465 = vsel %vm427, %v386, %v387
        %v466 = vsel %vm427, %v385, %v386
        %v467 = vsel %vm427, %v384, %v385
        %v468 = vsel %vm427, %v383, %v384
        %v469 = vsel %vm427, %v382, %v383
        %v470 = vsel %vm427, %v381, %v382
        %v471 = vsel %vm427, %v380, %v381
        %v472 = vsel %vm427, %v379, %v380
        %v473 = vsel %vm427, %v378, %v379
        %v474 = vsel %vm427, %v377, %v378
        %v475 = vsel %vm427, %v424, %v377
        %v476 = vrot.slane %v329, 1
        %v477 = vrot.slane %v330, 1
        %v478 = vrot.slane %v331, 1
        %v479 = vrot.slane %v332, 1
        %v480 = vrot.slane %v333, 1
        %v481 = vrot.slane %v334, 1
        %v482 = vrot.slane %v335, 1
        %v483 = vrot.slane %v336, 1
        %v484 = vrot.slane %v337, 1
        %v485 = vrot.slane %v338, 1
        %v486 = vrot.slane %v339, 1
        %v487 = vrot.slane %v340, 1
        %v488 = vrot.slane %v341, 1
        %v489 = vrot.slane %v342, 1
        %v490 = vrot.slane %v343, 1
        %v491 = vrot.slane %v344, 1
        %v492 = vrot.slane %v345, 1
        %v493 = vrot.slane %v346, 1
        %v494 = vrot.slane %v347, 1
        %v495 = vrot.slane %v348, 1
        %v496 = vrot.slane %v349, 1
        %v497 = vrot.slane %v350, 1
        %v498 = vrot.slane %v351, 1
        %v499 = vrot.slane %v352, 1
        %v500 = vrot.slane %v353, 1
        %v501 = vrot.slane %v354, 1
        %v502 = vrot.slane %v355, 1
        %v503 = vrot.slane %v356, 1
        %v504 = vrot.slane %v357, 1
        %v505 = vrot.slane %v358, 1
        %v506 = vrot.slane %v359, 1
        %v507 = vrot.slane %v360, 1
        %v508 = vrot.slane %v361, 1
        %v509 = vrot.slane %v362, 1
        %v510 = vrot.slane %v363, 1
        %v511 = vrot.slane %v364, 1
        %v512 = vrot.slane %v365, 1
        %v513 = vrot.slane %v366, 1
        %v514 = vrot.slane %v367, 1
        %v515 = vrot.slane %v368, 1
        %v516 = vrot.slane %v369, 1
        %v517 = vrot.slane %v370, 1
        %v518 = vrot.slane %v371, 1
        %v519 = vrot.slane %v372, 1
        %v520 = vrot.slane %v373, 1
        %v521 = vrot.slane %v374, 1
        %v522 = vrot.slane %v375, 1
        %v523 = vrot.slane %v376, 1
        %vm524 = vcmp.lt.s32.totalorder %v426, 7
        %v525 = vsel %vm524, %v522, %v523
        %v526 = vsel %vm524, %v521, %v522
        %v527 = vsel %vm524, %v520, %v521
        %v528 = vsel %vm524, %v519, %v520
        %v529 = vsel %vm524, %v518, %v519
        %v530 = vsel %vm524, %v517, %v518
        %v531 = vsel %vm524, %v516, %v517
        %v532 = vsel %vm524, %v515, %v516
        %v533 = vsel %vm524, %v514, %v515
        %v534 = vsel %vm524, %v513, %v514
        %v535 = vsel %vm524, %v512, %v513
        %v536 = vsel %vm524, %v511, %v512
        %v537 = vsel %vm524, %v510, %v511
        %v538 = vsel %vm524, %v509, %v510
        %v539 = vsel %vm524, %v508, %v509
        %v540 = vsel %vm524, %v507, %v508
        %v541 = vsel %vm524, %v506, %v507
        %v542 = vsel %vm524, %v505, %v506
        %v543 = vsel %vm524, %v504, %v505
        %v544 = vsel %vm524, %v503, %v504
        %v545 = vsel %vm524, %v502, %v503
        %v546 = vsel %vm524, %v501, %v502
        %v547 = vsel %vm524, %v500, %v501
        %v548 = vsel %vm524, %v499, %v500
        %v549 = vsel %vm524, %v498, %v499
        %v550 = vsel %vm524, %v497, %v498
        %v551 = vsel %vm524, %v496, %v497
        %v552 = vsel %vm524, %v495, %v496
        %v553 = vsel %vm524, %v494, %v495
        %v554 = vsel %vm524, %v493, %v494
        %v555 = vsel %vm524, %v492, %v493
        %v556 = vsel %vm524, %v491, %v492
        %v557 = vsel %vm524, %v490, %v491
        %v558 = vsel %vm524, %v489, %v490
        %v559 = vsel %vm524, %v488, %v489
        %v560 = vsel %vm524, %v487, %v488
        %v561 = vsel %vm524, %v486, %v487
        %v562 = vsel %vm524, %v485, %v486
        %v563 = vsel %vm524, %v484, %v485
        %v564 = vsel %vm524, %v483, %v484
        %v565 = vsel %vm524, %v482, %v483
        %v566 = vsel %vm524, %v481, %v482
        %v567 = vsel %vm524, %v480, %v481
        %v568 = vsel %vm524, %v479, %v480
        %v569 = vsel %vm524, %v478, %v479
        %v570 = vsel %vm524, %v477, %v478
        %v571 = vsel %vm524, %v476, %v477
        %v572 = vsel %vm524, %v523, %v476
        %v573 = vld [vmem:[%s296] sm:$0xff]
        %v574 = vld [vmem:[%s296 + $0x8] sm:$0xff]
        %v575 = vld [vmem:[%s296 + $0x10] sm:$0xff]
        %v576 = vld [vmem:[%s296 + $0x18] sm:$0xff]
        %v577 = vld [vmem:[%s296 + $0x20] sm:$0xff]
        %v578 = vld [vmem:[%s296 + $0x28] sm:$0xff]
        %v579 = vld [vmem:[%s296 + $0x30] sm:$0xff]
        %v580 = vld [vmem:[%s296 + $0x38] sm:$0xff]
        %v581 = vld [vmem:[%s296 + $0x40] sm:$0xff]
        %v582 = vld [vmem:[%s296 + $0x48] sm:$0xff]
        %v583 = vld [vmem:[%s296 + $0x50] sm:$0xff]
        %v584 = vld [vmem:[%s296 + $0x58] sm:$0xff]
        %v585 = vld [vmem:[%s296 + $0x60] sm:$0xff]
        %v586 = vld [vmem:[%s296 + $0x68] sm:$0xff]
        %v587 = vld [vmem:[%s296 + $0x70] sm:$0xff]
        %v588 = vld [vmem:[%s296 + $0x78] sm:$0xff]
        %v589 = vld [vmem:[%s296 + $0x80] sm:$0xff]
        %v590 = vld [vmem:[%s296 + $0x88] sm:$0xff]
        %v591 = vld [vmem:[%s296 + $0x90] sm:$0xff]
        %v592 = vld [vmem:[%s296 + $0x98] sm:$0xff]
        %v593 = vld [vmem:[%s296 + $0xa0] sm:$0xff]
        %v594 = vld [vmem:[%s296 + $0xa8] sm:$0xff]
        %v595 = vld [vmem:[%s296 + $0xb0] sm:$0xff]
        %v596 = vld [vmem:[%s296 + $0xb8] sm:$0xff]
        %v597 = vld [vmem:[%s296 + $0xc0] sm:$0xff]
        %v598 = vld [vmem:[%s296 + $0xc8] sm:$0xff]
        %v599 = vld [vmem:[%s296 + $0xd0] sm:$0xff]
        %v600 = vld [vmem:[%s296 + $0xd8] sm:$0xff]
        %v601 = vld [vmem:[%s296 + $0xe0] sm:$0xff]
        %v602 = vld [vmem:[%s296 + $0xe8] sm:$0xff]
        %v603 = vld [vmem:[%s296 + $0xf0] sm:$0xff]
        %v604 = vld [vmem:[%s296 + $0xf8] sm:$0xff]
        %v605 = vld [vmem:[%s296 + $0x100] sm:$0xff]
        %v606 = vld [vmem:[%s296 + $0x108] sm:$0xff]
        %v607 = vld [vmem:[%s296 + $0x110] sm:$0xff]
        %v608 = vld [vmem:[%s296 + $0x118] sm:$0xff]
        %v609 = vld [vmem:[%s296 + $0x120] sm:$0xff]
        %v610 = vld [vmem:[%s296 + $0x128] sm:$0xff]
        %v611 = vld [vmem:[%s296 + $0x130] sm:$0xff]
        %v612 = vld [vmem:[%s296 + $0x138] sm:$0xff]
        %v613 = vld [vmem:[%s296 + $0x140] sm:$0xff]
        %v614 = vld [vmem:[%s296 + $0x148] sm:$0xff]
        %v615 = vld [vmem:[%s296 + $0x150] sm:$0xff]
        %v616 = vld [vmem:[%s296 + $0x158] sm:$0xff]
        %v617 = vld [vmem:[%s296 + $0x160] sm:$0xff]
        %v618 = vld [vmem:[%s296 + $0x168] sm:$0xff]
        %v619 = vld [vmem:[%s296 + $0x170] sm:$0xff]
        %v620 = vld [vmem:[%s296 + $0x178] sm:$0xff]
        %v621 = vrot.slane %v573, 7
        %v622 = vrot.slane %v574, 7
        %v623 = vrot.slane %v575, 7
        %v624 = vrot.slane %v576, 7
        %v625 = vrot.slane %v577, 7
        %v626 = vrot.slane %v578, 7
        %v627 = vrot.slane %v579, 7
        %v628 = vrot.slane %v580, 7
        %v629 = vrot.slane %v581, 7
        %v630 = vrot.slane %v582, 7
        %v631 = vrot.slane %v583, 7
        %v632 = vrot.slane %v584, 7
        %v633 = vrot.slane %v585, 7
        %v634 = vrot.slane %v586, 7
        %v635 = vrot.slane %v587, 7
        %v636 = vrot.slane %v588, 7
        %v637 = vrot.slane %v589, 7
        %v638 = vrot.slane %v590, 7
        %v639 = vrot.slane %v591, 7
        %v640 = vrot.slane %v592, 7
        %v641 = vrot.slane %v593, 7
        %v642 = vrot.slane %v594, 7
        %v643 = vrot.slane %v595, 7
        %v644 = vrot.slane %v596, 7
        %v645 = vrot.slane %v597, 7
        %v646 = vrot.slane %v598, 7
        %v647 = vrot.slane %v599, 7
        %v648 = vrot.slane %v600, 7
        %v649 = vrot.slane %v601, 7
        %v650 = vrot.slane %v602, 7
        %v651 = vrot.slane %v603, 7
        %v652 = vrot.slane %v604, 7
        %v653 = vrot.slane %v605, 7
        %v654 = vrot.slane %v606, 7
        %v655 = vrot.slane %v607, 7
        %v656 = vrot.slane %v608, 7
        %v657 = vrot.slane %v609, 7
        %v658 = vrot.slane %v610, 7
        %v659 = vrot.slane %v611, 7
        %v660 = vrot.slane %v612, 7
        %v661 = vrot.slane %v613, 7
        %v662 = vrot.slane %v614, 7
        %v663 = vrot.slane %v615, 7
        %v664 = vrot.slane %v616, 7
        %v665 = vrot.slane %v617, 7
        %v666 = vrot.slane %v618, 7
        %v667 = vrot.slane %v619, 7
        %v668 = vrot.slane %v620, 7
        %v669 = vsel %vm427, %v667, %v668
        %v670 = vsel %vm427, %v666, %v667
        %v671 = vsel %vm427, %v665, %v666
        %v672 = vsel %vm427, %v664, %v665
        %v673 = vsel %vm427, %v663, %v664
        %v674 = vsel %vm427, %v662, %v663
        %v675 = vsel %vm427, %v661, %v662
        %v676 = vsel %vm427, %v660, %v661
        %v677 = vsel %vm427, %v659, %v660
        %v678 = vsel %vm427, %v658, %v659
        %v679 = vsel %vm427, %v657, %v658
        %v680 = vsel %vm427, %v656, %v657
        %v681 = vsel %vm427, %v655, %v656
        %v682 = vsel %vm427, %v654, %v655
        %v683 = vsel %vm427, %v653, %v654
        %v684 = vsel %vm427, %v652, %v653
        %v685 = vsel %vm427, %v651, %v652
        %v686 = vsel %vm427, %v650, %v651
        %v687 = vsel %vm427, %v649, %v650
        %v688 = vsel %vm427, %v648, %v649
        %v689 = vsel %vm427, %v647, %v648
        %v690 = vsel %vm427, %v646, %v647
        %v691 = vsel %vm427, %v645, %v646
        %v692 = vsel %vm427, %v644, %v645
        %v693 = vsel %vm427, %v643, %v644
        %v694 = vsel %vm427, %v642, %v643
        %v695 = vsel %vm427, %v641, %v642
        %v696 = vsel %vm427, %v640, %v641
        %v697 = vsel %vm427, %v639, %v640
        %v698 = vsel %vm427, %v638, %v639
        %v699 = vsel %vm427, %v637, %v638
        %v700 = vsel %vm427, %v636, %v637
        %v701 = vsel %vm427, %v635, %v636
        %v702 = vsel %vm427, %v634, %v635
        %v703 = vsel %vm427, %v633, %v634
        %v704 = vsel %vm427, %v632, %v633
        %v705 = vsel %vm427, %v631, %v632
        %v706 = vsel %vm427, %v630, %v631
        %v707 = vsel %vm427, %v629, %v630
        %v708 = vsel %vm427, %v628, %v629
        %v709 = vsel %vm427, %v627, %v628
        %v710 = vsel %vm427, %v626, %v627
        %v711 = vsel %vm427, %v625, %v626
        %v712 = vsel %vm427, %v624, %v625
        %v713 = vsel %vm427, %v623, %v624
        %v714 = vsel %vm427, %v622, %v623
        %v715 = vsel %vm427, %v621, %v622
        %v716 = vsel %vm427, %v668, %v621
        %v717 = vrot.slane %v573, 1
        %v718 = vrot.slane %v574, 1
        %v719 = vrot.slane %v575, 1
        %v720 = vrot.slane %v576, 1
        %v721 = vrot.slane %v577, 1
        %v722 = vrot.slane %v578, 1
        %v723 = vrot.slane %v579, 1
        %v724 = vrot.slane %v580, 1
        %v725 = vrot.slane %v581, 1
        %v726 = vrot.slane %v582, 1
        %v727 = vrot.slane %v583, 1
        %v728 = vrot.slane %v584, 1
        %v729 = vrot.slane %v585, 1
        %v730 = vrot.slane %v586, 1
        %v731 = vrot.slane %v587, 1
        %v732 = vrot.slane %v588, 1
        %v733 = vrot.slane %v589, 1
        %v734 = vrot.slane %v590, 1
        %v735 = vrot.slane %v591, 1
        %v736 = vrot.slane %v592, 1
        %v737 = vrot.slane %v593, 1
        %v738 = vrot.slane %v594, 1
        %v739 = vrot.slane %v595, 1
        %v740 = vrot.slane %v596, 1
        %v741 = vrot.slane %v597, 1
        %v742 = vrot.slane %v598, 1
        %v743 = vrot.slane %v599, 1
        %v744 = vrot.slane %v600, 1
        %v745 = vrot.slane %v601, 1
        %v746 = vrot.slane %v602, 1
        %v747 = vrot.slane %v603, 1
        %v748 = vrot.slane %v604, 1
        %v749 = vrot.slane %v605, 1
        %v750 = vrot.slane %v606, 1
        %v751 = vrot.slane %v607, 1
        %v752 = vrot.slane %v608, 1
        %v753 = vrot.slane %v609, 1
        %v754 = vrot.slane %v610, 1
        %v755 = vrot.slane %v611, 1
        %v756 = vrot.slane %v612, 1
        %v757 = vrot.slane %v613, 1
        %v758 = vrot.slane %v614, 1
        %v759 = vrot.slane %v615, 1
        %v760 = vrot.slane %v616, 1
        %v761 = vrot.slane %v617, 1
        %v762 = vrot.slane %v618, 1
        %v763 = vrot.slane %v619, 1
        %v764 = vrot.slane %v620, 1
        %v765 = vsel %vm524, %v763, %v764
        %v766 = vsel %vm524, %v762, %v763
        %v767 = vsel %vm524, %v761, %v762
        %v768 = vsel %vm524, %v760, %v761
        %v769 = vsel %vm524, %v759, %v760
        %v770 = vsel %vm524, %v758, %v759
        %v771 = vsel %vm524, %v757, %v758
        %v772 = vsel %vm524, %v756, %v757
        %v773 = vsel %vm524, %v755, %v756
        %v774 = vsel %vm524, %v754, %v755
        %v775 = vsel %vm524, %v753, %v754
        %v776 = vsel %vm524, %v752, %v753
        %v777 = vsel %vm524, %v751, %v752
        %v778 = vsel %vm524, %v750, %v751
        %v779 = vsel %vm524, %v749, %v750
        %v780 = vsel %vm524, %v748, %v749
        %v781 = vsel %vm524, %v747, %v748
        %v782 = vsel %vm524, %v746, %v747
        %v783 = vsel %vm524, %v745, %v746
        %v784 = vsel %vm524, %v744, %v745
        %v785 = vsel %vm524, %v743, %v744
        %v786 = vsel %vm524, %v742, %v743
        %v787 = vsel %vm524, %v741, %v742
        %v788 = vsel %vm524, %v740, %v741
        %v789 = vsel %vm524, %v739, %v740
        %v790 = vsel %vm524, %v738, %v739
        %v791 = vsel %vm524, %v737, %v738
        %v792 = vsel %vm524, %v736, %v737
        %v793 = vsel %vm524, %v735, %v736
        %v794 = vsel %vm524, %v734, %v735
        %v795 = vsel %vm524, %v733, %v734
        %v796 = vsel %vm524, %v732, %v733
        %v797 = vsel %vm524, %v731, %v732
        %v798 = vsel %vm524, %v730, %v731
        %v799 = vsel %vm524, %v729, %v730
        %v800 = vsel %vm524, %v728, %v729
        %v801 = vsel %vm524, %v727, %v728
        %v802 = vsel %vm524, %v726, %v727
        %v803 = vsel %vm524, %v725, %v726
        %v804 = vsel %vm524, %v724, %v725
        %v805 = vsel %vm524, %v723, %v724
        %v806 = vsel %vm524, %v722, %v723
        %v807 = vsel %vm524, %v721, %v722
        %v808 = vsel %vm524, %v720, %v721
        %v809 = vsel %vm524, %v719, %v720
        %v810 = vsel %vm524, %v718, %v719
        %v811 = vsel %vm524, %v717, %v718
        %v812 = vsel %vm524, %v764, %v717
        %s813 = scalar_lea.vmem [#allocation2], 48
        %v814 = vld [vmem:[%s813] sm:$0xff]
        %v815 = vld [vmem:[%s813 + $0x8] sm:$0xff]
        %v816 = vld [vmem:[%s813 + $0x10] sm:$0xff]
        %v817 = vld [vmem:[%s813 + $0x18] sm:$0xff]
        %v818 = vld [vmem:[%s813 + $0x20] sm:$0xff]
        %v819 = vld [vmem:[%s813 + $0x28] sm:$0xff]
        %v820 = vld [vmem:[%s813 + $0x30] sm:$0xff]
        %v821 = vld [vmem:[%s813 + $0x38] sm:$0xff]
        %v822 = vld [vmem:[%s813 + $0x40] sm:$0xff]
        %v823 = vld [vmem:[%s813 + $0x48] sm:$0xff]
        %v824 = vld [vmem:[%s813 + $0x50] sm:$0xff]
        %v825 = vld [vmem:[%s813 + $0x58] sm:$0xff]
        %v826 = vld [vmem:[%s813 + $0x60] sm:$0xff]
        %v827 = vld [vmem:[%s813 + $0x68] sm:$0xff]
        %v828 = vld [vmem:[%s813 + $0x70] sm:$0xff]
        %v829 = vld [vmem:[%s813 + $0x78] sm:$0xff]
        %v830 = vld [vmem:[%s813 + $0x80] sm:$0xff]
        %v831 = vld [vmem:[%s813 + $0x88] sm:$0xff]
        %v832 = vld [vmem:[%s813 + $0x90] sm:$0xff]
        %v833 = vld [vmem:[%s813 + $0x98] sm:$0xff]
        %v834 = vld [vmem:[%s813 + $0xa0] sm:$0xff]
        %v835 = vld [vmem:[%s813 + $0xa8] sm:$0xff]
        %v836 = vld [vmem:[%s813 + $0xb0] sm:$0xff]
        %v837 = vld [vmem:[%s813 + $0xb8] sm:$0xff]
        %v838 = vld [vmem:[%s813 + $0xc0] sm:$0xff]
        %v839 = vld [vmem:[%s813 + $0xc8] sm:$0xff]
        %v840 = vld [vmem:[%s813 + $0xd0] sm:$0xff]
        %v841 = vld [vmem:[%s813 + $0xd8] sm:$0xff]
        %v842 = vld [vmem:[%s813 + $0xe0] sm:$0xff]
        %v843 = vld [vmem:[%s813 + $0xe8] sm:$0xff]
        %v844 = vld [vmem:[%s813 + $0xf0] sm:$0xff]
        %v845 = vld [vmem:[%s813 + $0xf8] sm:$0xff]
        %v846 = vld [vmem:[%s813 + $0x100] sm:$0xff]
        %v847 = vld [vmem:[%s813 + $0x108] sm:$0xff]
        %v848 = vld [vmem:[%s813 + $0x110] sm:$0xff]
        %v849 = vld [vmem:[%s813 + $0x118] sm:$0xff]
        %v850 = vld [vmem:[%s813 + $0x120] sm:$0xff]
        %v851 = vld [vmem:[%s813 + $0x128] sm:$0xff]
        %v852 = vld [vmem:[%s813 + $0x130] sm:$0xff]
        %v853 = vld [vmem:[%s813 + $0x138] sm:$0xff]
        %v854 = vld [vmem:[%s813 + $0x140] sm:$0xff]
        %v855 = vld [vmem:[%s813 + $0x148] sm:$0xff]
        %v856 = vld [vmem:[%s813 + $0x150] sm:$0xff]
        %v857 = vld [vmem:[%s813 + $0x158] sm:$0xff]
        %v858 = vld [vmem:[%s813 + $0x160] sm:$0xff]
        %v859 = vld [vmem:[%s813 + $0x168] sm:$0xff]
        %v860 = vld [vmem:[%s813 + $0x170] sm:$0xff]
        %v861 = vld [vmem:[%s813 + $0x178] sm:$0xff]
        %v862 = vrot.slane %v814, 7
        %v863 = vrot.slane %v815, 7
        %v864 = vrot.slane %v816, 7
        %v865 = vrot.slane %v817, 7
        %v866 = vrot.slane %v818, 7
        %v867 = vrot.slane %v819, 7
        %v868 = vrot.slane %v820, 7
        %v869 = vrot.slane %v821, 7
        %v870 = vrot.slane %v822, 7
        %v871 = vrot.slane %v823, 7
        %v872 = vrot.slane %v824, 7
        %v873 = vrot.slane %v825, 7
        %v874 = vrot.slane %v826, 7
        %v875 = vrot.slane %v827, 7
        %v876 = vrot.slane %v828, 7
        %v877 = vrot.slane %v829, 7
        %v878 = vrot.slane %v830, 7
        %v879 = vrot.slane %v831, 7
        %v880 = vrot.slane %v832, 7
        %v881 = vrot.slane %v833, 7
        %v882 = vrot.slane %v834, 7
        %v883 = vrot.slane %v835, 7
        %v884 = vrot.slane %v836, 7
        %v885 = vrot.slane %v837, 7
        %v886 = vrot.slane %v838, 7
        %v887 = vrot.slane %v839, 7
        %v888 = vrot.slane %v840, 7
        %v889 = vrot.slane %v841, 7
        %v890 = vrot.slane %v842, 7
        %v891 = vrot.slane %v843, 7
        %v892 = vrot.slane %v844, 7
        %v893 = vrot.slane %v845, 7
        %v894 = vrot.slane %v846, 7
        %v895 = vrot.slane %v847, 7
        %v896 = vrot.slane %v848, 7
        %v897 = vrot.slane %v849, 7
        %v898 = vrot.slane %v850, 7
        %v899 = vrot.slane %v851, 7
        %v900 = vrot.slane %v852, 7
        %v901 = vrot.slane %v853, 7
        %v902 = vrot.slane %v854, 7
        %v903 = vrot.slane %v855, 7
        %v904 = vrot.slane %v856, 7
        %v905 = vrot.slane %v857, 7
        %v906 = vrot.slane %v858, 7
        %v907 = vrot.slane %v859, 7
        %v908 = vrot.slane %v860, 7
        %v909 = vrot.slane %v861, 7
        %v910 = vsel %vm427, %v908, %v909
        %v911 = vsel %vm427, %v907, %v908
        %v912 = vsel %vm427, %v906, %v907
        %v913 = vsel %vm427, %v905, %v906
        %v914 = vsel %vm427, %v904, %v905
        %v915 = vsel %vm427, %v903, %v904
        %v916 = vsel %vm427, %v902, %v903
        %v917 = vsel %vm427, %v901, %v902
        %v918 = vsel %vm427, %v900, %v901
        %v919 = vsel %vm427, %v899, %v900
        %v920 = vsel %vm427, %v898, %v899
        %v921 = vsel %vm427, %v897, %v898
        %v922 = vsel %vm427, %v896, %v897
        %v923 = vsel %vm427, %v895, %v896
        %v924 = vsel %vm427, %v894, %v895
        %v925 = vsel %vm427, %v893, %v894
        %v926 = vsel %vm427, %v892, %v893
        %v927 = vsel %vm427, %v891, %v892
        %v928 = vsel %vm427, %v890, %v891
        %v929 = vsel %vm427, %v889, %v890
        %v930 = vsel %vm427, %v888, %v889
        %v931 = vsel %vm427, %v887, %v888
        %v932 = vsel %vm427, %v886, %v887
        %v933 = vsel %vm427, %v885, %v886
        %v934 = vsel %vm427, %v884, %v885
        %v935 = vsel %vm427, %v883, %v884
        %v936 = vsel %vm427, %v882, %v883
        %v937 = vsel %vm427, %v881, %v882
        %v938 = vsel %vm427, %v880, %v881
        %v939 = vsel %vm427, %v879, %v880
        %v940 = vsel %vm427, %v878, %v879
        %v941 = vsel %vm427, %v877, %v878
        %v942 = vsel %vm427, %v876, %v877
        %v943 = vsel %vm427, %v875, %v876
        %v944 = vsel %vm427, %v874, %v875
        %v945 = vsel %vm427, %v873, %v874
        %v946 = vsel %vm427, %v872, %v873
        %v947 = vsel %vm427, %v871, %v872
        %v948 = vsel %vm427, %v870, %v871
        %v949 = vsel %vm427, %v869, %v870
        %v950 = vsel %vm427, %v868, %v869
        %v951 = vsel %vm427, %v867, %v868
        %v952 = vsel %vm427, %v866, %v867
        %v953 = vsel %vm427, %v865, %v866
        %v954 = vsel %vm427, %v864, %v865
        %v955 = vsel %vm427, %v863, %v864
        %v956 = vsel %vm427, %v862, %v863
        %v957 = vsel %vm427, %v909, %v862
        %v958 = vrot.slane %v814, 1
        %v959 = vrot.slane %v815, 1
        %v960 = vrot.slane %v816, 1
        %v961 = vrot.slane %v817, 1
        %v962 = vrot.slane %v818, 1
        %v963 = vrot.slane %v819, 1
        %v964 = vrot.slane %v820, 1
        %v965 = vrot.slane %v821, 1
        %v966 = vrot.slane %v822, 1
        %v967 = vrot.slane %v823, 1
        %v968 = vrot.slane %v824, 1
        %v969 = vrot.slane %v825, 1
        %v970 = vrot.slane %v826, 1
        %v971 = vrot.slane %v827, 1
        %v972 = vrot.slane %v828, 1
        %v973 = vrot.slane %v829, 1
        %v974 = vrot.slane %v830, 1
        %v975 = vrot.slane %v831, 1
        %v976 = vrot.slane %v832, 1
        %v977 = vrot.slane %v833, 1
        %v978 = vrot.slane %v834, 1
        %v979 = vrot.slane %v835, 1
        %v980 = vrot.slane %v836, 1
        %v981 = vrot.slane %v837, 1
        %v982 = vrot.slane %v838, 1
        %v983 = vrot.slane %v839, 1
        %v984 = vrot.slane %v840, 1
        %v985 = vrot.slane %v841, 1
        %v986 = vrot.slane %v842, 1
        %v987 = vrot.slane %v843, 1
        %v988 = vrot.slane %v844, 1
        %v989 = vrot.slane %v845, 1
        %v990 = vrot.slane %v846, 1
        %v991 = vrot.slane %v847, 1
        %v992 = vrot.slane %v848, 1
        %v993 = vrot.slane %v849, 1
        %v994 = vrot.slane %v850, 1
        %v995 = vrot.slane %v851, 1
        %v996 = vrot.slane %v852, 1
        %v997 = vrot.slane %v853, 1
        %v998 = vrot.slane %v854, 1
        %v999 = vrot.slane %v855, 1
        %v1000 = vrot.slane %v856, 1
        %v1001 = vrot.slane %v857, 1
        %v1002 = vrot.slane %v858, 1
        %v1003 = vrot.slane %v859, 1
        %v1004 = vrot.slane %v860, 1
        %v1005 = vrot.slane %v861, 1
        %v1006 = vsel %vm524, %v1004, %v1005
        %v1007 = vsel %vm524, %v1003, %v1004
        %v1008 = vsel %vm524, %v1002, %v1003
        %v1009 = vsel %vm524, %v1001, %v1002
        %v1010 = vsel %vm524, %v1000, %v1001
        %v1011 = vsel %vm524, %v999, %v1000
        %v1012 = vsel %vm524, %v998, %v999
        %v1013 = vsel %vm524, %v997, %v998
        %v1014 = vsel %vm524, %v996, %v997
        %v1015 = vsel %vm524, %v995, %v996
        %v1016 = vsel %vm524, %v994, %v995
        %v1017 = vsel %vm524, %v993, %v994
        %v1018 = vsel %vm524, %v992, %v993
        %v1019 = vsel %vm524, %v991, %v992
        %v1020 = vsel %vm524, %v990, %v991
        %v1021 = vsel %vm524, %v989, %v990
        %v1022 = vsel %vm524, %v988, %v989
        %v1023 = vsel %vm524, %v987, %v988
        %v1024 = vsel %vm524, %v986, %v987
        %v1025 = vsel %vm524, %v985, %v986
        %v1026 = vsel %vm524, %v984, %v985
        %v1027 = vsel %vm524, %v983, %v984
        %v1028 = vsel %vm524, %v982, %v983
        %v1029 = vsel %vm524, %v981, %v982
        %v1030 = vsel %vm524, %v980, %v981
        %v1031 = vsel %vm524, %v979, %v980
        %v1032 = vsel %vm524, %v978, %v979
        %v1033 = vsel %vm524, %v977, %v978
        %v1034 = vsel %vm524, %v976, %v977
        %v1035 = vsel %vm524, %v975, %v976
        %v1036 = vsel %vm524, %v974, %v975
        %v1037 = vsel %vm524, %v973, %v974
        %v1038 = vsel %vm524, %v972, %v973
        %v1039 = vsel %vm524, %v971, %v972
        %v1040 = vsel %vm524, %v970, %v971
        %v1041 = vsel %vm524, %v969, %v970
        %v1042 = vsel %vm524, %v968, %v969
        %v1043 = vsel %vm524, %v967, %v968
        %v1044 = vsel %vm524, %v966, %v967
        %v1045 = vsel %vm524, %v965, %v966
        %v1046 = vsel %vm524, %v964, %v965
        %v1047 = vsel %vm524, %v963, %v964
        %v1048 = vsel %vm524, %v962, %v963
        %v1049 = vsel %vm524, %v961, %v962
        %v1050 = vsel %vm524, %v960, %v961
        %v1051 = vsel %vm524, %v959, %v960
        %v1052 = vsel %vm524, %v958, %v959
        %v1053 = vsel %vm524, %v1005, %v958
        %1102 = vrot.lane.b32.xlu0 %v329, 4
        %v1103 = vpop.permute.xlu0 %1102
        %1104 = vrot.lane.b32.xlu0 %v330, 4
        %v1105 = vpop.permute.xlu0 %1104
        %1106 = vrot.lane.b32.xlu0 %v331, 4
        %v1107 = vpop.permute.xlu0 %1106
        %1108 = vrot.lane.b32.xlu0 %v332, 4
        %v1109 = vpop.permute.xlu0 %1108
        %1110 = vrot.lane.b32.xlu0 %v333, 4
        %v1111 = vpop.permute.xlu0 %1110
        %1112 = vrot.lane.b32.xlu0 %v334, 4
        %v1113 = vpop.permute.xlu0 %1112
        %1114 = vrot.lane.b32.xlu0 %v335, 4
        %v1115 = vpop.permute.xlu0 %1114
        %1116 = vrot.lane.b32.xlu0 %v336, 4
        %v1117 = vpop.permute.xlu0 %1116
        %1118 = vrot.lane.b32.xlu0 %v337, 4
        %v1119 = vpop.permute.xlu0 %1118
        %1120 = vrot.lane.b32.xlu0 %v338, 4
        %v1121 = vpop.permute.xlu0 %1120
        %1122 = vrot.lane.b32.xlu0 %v339, 4
        %v1123 = vpop.permute.xlu0 %1122
        %1124 = vrot.lane.b32.xlu0 %v340, 4
        %v1125 = vpop.permute.xlu0 %1124
        %1126 = vrot.lane.b32.xlu0 %v341, 4
        %v1127 = vpop.permute.xlu0 %1126
        %1128 = vrot.lane.b32.xlu0 %v342, 4
        %v1129 = vpop.permute.xlu0 %1128
        %1130 = vrot.lane.b32.xlu0 %v343, 4
        %v1131 = vpop.permute.xlu0 %1130
        %1132 = vrot.lane.b32.xlu0 %v344, 4
        %v1133 = vpop.permute.xlu0 %1132
        %1134 = vrot.lane.b32.xlu0 %v345, 4
        %v1135 = vpop.permute.xlu0 %1134
        %1136 = vrot.lane.b32.xlu0 %v346, 4
        %v1137 = vpop.permute.xlu0 %1136
        %1138 = vrot.lane.b32.xlu0 %v347, 4
        %v1139 = vpop.permute.xlu0 %1138
        %1140 = vrot.lane.b32.xlu0 %v348, 4
        %v1141 = vpop.permute.xlu0 %1140
        %1142 = vrot.lane.b32.xlu0 %v349, 4
        %v1143 = vpop.permute.xlu0 %1142
        %1144 = vrot.lane.b32.xlu0 %v350, 4
        %v1145 = vpop.permute.xlu0 %1144
        %1146 = vrot.lane.b32.xlu0 %v351, 4
        %v1147 = vpop.permute.xlu0 %1146
        %1148 = vrot.lane.b32.xlu0 %v352, 4
        %v1149 = vpop.permute.xlu0 %1148
        %1150 = vrot.lane.b32.xlu0 %v353, 4
        %v1151 = vpop.permute.xlu0 %1150
        %1152 = vrot.lane.b32.xlu0 %v354, 4
        %v1153 = vpop.permute.xlu0 %1152
        %1154 = vrot.lane.b32.xlu0 %v355, 4
        %v1155 = vpop.permute.xlu0 %1154
        %1156 = vrot.lane.b32.xlu0 %v356, 4
        %v1157 = vpop.permute.xlu0 %1156
        %1158 = vrot.lane.b32.xlu0 %v357, 4
        %v1159 = vpop.permute.xlu0 %1158
        %1160 = vrot.lane.b32.xlu0 %v358, 4
        %v1161 = vpop.permute.xlu0 %1160
        %1162 = vrot.lane.b32.xlu0 %v359, 4
        %v1163 = vpop.permute.xlu0 %1162
        %1164 = vrot.lane.b32.xlu0 %v360, 4
        %v1165 = vpop.permute.xlu0 %1164
        %1166 = vrot.lane.b32.xlu0 %v361, 4
        %v1167 = vpop.permute.xlu0 %1166
        %1168 = vrot.lane.b32.xlu0 %v362, 4
        %v1169 = vpop.permute.xlu0 %1168
        %1170 = vrot.lane.b32.xlu0 %v363, 4
        %v1171 = vpop.permute.xlu0 %1170
        %1172 = vrot.lane.b32.xlu0 %v364, 4
        %v1173 = vpop.permute.xlu0 %1172
        %1174 = vrot.lane.b32.xlu0 %v365, 4
        %v1175 = vpop.permute.xlu0 %1174
        %1176 = vrot.lane.b32.xlu0 %v366, 4
        %v1177 = vpop.permute.xlu0 %1176
        %1178 = vrot.lane.b32.xlu0 %v367, 4
        %v1179 = vpop.permute.xlu0 %1178
        %1180 = vrot.lane.b32.xlu0 %v368, 4
        %v1181 = vpop.permute.xlu0 %1180
        %1182 = vrot.lane.b32.xlu0 %v369, 4
        %v1183 = vpop.permute.xlu0 %1182
        %1184 = vrot.lane.b32.xlu0 %v370, 4
        %v1185 = vpop.permute.xlu0 %1184
        %1186 = vrot.lane.b32.xlu0 %v371, 4
        %v1187 = vpop.permute.xlu0 %1186
        %1188 = vrot.lane.b32.xlu0 %v372, 4
        %v1189 = vpop.permute.xlu0 %1188
        %1190 = vrot.lane.b32.xlu0 %v373, 4
        %v1191 = vpop.permute.xlu0 %1190
        %1192 = vrot.lane.b32.xlu0 %v374, 4
        %v1193 = vpop.permute.xlu0 %1192
        %1194 = vrot.lane.b32.xlu0 %v375, 4
        %v1195 = vpop.permute.xlu0 %1194
        %1196 = vrot.lane.b32.xlu0 %v376, 4
        %v1197 = vpop.permute.xlu0 %1196
        %1294 = vrot.lane.b32.xlu0 %v571, 8
        %v1295 = vpop.permute.xlu0 %1294
        %1296 = vrot.lane.b32.xlu0 %v570, 8
        %v1297 = vpop.permute.xlu0 %1296
        %1298 = vrot.lane.b32.xlu0 %v569, 8
        %v1299 = vpop.permute.xlu0 %1298
        %1300 = vrot.lane.b32.xlu0 %v568, 8
        %v1301 = vpop.permute.xlu0 %1300
        %1302 = vrot.lane.b32.xlu0 %v567, 8
        %v1303 = vpop.permute.xlu0 %1302
        %1304 = vrot.lane.b32.xlu0 %v566, 8
        %v1305 = vpop.permute.xlu0 %1304
        %1306 = vrot.lane.b32.xlu0 %v565, 8
        %v1307 = vpop.permute.xlu0 %1306
        %1308 = vrot.lane.b32.xlu0 %v564, 8
        %v1309 = vpop.permute.xlu0 %1308
        %1310 = vrot.lane.b32.xlu0 %v563, 8
        %v1311 = vpop.permute.xlu0 %1310
        %1312 = vrot.lane.b32.xlu0 %v562, 8
        %v1313 = vpop.permute.xlu0 %1312
        %1314 = vrot.lane.b32.xlu0 %v561, 8
        %v1315 = vpop.permute.xlu0 %1314
        %1316 = vrot.lane.b32.xlu0 %v560, 8
        %v1317 = vpop.permute.xlu0 %1316
        %1318 = vrot.lane.b32.xlu0 %v559, 8
        %v1319 = vpop.permute.xlu0 %1318
        %1320 = vrot.lane.b32.xlu0 %v558, 8
        %v1321 = vpop.permute.xlu0 %1320
        %1322 = vrot.lane.b32.xlu0 %v557, 8
        %v1323 = vpop.permute.xlu0 %1322
        %1324 = vrot.lane.b32.xlu0 %v556, 8
        %v1325 = vpop.permute.xlu0 %1324
        %1326 = vrot.lane.b32.xlu0 %v555, 8
        %v1327 = vpop.permute.xlu0 %1326
        %1328 = vrot.lane.b32.xlu0 %v554, 8
        %v1329 = vpop.permute.xlu0 %1328
        %1330 = vrot.lane.b32.xlu0 %v553, 8
        %v1331 = vpop.permute.xlu0 %1330
        %1332 = vrot.lane.b32.xlu0 %v552, 8
        %v1333 = vpop.permute.xlu0 %1332
        %1334 = vrot.lane.b32.xlu0 %v551, 8
        %v1335 = vpop.permute.xlu0 %1334
        %1336 = vrot.lane.b32.xlu0 %v550, 8
        %v1337 = vpop.permute.xlu0 %1336
        %1338 = vrot.lane.b32.xlu0 %v549, 8
        %v1339 = vpop.permute.xlu0 %1338
        %1340 = vrot.lane.b32.xlu0 %v548, 8
        %v1341 = vpop.permute.xlu0 %1340
        %1342 = vrot.lane.b32.xlu0 %v547, 8
        %v1343 = vpop.permute.xlu0 %1342
        %1344 = vrot.lane.b32.xlu0 %v546, 8
        %v1345 = vpop.permute.xlu0 %1344
        %1346 = vrot.lane.b32.xlu0 %v545, 8
        %v1347 = vpop.permute.xlu0 %1346
        %1348 = vrot.lane.b32.xlu0 %v544, 8
        %v1349 = vpop.permute.xlu0 %1348
        %1350 = vrot.lane.b32.xlu0 %v543, 8
        %v1351 = vpop.permute.xlu0 %1350
        %1352 = vrot.lane.b32.xlu0 %v542, 8
        %v1353 = vpop.permute.xlu0 %1352
        %1354 = vrot.lane.b32.xlu0 %v541, 8
        %v1355 = vpop.permute.xlu0 %1354
        %1356 = vrot.lane.b32.xlu0 %v540, 8
        %v1357 = vpop.permute.xlu0 %1356
        %1358 = vrot.lane.b32.xlu0 %v539, 8
        %v1359 = vpop.permute.xlu0 %1358
        %1360 = vrot.lane.b32.xlu0 %v538, 8
        %v1361 = vpop.permute.xlu0 %1360
        %1362 = vrot.lane.b32.xlu0 %v537, 8
        %v1363 = vpop.permute.xlu0 %1362
        %1364 = vrot.lane.b32.xlu0 %v536, 8
        %v1365 = vpop.permute.xlu0 %1364
        %1366 = vrot.lane.b32.xlu0 %v535, 8
        %v1367 = vpop.permute.xlu0 %1366
        %1368 = vrot.lane.b32.xlu0 %v534, 8
        %v1369 = vpop.permute.xlu0 %1368
        %1370 = vrot.lane.b32.xlu0 %v533, 8
        %v1371 = vpop.permute.xlu0 %1370
        %1372 = vrot.lane.b32.xlu0 %v532, 8
        %v1373 = vpop.permute.xlu0 %1372
        %1374 = vrot.lane.b32.xlu0 %v531, 8
        %v1375 = vpop.permute.xlu0 %1374
        %1376 = vrot.lane.b32.xlu0 %v530, 8
        %v1377 = vpop.permute.xlu0 %1376
        %1378 = vrot.lane.b32.xlu0 %v529, 8
        %v1379 = vpop.permute.xlu0 %1378
        %1380 = vrot.lane.b32.xlu0 %v528, 8
        %v1381 = vpop.permute.xlu0 %1380
        %1382 = vrot.lane.b32.xlu0 %v527, 8
        %v1383 = vpop.permute.xlu0 %1382
        %1384 = vrot.lane.b32.xlu0 %v526, 8
        %v1385 = vpop.permute.xlu0 %1384
        %1386 = vrot.lane.b32.xlu0 %v525, 8
        %v1387 = vpop.permute.xlu0 %1386
        %1388 = vrot.lane.b32.xlu0 %v572, 8
        %v1389 = vpop.permute.xlu0 %1388
        %1486 = vrot.lane.b32.xlu0 %v716, 12
        %v1487 = vpop.permute.xlu0 %1486
        %1488 = vrot.lane.b32.xlu0 %v715, 12
        %v1489 = vpop.permute.xlu0 %1488
        %1490 = vrot.lane.b32.xlu0 %v714, 12
        %v1491 = vpop.permute.xlu0 %1490
        %1492 = vrot.lane.b32.xlu0 %v713, 12
        %v1493 = vpop.permute.xlu0 %1492
        %1494 = vrot.lane.b32.xlu0 %v712, 12
        %v1495 = vpop.permute.xlu0 %1494
        %1496 = vrot.lane.b32.xlu0 %v711, 12
        %v1497 = vpop.permute.xlu0 %1496
        %1498 = vrot.lane.b32.xlu0 %v710, 12
        %v1499 = vpop.permute.xlu0 %1498
        %1500 = vrot.lane.b32.xlu0 %v709, 12
        %v1501 = vpop.permute.xlu0 %1500
        %1502 = vrot.lane.b32.xlu0 %v708, 12
        %v1503 = vpop.permute.xlu0 %1502
        %1504 = vrot.lane.b32.xlu0 %v707, 12
        %v1505 = vpop.permute.xlu0 %1504
        %1506 = vrot.lane.b32.xlu0 %v706, 12
        %v1507 = vpop.permute.xlu0 %1506
        %1508 = vrot.lane.b32.xlu0 %v705, 12
        %v1509 = vpop.permute.xlu0 %1508
        %1510 = vrot.lane.b32.xlu0 %v704, 12
        %v1511 = vpop.permute.xlu0 %1510
        %1512 = vrot.lane.b32.xlu0 %v703, 12
        %v1513 = vpop.permute.xlu0 %1512
        %1514 = vrot.lane.b32.xlu0 %v702, 12
        %v1515 = vpop.permute.xlu0 %1514
        %1516 = vrot.lane.b32.xlu0 %v701, 12
        %v1517 = vpop.permute.xlu0 %1516
        %1518 = vrot.lane.b32.xlu0 %v700, 12
        %v1519 = vpop.permute.xlu0 %1518
        %1520 = vrot.lane.b32.xlu0 %v699, 12
        %v1521 = vpop.permute.xlu0 %1520
        %1522 = vrot.lane.b32.xlu0 %v698, 12
        %v1523 = vpop.permute.xlu0 %1522
        %1524 = vrot.lane.b32.xlu0 %v697, 12
        %v1525 = vpop.permute.xlu0 %1524
        %1526 = vrot.lane.b32.xlu0 %v696, 12
        %v1527 = vpop.permute.xlu0 %1526
        %1528 = vrot.lane.b32.xlu0 %v695, 12
        %v1529 = vpop.permute.xlu0 %1528
        %1530 = vrot.lane.b32.xlu0 %v694, 12
        %v1531 = vpop.permute.xlu0 %1530
        %1532 = vrot.lane.b32.xlu0 %v693, 12
        %v1533 = vpop.permute.xlu0 %1532
        %1534 = vrot.lane.b32.xlu0 %v692, 12
        %v1535 = vpop.permute.xlu0 %1534
        %1536 = vrot.lane.b32.xlu0 %v691, 12
        %v1537 = vpop.permute.xlu0 %1536
        %1538 = vrot.lane.b32.xlu0 %v690, 12
        %v1539 = vpop.permute.xlu0 %1538
        %1540 = vrot.lane.b32.xlu0 %v689, 12
        %v1541 = vpop.permute.xlu0 %1540
        %1542 = vrot.lane.b32.xlu0 %v688, 12
        %v1543 = vpop.permute.xlu0 %1542
        %1544 = vrot.lane.b32.xlu0 %v687, 12
        %v1545 = vpop.permute.xlu0 %1544
        %1546 = vrot.lane.b32.xlu0 %v686, 12
        %v1547 = vpop.permute.xlu0 %1546
        %1548 = vrot.lane.b32.xlu0 %v685, 12
        %v1549 = vpop.permute.xlu0 %1548
        %1550 = vrot.lane.b32.xlu0 %v684, 12
        %v1551 = vpop.permute.xlu0 %1550
        %1552 = vrot.lane.b32.xlu0 %v683, 12
        %v1553 = vpop.permute.xlu0 %1552
        %1554 = vrot.lane.b32.xlu0 %v682, 12
        %v1555 = vpop.permute.xlu0 %1554
        %1556 = vrot.lane.b32.xlu0 %v681, 12
        %v1557 = vpop.permute.xlu0 %1556
        %1558 = vrot.lane.b32.xlu0 %v680, 12
        %v1559 = vpop.permute.xlu0 %1558
        %1560 = vrot.lane.b32.xlu0 %v679, 12
        %v1561 = vpop.permute.xlu0 %1560
        %1562 = vrot.lane.b32.xlu0 %v678, 12
        %v1563 = vpop.permute.xlu0 %1562
        %1564 = vrot.lane.b32.xlu0 %v677, 12
        %v1565 = vpop.permute.xlu0 %1564
        %1566 = vrot.lane.b32.xlu0 %v676, 12
        %v1567 = vpop.permute.xlu0 %1566
        %1568 = vrot.lane.b32.xlu0 %v675, 12
        %v1569 = vpop.permute.xlu0 %1568
        %1570 = vrot.lane.b32.xlu0 %v674, 12
        %v1571 = vpop.permute.xlu0 %1570
        %1572 = vrot.lane.b32.xlu0 %v673, 12
        %v1573 = vpop.permute.xlu0 %1572
        %1574 = vrot.lane.b32.xlu0 %v672, 12
        %v1575 = vpop.permute.xlu0 %1574
        %1576 = vrot.lane.b32.xlu0 %v671, 12
        %v1577 = vpop.permute.xlu0 %1576
        %1578 = vrot.lane.b32.xlu0 %v670, 12
        %v1579 = vpop.permute.xlu0 %1578
        %1580 = vrot.lane.b32.xlu0 %v669, 12
        %v1581 = vpop.permute.xlu0 %1580
        %1678 = vrot.lane.b32.xlu0 %v573, 16
        %v1679 = vpop.permute.xlu0 %1678
        %1680 = vrot.lane.b32.xlu0 %v574, 16
        %v1681 = vpop.permute.xlu0 %1680
        %1682 = vrot.lane.b32.xlu0 %v575, 16
        %v1683 = vpop.permute.xlu0 %1682
        %1684 = vrot.lane.b32.xlu0 %v576, 16
        %v1685 = vpop.permute.xlu0 %1684
        %1686 = vrot.lane.b32.xlu0 %v577, 16
        %v1687 = vpop.permute.xlu0 %1686
        %1688 = vrot.lane.b32.xlu0 %v578, 16
        %v1689 = vpop.permute.xlu0 %1688
        %1690 = vrot.lane.b32.xlu0 %v579, 16
        %v1691 = vpop.permute.xlu0 %1690
        %1692 = vrot.lane.b32.xlu0 %v580, 16
        %v1693 = vpop.permute.xlu0 %1692
        %1694 = vrot.lane.b32.xlu0 %v581, 16
        %v1695 = vpop.permute.xlu0 %1694
        %1696 = vrot.lane.b32.xlu0 %v582, 16
        %v1697 = vpop.permute.xlu0 %1696
        %1698 = vrot.lane.b32.xlu0 %v583, 16
        %v1699 = vpop.permute.xlu0 %1698
        %1700 = vrot.lane.b32.xlu0 %v584, 16
        %v1701 = vpop.permute.xlu0 %1700
        %1702 = vrot.lane.b32.xlu0 %v585, 16
        %v1703 = vpop.permute.xlu0 %1702
        %1704 = vrot.lane.b32.xlu0 %v586, 16
        %v1705 = vpop.permute.xlu0 %1704
        %1706 = vrot.lane.b32.xlu0 %v587, 16
        %v1707 = vpop.permute.xlu0 %1706
        %1708 = vrot.lane.b32.xlu0 %v588, 16
        %v1709 = vpop.permute.xlu0 %1708
        %1710 = vrot.lane.b32.xlu0 %v589, 16
        %v1711 = vpop.permute.xlu0 %1710
        %1712 = vrot.lane.b32.xlu0 %v590, 16
        %v1713 = vpop.permute.xlu0 %1712
        %1714 = vrot.lane.b32.xlu0 %v591, 16
        %v1715 = vpop.permute.xlu0 %1714
        %1716 = vrot.lane.b32.xlu0 %v592, 16
        %v1717 = vpop.permute.xlu0 %1716
        %1718 = vrot.lane.b32.xlu0 %v593, 16
        %v1719 = vpop.permute.xlu0 %1718
        %1720 = vrot.lane.b32.xlu0 %v594, 16
        %v1721 = vpop.permute.xlu0 %1720
        %1722 = vrot.lane.b32.xlu0 %v595, 16
        %v1723 = vpop.permute.xlu0 %1722
        %1724 = vrot.lane.b32.xlu0 %v596, 16
        %v1725 = vpop.permute.xlu0 %1724
        %1726 = vrot.lane.b32.xlu0 %v597, 16
        %v1727 = vpop.permute.xlu0 %1726
        %1728 = vrot.lane.b32.xlu0 %v598, 16
        %v1729 = vpop.permute.xlu0 %1728
        %1730 = vrot.lane.b32.xlu0 %v599, 16
        %v1731 = vpop.permute.xlu0 %1730
        %1732 = vrot.lane.b32.xlu0 %v600, 16
        %v1733 = vpop.permute.xlu0 %1732
        %1734 = vrot.lane.b32.xlu0 %v601, 16
        %v1735 = vpop.permute.xlu0 %1734
        %1736 = vrot.lane.b32.xlu0 %v602, 16
        %v1737 = vpop.permute.xlu0 %1736
        %1738 = vrot.lane.b32.xlu0 %v603, 16
        %v1739 = vpop.permute.xlu0 %1738
        %1740 = vrot.lane.b32.xlu0 %v604, 16
        %v1741 = vpop.permute.xlu0 %1740
        %1742 = vrot.lane.b32.xlu0 %v605, 16
        %v1743 = vpop.permute.xlu0 %1742
        %1744 = vrot.lane.b32.xlu0 %v606, 16
        %v1745 = vpop.permute.xlu0 %1744
        %1746 = vrot.lane.b32.xlu0 %v607, 16
        %v1747 = vpop.permute.xlu0 %1746
        %1748 = vrot.lane.b32.xlu0 %v608, 16
        %v1749 = vpop.permute.xlu0 %1748
        %1750 = vrot.lane.b32.xlu0 %v609, 16
        %v1751 = vpop.permute.xlu0 %1750
        %1752 = vrot.lane.b32.xlu0 %v610, 16
        %v1753 = vpop.permute.xlu0 %1752
        %1754 = vrot.lane.b32.xlu0 %v611, 16
        %v1755 = vpop.permute.xlu0 %1754
        %1756 = vrot.lane.b32.xlu0 %v612, 16
        %v1757 = vpop.permute.xlu0 %1756
        %1758 = vrot.lane.b32.xlu0 %v613, 16
        %v1759 = vpop.permute.xlu0 %1758
        %1760 = vrot.lane.b32.xlu0 %v614, 16
        %v1761 = vpop.permute.xlu0 %1760
        %1762 = vrot.lane.b32.xlu0 %v615, 16
        %v1763 = vpop.permute.xlu0 %1762
        %1764 = vrot.lane.b32.xlu0 %v616, 16
        %v1765 = vpop.permute.xlu0 %1764
        %1766 = vrot.lane.b32.xlu0 %v617, 16
        %v1767 = vpop.permute.xlu0 %1766
        %1768 = vrot.lane.b32.xlu0 %v618, 16
        %v1769 = vpop.permute.xlu0 %1768
        %1770 = vrot.lane.b32.xlu0 %v619, 16
        %v1771 = vpop.permute.xlu0 %1770
        %1772 = vrot.lane.b32.xlu0 %v620, 16
        %v1773 = vpop.permute.xlu0 %1772
        %1870 = vrot.lane.b32.xlu0 %v811, 20
        %v1871 = vpop.permute.xlu0 %1870
        %1872 = vrot.lane.b32.xlu0 %v810, 20
        %v1873 = vpop.permute.xlu0 %1872
        %1874 = vrot.lane.b32.xlu0 %v809, 20
        %v1875 = vpop.permute.xlu0 %1874
        %1876 = vrot.lane.b32.xlu0 %v808, 20
        %v1877 = vpop.permute.xlu0 %1876
        %1878 = vrot.lane.b32.xlu0 %v807, 20
        %v1879 = vpop.permute.xlu0 %1878
        %1880 = vrot.lane.b32.xlu0 %v806, 20
        %v1881 = vpop.permute.xlu0 %1880
        %1882 = vrot.lane.b32.xlu0 %v805, 20
        %v1883 = vpop.permute.xlu0 %1882
        %1884 = vrot.lane.b32.xlu0 %v804, 20
        %v1885 = vpop.permute.xlu0 %1884
        %1886 = vrot.lane.b32.xlu0 %v803, 20
        %v1887 = vpop.permute.xlu0 %1886
        %1888 = vrot.lane.b32.xlu0 %v802, 20
        %v1889 = vpop.permute.xlu0 %1888
        %1890 = vrot.lane.b32.xlu0 %v801, 20
        %v1891 = vpop.permute.xlu0 %1890
        %1892 = vrot.lane.b32.xlu0 %v800, 20
        %v1893 = vpop.permute.xlu0 %1892
        %1894 = vrot.lane.b32.xlu0 %v799, 20
        %v1895 = vpop.permute.xlu0 %1894
        %1896 = vrot.lane.b32.xlu0 %v798, 20
        %v1897 = vpop.permute.xlu0 %1896
        %1898 = vrot.lane.b32.xlu0 %v797, 20
        %v1899 = vpop.permute.xlu0 %1898
        %1900 = vrot.lane.b32.xlu0 %v796, 20
        %v1901 = vpop.permute.xlu0 %1900
        %1902 = vrot.lane.b32.xlu0 %v795, 20
        %v1903 = vpop.permute.xlu0 %1902
        %1904 = vrot.lane.b32.xlu0 %v794, 20
        %v1905 = vpop.permute.xlu0 %1904
        %1906 = vrot.lane.b32.xlu0 %v793, 20
        %v1907 = vpop.permute.xlu0 %1906
        %1908 = vrot.lane.b32.xlu0 %v792, 20
        %v1909 = vpop.permute.xlu0 %1908
        %1910 = vrot.lane.b32.xlu0 %v791, 20
        %v1911 = vpop.permute.xlu0 %1910
        %1912 = vrot.lane.b32.xlu0 %v790, 20
        %v1913 = vpop.permute.xlu0 %1912
        %1914 = vrot.lane.b32.xlu0 %v789, 20
        %v1915 = vpop.permute.xlu0 %1914
        %1916 = vrot.lane.b32.xlu0 %v788, 20
        %v1917 = vpop.permute.xlu0 %1916
        %1918 = vrot.lane.b32.xlu0 %v787, 20
        %v1919 = vpop.permute.xlu0 %1918
        %1920 = vrot.lane.b32.xlu0 %v786, 20
        %v1921 = vpop.permute.xlu0 %1920
        %1922 = vrot.lane.b32.xlu0 %v785, 20
        %v1923 = vpop.permute.xlu0 %1922
        %1924 = vrot.lane.b32.xlu0 %v784, 20
        %v1925 = vpop.permute.xlu0 %1924
        %1926 = vrot.lane.b32.xlu0 %v783, 20
        %v1927 = vpop.permute.xlu0 %1926
        %1928 = vrot.lane.b32.xlu0 %v782, 20
        %v1929 = vpop.permute.xlu0 %1928
        %1930 = vrot.lane.b32.xlu0 %v781, 20
        %v1931 = vpop.permute.xlu0 %1930
        %1932 = vrot.lane.b32.xlu0 %v780, 20
        %v1933 = vpop.permute.xlu0 %1932
        %1934 = vrot.lane.b32.xlu0 %v779, 20
        %v1935 = vpop.permute.xlu0 %1934
        %1936 = vrot.lane.b32.xlu0 %v778, 20
        %v1937 = vpop.permute.xlu0 %1936
        %1938 = vrot.lane.b32.xlu0 %v777, 20
        %v1939 = vpop.permute.xlu0 %1938
        %1940 = vrot.lane.b32.xlu0 %v776, 20
        %v1941 = vpop.permute.xlu0 %1940
        %1942 = vrot.lane.b32.xlu0 %v775, 20
        %v1943 = vpop.permute.xlu0 %1942
        %1944 = vrot.lane.b32.xlu0 %v774, 20
        %v1945 = vpop.permute.xlu0 %1944
        %1946 = vrot.lane.b32.xlu0 %v773, 20
        %v1947 = vpop.permute.xlu0 %1946
        %1948 = vrot.lane.b32.xlu0 %v772, 20
        %v1949 = vpop.permute.xlu0 %1948
        %1950 = vrot.lane.b32.xlu0 %v771, 20
        %v1951 = vpop.permute.xlu0 %1950
        %1952 = vrot.lane.b32.xlu0 %v770, 20
        %v1953 = vpop.permute.xlu0 %1952
        %1954 = vrot.lane.b32.xlu0 %v769, 20
        %v1955 = vpop.permute.xlu0 %1954
        %1956 = vrot.lane.b32.xlu0 %v768, 20
        %v1957 = vpop.permute.xlu0 %1956
        %1958 = vrot.lane.b32.xlu0 %v767, 20
        %v1959 = vpop.permute.xlu0 %1958
        %1960 = vrot.lane.b32.xlu0 %v766, 20
        %v1961 = vpop.permute.xlu0 %1960
        %1962 = vrot.lane.b32.xlu0 %v765, 20
        %v1963 = vpop.permute.xlu0 %1962
        %1964 = vrot.lane.b32.xlu0 %v812, 20
        %v1965 = vpop.permute.xlu0 %1964
        %2062 = vrot.lane.b32.xlu0 %v957, 24
        %v2063 = vpop.permute.xlu0 %2062
        %2064 = vrot.lane.b32.xlu0 %v956, 24
        %v2065 = vpop.permute.xlu0 %2064
        %2066 = vrot.lane.b32.xlu0 %v955, 24
        %v2067 = vpop.permute.xlu0 %2066
        %2068 = vrot.lane.b32.xlu0 %v954, 24
        %v2069 = vpop.permute.xlu0 %2068
        %2070 = vrot.lane.b32.xlu0 %v953, 24
        %v2071 = vpop.permute.xlu0 %2070
        %2072 = vrot.lane.b32.xlu0 %v952, 24
        %v2073 = vpop.permute.xlu0 %2072
        %2074 = vrot.lane.b32.xlu0 %v951, 24
        %v2075 = vpop.permute.xlu0 %2074
        %2076 = vrot.lane.b32.xlu0 %v950, 24
        %v2077 = vpop.permute.xlu0 %2076
        %2078 = vrot.lane.b32.xlu0 %v949, 24
        %v2079 = vpop.permute.xlu0 %2078
        %2080 = vrot.lane.b32.xlu0 %v948, 24
        %v2081 = vpop.permute.xlu0 %2080
        %2082 = vrot.lane.b32.xlu0 %v947, 24
        %v2083 = vpop.permute.xlu0 %2082
        %2084 = vrot.lane.b32.xlu0 %v946, 24
        %v2085 = vpop.permute.xlu0 %2084
        %2086 = vrot.lane.b32.xlu0 %v945, 24
        %v2087 = vpop.permute.xlu0 %2086
        %2088 = vrot.lane.b32.xlu0 %v944, 24
        %v2089 = vpop.permute.xlu0 %2088
        %2090 = vrot.lane.b32.xlu0 %v943, 24
        %v2091 = vpop.permute.xlu0 %2090
        %2092 = vrot.lane.b32.xlu0 %v942, 24
        %v2093 = vpop.permute.xlu0 %2092
        %2094 = vrot.lane.b32.xlu0 %v941, 24
        %v2095 = vpop.permute.xlu0 %2094
        %2096 = vrot.lane.b32.xlu0 %v940, 24
        %v2097 = vpop.permute.xlu0 %2096
        %2098 = vrot.lane.b32.xlu0 %v939, 24
        %v2099 = vpop.permute.xlu0 %2098
        %2100 = vrot.lane.b32.xlu0 %v938, 24
        %v2101 = vpop.permute.xlu0 %2100
        %2102 = vrot.lane.b32.xlu0 %v937, 24
        %v2103 = vpop.permute.xlu0 %2102
        %2104 = vrot.lane.b32.xlu0 %v936, 24
        %v2105 = vpop.permute.xlu0 %2104
        %2106 = vrot.lane.b32.xlu0 %v935, 24
        %v2107 = vpop.permute.xlu0 %2106
        %2108 = vrot.lane.b32.xlu0 %v934, 24
        %v2109 = vpop.permute.xlu0 %2108
        %2110 = vrot.lane.b32.xlu0 %v933, 24
        %v2111 = vpop.permute.xlu0 %2110
        %2112 = vrot.lane.b32.xlu0 %v932, 24
        %v2113 = vpop.permute.xlu0 %2112
        %2114 = vrot.lane.b32.xlu0 %v931, 24
        %v2115 = vpop.permute.xlu0 %2114
        %2116 = vrot.lane.b32.xlu0 %v930, 24
        %v2117 = vpop.permute.xlu0 %2116
        %2118 = vrot.lane.b32.xlu0 %v929, 24
        %v2119 = vpop.permute.xlu0 %2118
        %2120 = vrot.lane.b32.xlu0 %v928, 24
        %v2121 = vpop.permute.xlu0 %2120
        %2122 = vrot.lane.b32.xlu0 %v927, 24
        %v2123 = vpop.permute.xlu0 %2122
        %2124 = vrot.lane.b32.xlu0 %v926, 24
        %v2125 = vpop.permute.xlu0 %2124
        %2126 = vrot.lane.b32.xlu0 %v925, 24
        %v2127 = vpop.permute.xlu0 %2126
        %2128 = vrot.lane.b32.xlu0 %v924, 24
        %v2129 = vpop.permute.xlu0 %2128
        %2130 = vrot.lane.b32.xlu0 %v923, 24
        %v2131 = vpop.permute.xlu0 %2130
        %2132 = vrot.lane.b32.xlu0 %v922, 24
        %v2133 = vpop.permute.xlu0 %2132
        %2134 = vrot.lane.b32.xlu0 %v921, 24
        %v2135 = vpop.permute.xlu0 %2134
        %2136 = vrot.lane.b32.xlu0 %v920, 24
        %v2137 = vpop.permute.xlu0 %2136
        %2138 = vrot.lane.b32.xlu0 %v919, 24
        %v2139 = vpop.permute.xlu0 %2138
        %2140 = vrot.lane.b32.xlu0 %v918, 24
        %v2141 = vpop.permute.xlu0 %2140
        %2142 = vrot.lane.b32.xlu0 %v917, 24
        %v2143 = vpop.permute.xlu0 %2142
        %2144 = vrot.lane.b32.xlu0 %v916, 24
        %v2145 = vpop.permute.xlu0 %2144
        %2146 = vrot.lane.b32.xlu0 %v915, 24
        %v2147 = vpop.permute.xlu0 %2146
        %2148 = vrot.lane.b32.xlu0 %v914, 24
        %v2149 = vpop.permute.xlu0 %2148
        %2150 = vrot.lane.b32.xlu0 %v913, 24
        %v2151 = vpop.permute.xlu0 %2150
        %2152 = vrot.lane.b32.xlu0 %v912, 24
        %v2153 = vpop.permute.xlu0 %2152
        %2154 = vrot.lane.b32.xlu0 %v911, 24
        %v2155 = vpop.permute.xlu0 %2154
        %2156 = vrot.lane.b32.xlu0 %v910, 24
        %v2157 = vpop.permute.xlu0 %2156
        %2254 = vrot.lane.b32.xlu0 %v814, 28
        %v2255 = vpop.permute.xlu0 %2254
        %2256 = vrot.lane.b32.xlu0 %v815, 28
        %v2257 = vpop.permute.xlu0 %2256
        %2258 = vrot.lane.b32.xlu0 %v816, 28
        %v2259 = vpop.permute.xlu0 %2258
        %2260 = vrot.lane.b32.xlu0 %v817, 28
        %v2261 = vpop.permute.xlu0 %2260
        %2262 = vrot.lane.b32.xlu0 %v818, 28
        %v2263 = vpop.permute.xlu0 %2262
        %2264 = vrot.lane.b32.xlu0 %v819, 28
        %v2265 = vpop.permute.xlu0 %2264
        %2266 = vrot.lane.b32.xlu0 %v820, 28
        %v2267 = vpop.permute.xlu0 %2266
        %2268 = vrot.lane.b32.xlu0 %v821, 28
        %v2269 = vpop.permute.xlu0 %2268
        %2270 = vrot.lane.b32.xlu0 %v822, 28
        %v2271 = vpop.permute.xlu0 %2270
        %2272 = vrot.lane.b32.xlu0 %v823, 28
        %v2273 = vpop.permute.xlu0 %2272
        %2274 = vrot.lane.b32.xlu0 %v824, 28
        %v2275 = vpop.permute.xlu0 %2274
        %2276 = vrot.lane.b32.xlu0 %v825, 28
        %v2277 = vpop.permute.xlu0 %2276
        %2278 = vrot.lane.b32.xlu0 %v826, 28
        %v2279 = vpop.permute.xlu0 %2278
        %2280 = vrot.lane.b32.xlu0 %v827, 28
        %v2281 = vpop.permute.xlu0 %2280
        %2282 = vrot.lane.b32.xlu0 %v828, 28
        %v2283 = vpop.permute.xlu0 %2282
        %2284 = vrot.lane.b32.xlu0 %v829, 28
        %v2285 = vpop.permute.xlu0 %2284
        %2286 = vrot.lane.b32.xlu0 %v830, 28
        %v2287 = vpop.permute.xlu0 %2286
        %2288 = vrot.lane.b32.xlu0 %v831, 28
        %v2289 = vpop.permute.xlu0 %2288
        %2290 = vrot.lane.b32.xlu0 %v832, 28
        %v2291 = vpop.permute.xlu0 %2290
        %2292 = vrot.lane.b32.xlu0 %v833, 28
        %v2293 = vpop.permute.xlu0 %2292
        %2294 = vrot.lane.b32.xlu0 %v834, 28
        %v2295 = vpop.permute.xlu0 %2294
        %2296 = vrot.lane.b32.xlu0 %v835, 28
        %v2297 = vpop.permute.xlu0 %2296
        %2298 = vrot.lane.b32.xlu0 %v836, 28
        %v2299 = vpop.permute.xlu0 %2298
        %2300 = vrot.lane.b32.xlu0 %v837, 28
        %v2301 = vpop.permute.xlu0 %2300
        %2302 = vrot.lane.b32.xlu0 %v838, 28
        %v2303 = vpop.permute.xlu0 %2302
        %2304 = vrot.lane.b32.xlu0 %v839, 28
        %v2305 = vpop.permute.xlu0 %2304
        %2306 = vrot.lane.b32.xlu0 %v840, 28
        %v2307 = vpop.permute.xlu0 %2306
        %2308 = vrot.lane.b32.xlu0 %v841, 28
        %v2309 = vpop.permute.xlu0 %2308
        %2310 = vrot.lane.b32.xlu0 %v842, 28
        %v2311 = vpop.permute.xlu0 %2310
        %2312 = vrot.lane.b32.xlu0 %v843, 28
        %v2313 = vpop.permute.xlu0 %2312
        %2314 = vrot.lane.b32.xlu0 %v844, 28
        %v2315 = vpop.permute.xlu0 %2314
        %2316 = vrot.lane.b32.xlu0 %v845, 28
        %v2317 = vpop.permute.xlu0 %2316
        %2318 = vrot.lane.b32.xlu0 %v846, 28
        %v2319 = vpop.permute.xlu0 %2318
        %2320 = vrot.lane.b32.xlu0 %v847, 28
        %v2321 = vpop.permute.xlu0 %2320
        %2322 = vrot.lane.b32.xlu0 %v848, 28
        %v2323 = vpop.permute.xlu0 %2322
        %2324 = vrot.lane.b32.xlu0 %v849, 28
        %v2325 = vpop.permute.xlu0 %2324
        %2326 = vrot.lane.b32.xlu0 %v850, 28
        %v2327 = vpop.permute.xlu0 %2326
        %2328 = vrot.lane.b32.xlu0 %v851, 28
        %v2329 = vpop.permute.xlu0 %2328
        %2330 = vrot.lane.b32.xlu0 %v852, 28
        %v2331 = vpop.permute.xlu0 %2330
        %2332 = vrot.lane.b32.xlu0 %v853, 28
        %v2333 = vpop.permute.xlu0 %2332
        %2334 = vrot.lane.b32.xlu0 %v854, 28
        %v2335 = vpop.permute.xlu0 %2334
        %2336 = vrot.lane.b32.xlu0 %v855, 28
        %v2337 = vpop.permute.xlu0 %2336
        %2338 = vrot.lane.b32.xlu0 %v856, 28
        %v2339 = vpop.permute.xlu0 %2338
        %2340 = vrot.lane.b32.xlu0 %v857, 28
        %v2341 = vpop.permute.xlu0 %2340
        %2342 = vrot.lane.b32.xlu0 %v858, 28
        %v2343 = vpop.permute.xlu0 %2342
        %2344 = vrot.lane.b32.xlu0 %v859, 28
        %v2345 = vpop.permute.xlu0 %2344
        %2346 = vrot.lane.b32.xlu0 %v860, 28
        %v2347 = vpop.permute.xlu0 %2346
        %2348 = vrot.lane.b32.xlu0 %v861, 28
        %v2349 = vpop.permute.xlu0 %2348
        %2446 = vrot.lane.b32.xlu0 %v1052, 32
        %v2447 = vpop.permute.xlu0 %2446
        %2448 = vrot.lane.b32.xlu0 %v1051, 32
        %v2449 = vpop.permute.xlu0 %2448
        %2450 = vrot.lane.b32.xlu0 %v1050, 32
        %v2451 = vpop.permute.xlu0 %2450
        %2452 = vrot.lane.b32.xlu0 %v1049, 32
        %v2453 = vpop.permute.xlu0 %2452
        %2454 = vrot.lane.b32.xlu0 %v1048, 32
        %v2455 = vpop.permute.xlu0 %2454
        %2456 = vrot.lane.b32.xlu0 %v1047, 32
        %v2457 = vpop.permute.xlu0 %2456
        %2458 = vrot.lane.b32.xlu0 %v1046, 32
        %v2459 = vpop.permute.xlu0 %2458
        %2460 = vrot.lane.b32.xlu0 %v1045, 32
        %v2461 = vpop.permute.xlu0 %2460
        %2462 = vrot.lane.b32.xlu0 %v1044, 32
        %v2463 = vpop.permute.xlu0 %2462
        %2464 = vrot.lane.b32.xlu0 %v1043, 32
        %v2465 = vpop.permute.xlu0 %2464
        %2466 = vrot.lane.b32.xlu0 %v1042, 32
        %v2467 = vpop.permute.xlu0 %2466
        %2468 = vrot.lane.b32.xlu0 %v1041, 32
        %v2469 = vpop.permute.xlu0 %2468
        %2470 = vrot.lane.b32.xlu0 %v1040, 32
        %v2471 = vpop.permute.xlu0 %2470
        %2472 = vrot.lane.b32.xlu0 %v1039, 32
        %v2473 = vpop.permute.xlu0 %2472
        %2474 = vrot.lane.b32.xlu0 %v1038, 32
        %v2475 = vpop.permute.xlu0 %2474
        %2476 = vrot.lane.b32.xlu0 %v1037, 32
        %v2477 = vpop.permute.xlu0 %2476
        %2478 = vrot.lane.b32.xlu0 %v1036, 32
        %v2479 = vpop.permute.xlu0 %2478
        %2480 = vrot.lane.b32.xlu0 %v1035, 32
        %v2481 = vpop.permute.xlu0 %2480
        %2482 = vrot.lane.b32.xlu0 %v1034, 32
        %v2483 = vpop.permute.xlu0 %2482
        %2484 = vrot.lane.b32.xlu0 %v1033, 32
        %v2485 = vpop.permute.xlu0 %2484
        %2486 = vrot.lane.b32.xlu0 %v1032, 32
        %v2487 = vpop.permute.xlu0 %2486
        %2488 = vrot.lane.b32.xlu0 %v1031, 32
        %v2489 = vpop.permute.xlu0 %2488
        %2490 = vrot.lane.b32.xlu0 %v1030, 32
        %v2491 = vpop.permute.xlu0 %2490
        %2492 = vrot.lane.b32.xlu0 %v1029, 32
        %v2493 = vpop.permute.xlu0 %2492
        %2494 = vrot.lane.b32.xlu0 %v1028, 32
        %v2495 = vpop.permute.xlu0 %2494
        %2496 = vrot.lane.b32.xlu0 %v1027, 32
        %v2497 = vpop.permute.xlu0 %2496
        %2498 = vrot.lane.b32.xlu0 %v1026, 32
        %v2499 = vpop.permute.xlu0 %2498
        %2500 = vrot.lane.b32.xlu0 %v1025, 32
        %v2501 = vpop.permute.xlu0 %2500
        %2502 = vrot.lane.b32.xlu0 %v1024, 32
        %v2503 = vpop.permute.xlu0 %2502
        %2504 = vrot.lane.b32.xlu0 %v1023, 32
        %v2505 = vpop.permute.xlu0 %2504
        %2506 = vrot.lane.b32.xlu0 %v1022, 32
        %v2507 = vpop.permute.xlu0 %2506
        %2508 = vrot.lane.b32.xlu0 %v1021, 32
        %v2509 = vpop.permute.xlu0 %2508
        %2510 = vrot.lane.b32.xlu0 %v1020, 32
        %v2511 = vpop.permute.xlu0 %2510
        %2512 = vrot.lane.b32.xlu0 %v1019, 32
        %v2513 = vpop.permute.xlu0 %2512
        %2514 = vrot.lane.b32.xlu0 %v1018, 32
        %v2515 = vpop.permute.xlu0 %2514
        %2516 = vrot.lane.b32.xlu0 %v1017, 32
        %v2517 = vpop.permute.xlu0 %2516
        %2518 = vrot.lane.b32.xlu0 %v1016, 32
        %v2519 = vpop.permute.xlu0 %2518
        %2520 = vrot.lane.b32.xlu0 %v1015, 32
        %v2521 = vpop.permute.xlu0 %2520
        %2522 = vrot.lane.b32.xlu0 %v1014, 32
        %v2523 = vpop.permute.xlu0 %2522
        %2524 = vrot.lane.b32.xlu0 %v1013, 32
        %v2525 = vpop.permute.xlu0 %2524
        %2526 = vrot.lane.b32.xlu0 %v1012, 32
        %v2527 = vpop.permute.xlu0 %2526
        %2528 = vrot.lane.b32.xlu0 %v1011, 32
        %v2529 = vpop.permute.xlu0 %2528
        %2530 = vrot.lane.b32.xlu0 %v1010, 32
        %v2531 = vpop.permute.xlu0 %2530
        %2532 = vrot.lane.b32.xlu0 %v1009, 32
        %v2533 = vpop.permute.xlu0 %2532
        %2534 = vrot.lane.b32.xlu0 %v1008, 32
        %v2535 = vpop.permute.xlu0 %2534
        %2536 = vrot.lane.b32.xlu0 %v1007, 32
        %v2537 = vpop.permute.xlu0 %2536
        %2538 = vrot.lane.b32.xlu0 %v1006, 32
        %v2539 = vpop.permute.xlu0 %2538
        %2540 = vrot.lane.b32.xlu0 %v1053, 32
        %v2541 = vpop.permute.xlu0 %2540
        %v2590 = vsel %vm238, %v475, %v1103
        %v2591 = vsel %vm238, %v474, %v1105
        %v2592 = vsel %vm238, %v473, %v1107
        %v2593 = vsel %vm238, %v472, %v1109
        %v2594 = vsel %vm238, %v471, %v1111
        %v2595 = vsel %vm238, %v470, %v1113
        %v2596 = vsel %vm238, %v469, %v1115
        %v2597 = vsel %vm238, %v468, %v1117
        %v2598 = vsel %vm238, %v467, %v1119
        %v2599 = vsel %vm238, %v466, %v1121
        %v2600 = vsel %vm238, %v465, %v1123
        %v2601 = vsel %vm238, %v464, %v1125
        %v2602 = vsel %vm238, %v463, %v1127
        %v2603 = vsel %vm238, %v462, %v1129
        %v2604 = vsel %vm238, %v461, %v1131
        %v2605 = vsel %vm238, %v460, %v1133
        %v2606 = vsel %vm238, %v459, %v1135
        %v2607 = vsel %vm238, %v458, %v1137
        %v2608 = vsel %vm238, %v457, %v1139
        %v2609 = vsel %vm238, %v456, %v1141
        %v2610 = vsel %vm238, %v455, %v1143
        %v2611 = vsel %vm238, %v454, %v1145
        %v2612 = vsel %vm238, %v453, %v1147
        %v2613 = vsel %vm238, %v452, %v1149
        %v2614 = vsel %vm238, %v451, %v1151
        %v2615 = vsel %vm238, %v450, %v1153
        %v2616 = vsel %vm238, %v449, %v1155
        %v2617 = vsel %vm238, %v448, %v1157
        %v2618 = vsel %vm238, %v447, %v1159
        %v2619 = vsel %vm238, %v446, %v1161
        %v2620 = vsel %vm238, %v445, %v1163
        %v2621 = vsel %vm238, %v444, %v1165
        %v2622 = vsel %vm238, %v443, %v1167
        %v2623 = vsel %vm238, %v442, %v1169
        %v2624 = vsel %vm238, %v441, %v1171
        %v2625 = vsel %vm238, %v440, %v1173
        %v2626 = vsel %vm238, %v439, %v1175
        %v2627 = vsel %vm238, %v438, %v1177
        %v2628 = vsel %vm238, %v437, %v1179
        %v2629 = vsel %vm238, %v436, %v1181
        %v2630 = vsel %vm238, %v435, %v1183
        %v2631 = vsel %vm238, %v434, %v1185
        %v2632 = vsel %vm238, %v433, %v1187
        %v2633 = vsel %vm238, %v432, %v1189
        %v2634 = vsel %vm238, %v431, %v1191
        %v2635 = vsel %vm238, %v430, %v1193
        %v2636 = vsel %vm238, %v429, %v1195
        %v2637 = vsel %vm238, %v428, %v1197
        %vm2638 = vcmask 64512
        %v2639 = vsel %vm2638, %v2590, %v1295
        %v2640 = vsel %vm2638, %v2591, %v1297
        %v2641 = vsel %vm2638, %v2592, %v1299
        %v2642 = vsel %vm2638, %v2593, %v1301
        %v2643 = vsel %vm2638, %v2594, %v1303
        %v2644 = vsel %vm2638, %v2595, %v1305
        %v2645 = vsel %vm2638, %v2596, %v1307
        %v2646 = vsel %vm2638, %v2597, %v1309
        %v2647 = vsel %vm2638, %v2598, %v1311
        %v2648 = vsel %vm2638, %v2599, %v1313
        %v2649 = vsel %vm2638, %v2600, %v1315
        %v2650 = vsel %vm2638, %v2601, %v1317
        %v2651 = vsel %vm2638, %v2602, %v1319
        %v2652 = vsel %vm2638, %v2603, %v1321
        %v2653 = vsel %vm2638, %v2604, %v1323
        %v2654 = vsel %vm2638, %v2605, %v1325
        %v2655 = vsel %vm2638, %v2606, %v1327
        %v2656 = vsel %vm2638, %v2607, %v1329
        %v2657 = vsel %vm2638, %v2608, %v1331
        %v2658 = vsel %vm2638, %v2609, %v1333
        %v2659 = vsel %vm2638, %v2610, %v1335
        %v2660 = vsel %vm2638, %v2611, %v1337
        %v2661 = vsel %vm2638, %v2612, %v1339
        %v2662 = vsel %vm2638, %v2613, %v1341
        %v2663 = vsel %vm2638, %v2614, %v1343
        %v2664 = vsel %vm2638, %v2615, %v1345
        %v2665 = vsel %vm2638, %v2616, %v1347
        %v2666 = vsel %vm2638, %v2617, %v1349
        %v2667 = vsel %vm2638, %v2618, %v1351
        %v2668 = vsel %vm2638, %v2619, %v1353
        %v2669 = vsel %vm2638, %v2620, %v1355
        %v2670 = vsel %vm2638, %v2621, %v1357
        %v2671 = vsel %vm2638, %v2622, %v1359
        %v2672 = vsel %vm2638, %v2623, %v1361
        %v2673 = vsel %vm2638, %v2624, %v1363
        %v2674 = vsel %vm2638, %v2625, %v1365
        %v2675 = vsel %vm2638, %v2626, %v1367
        %v2676 = vsel %vm2638, %v2627, %v1369
        %v2677 = vsel %vm2638, %v2628, %v1371
        %v2678 = vsel %vm2638, %v2629, %v1373
        %v2679 = vsel %vm2638, %v2630, %v1375
        %v2680 = vsel %vm2638, %v2631, %v1377
        %v2681 = vsel %vm2638, %v2632, %v1379
        %v2682 = vsel %vm2638, %v2633, %v1381
        %v2683 = vsel %vm2638, %v2634, %v1383
        %v2684 = vsel %vm2638, %v2635, %v1385
        %v2685 = vsel %vm2638, %v2636, %v1387
        %v2686 = vsel %vm2638, %v2637, %v1389
        %vm2687 = vcmask 97280
        %v2688 = vsel %vm2687, %v2639, %v1487
        %v2689 = vsel %vm2687, %v2640, %v1489
        %v2690 = vsel %vm2687, %v2641, %v1491
        %v2691 = vsel %vm2687, %v2642, %v1493
        %v2692 = vsel %vm2687, %v2643, %v1495
        %v2693 = vsel %vm2687, %v2644, %v1497
        %v2694 = vsel %vm2687, %v2645, %v1499
        %v2695 = vsel %vm2687, %v2646, %v1501
        %v2696 = vsel %vm2687, %v2647, %v1503
        %v2697 = vsel %vm2687, %v2648, %v1505
        %v2698 = vsel %vm2687, %v2649, %v1507
        %v2699 = vsel %vm2687, %v2650, %v1509
        %v2700 = vsel %vm2687, %v2651, %v1511
        %v2701 = vsel %vm2687, %v2652, %v1513
        %v2702 = vsel %vm2687, %v2653, %v1515
        %v2703 = vsel %vm2687, %v2654, %v1517
        %v2704 = vsel %vm2687, %v2655, %v1519
        %v2705 = vsel %vm2687, %v2656, %v1521
        %v2706 = vsel %vm2687, %v2657, %v1523
        %v2707 = vsel %vm2687, %v2658, %v1525
        %v2708 = vsel %vm2687, %v2659, %v1527
        %v2709 = vsel %vm2687, %v2660, %v1529
        %v2710 = vsel %vm2687, %v2661, %v1531
        %v2711 = vsel %vm2687, %v2662, %v1533
        %v2712 = vsel %vm2687, %v2663, %v1535
        %v2713 = vsel %vm2687, %v2664, %v1537
        %v2714 = vsel %vm2687, %v2665, %v1539
        %v2715 = vsel %vm2687, %v2666, %v1541
        %v2716 = vsel %vm2687, %v2667, %v1543
        %v2717 = vsel %vm2687, %v2668, %v1545
        %v2718 = vsel %vm2687, %v2669, %v1547
        %v2719 = vsel %vm2687, %v2670, %v1549
        %v2720 = vsel %vm2687, %v2671, %v1551
        %v2721 = vsel %vm2687, %v2672, %v1553
        %v2722 = vsel %vm2687, %v2673, %v1555
        %v2723 = vsel %vm2687, %v2674, %v1557
        %v2724 = vsel %vm2687, %v2675, %v1559
        %v2725 = vsel %vm2687, %v2676, %v1561
        %v2726 = vsel %vm2687, %v2677, %v1563
        %v2727 = vsel %vm2687, %v2678, %v1565
        %v2728 = vsel %vm2687, %v2679, %v1567
        %v2729 = vsel %vm2687, %v2680, %v1569
        %v2730 = vsel %vm2687, %v2681, %v1571
        %v2731 = vsel %vm2687, %v2682, %v1573
        %v2732 = vsel %vm2687, %v2683, %v1575
        %v2733 = vsel %vm2687, %v2684, %v1577
        %v2734 = vsel %vm2687, %v2685, %v1579
        %v2735 = vsel %vm2687, %v2686, %v1581
        %vm2736 = vcmask 130048
        %v2737 = vsel %vm2736, %v2688, %v1679
        %v2738 = vsel %vm2736, %v2689, %v1681
        %v2739 = vsel %vm2736, %v2690, %v1683
        %v2740 = vsel %vm2736, %v2691, %v1685
        %v2741 = vsel %vm2736, %v2692, %v1687
        %v2742 = vsel %vm2736, %v2693, %v1689
        %v2743 = vsel %vm2736, %v2694, %v1691
        %v2744 = vsel %vm2736, %v2695, %v1693
        %v2745 = vsel %vm2736, %v2696, %v1695
        %v2746 = vsel %vm2736, %v2697, %v1697
        %v2747 = vsel %vm2736, %v2698, %v1699
        %v2748 = vsel %vm2736, %v2699, %v1701
        %v2749 = vsel %vm2736, %v2700, %v1703
        %v2750 = vsel %vm2736, %v2701, %v1705
        %v2751 = vsel %vm2736, %v2702, %v1707
        %v2752 = vsel %vm2736, %v2703, %v1709
        %v2753 = vsel %vm2736, %v2704, %v1711
        %v2754 = vsel %vm2736, %v2705, %v1713
        %v2755 = vsel %vm2736, %v2706, %v1715
        %v2756 = vsel %vm2736, %v2707, %v1717
        %v2757 = vsel %vm2736, %v2708, %v1719
        %v2758 = vsel %vm2736, %v2709, %v1721
        %v2759 = vsel %vm2736, %v2710, %v1723
        %v2760 = vsel %vm2736, %v2711, %v1725
        %v2761 = vsel %vm2736, %v2712, %v1727
        %v2762 = vsel %vm2736, %v2713, %v1729
        %v2763 = vsel %vm2736, %v2714, %v1731
        %v2764 = vsel %vm2736, %v2715, %v1733
        %v2765 = vsel %vm2736, %v2716, %v1735
        %v2766 = vsel %vm2736, %v2717, %v1737
        %v2767 = vsel %vm2736, %v2718, %v1739
        %v2768 = vsel %vm2736, %v2719, %v1741
        %v2769 = vsel %vm2736, %v2720, %v1743
        %v2770 = vsel %vm2736, %v2721, %v1745
        %v2771 = vsel %vm2736, %v2722, %v1747
        %v2772 = vsel %vm2736, %v2723, %v1749
        %v2773 = vsel %vm2736, %v2724, %v1751
        %v2774 = vsel %vm2736, %v2725, %v1753
        %v2775 = vsel %vm2736, %v2726, %v1755
        %v2776 = vsel %vm2736, %v2727, %v1757
        %v2777 = vsel %vm2736, %v2728, %v1759
        %v2778 = vsel %vm2736, %v2729, %v1761
        %v2779 = vsel %vm2736, %v2730, %v1763
        %v2780 = vsel %vm2736, %v2731, %v1765
        %v2781 = vsel %vm2736, %v2732, %v1767
        %v2782 = vsel %vm2736, %v2733, %v1769
        %v2783 = vsel %vm2736, %v2734, %v1771
        %v2784 = vsel %vm2736, %v2735, %v1773
        %vm2785 = vcmask 162816
        %v2786 = vsel %vm2785, %v2737, %v1871
        %v2787 = vsel %vm2785, %v2738, %v1873
        %v2788 = vsel %vm2785, %v2739, %v1875
        %v2789 = vsel %vm2785, %v2740, %v1877
        %v2790 = vsel %vm2785, %v2741, %v1879
        %v2791 = vsel %vm2785, %v2742, %v1881
        %v2792 = vsel %vm2785, %v2743, %v1883
        %v2793 = vsel %vm2785, %v2744, %v1885
        %v2794 = vsel %vm2785, %v2745, %v1887
        %v2795 = vsel %vm2785, %v2746, %v1889
        %v2796 = vsel %vm2785, %v2747, %v1891
        %v2797 = vsel %vm2785, %v2748, %v1893
        %v2798 = vsel %vm2785, %v2749, %v1895
        %v2799 = vsel %vm2785, %v2750, %v1897
        %v2800 = vsel %vm2785, %v2751, %v1899
        %v2801 = vsel %vm2785, %v2752, %v1901
        %v2802 = vsel %vm2785, %v2753, %v1903
        %v2803 = vsel %vm2785, %v2754, %v1905
        %v2804 = vsel %vm2785, %v2755, %v1907
        %v2805 = vsel %vm2785, %v2756, %v1909
        %v2806 = vsel %vm2785, %v2757, %v1911
        %v2807 = vsel %vm2785, %v2758, %v1913
        %v2808 = vsel %vm2785, %v2759, %v1915
        %v2809 = vsel %vm2785, %v2760, %v1917
        %v2810 = vsel %vm2785, %v2761, %v1919
        %v2811 = vsel %vm2785, %v2762, %v1921
        %v2812 = vsel %vm2785, %v2763, %v1923
        %v2813 = vsel %vm2785, %v2764, %v1925
        %v2814 = vsel %vm2785, %v2765, %v1927
        %v2815 = vsel %vm2785, %v2766, %v1929
        %v2816 = vsel %vm2785, %v2767, %v1931
        %v2817 = vsel %vm2785, %v2768, %v1933
        %v2818 = vsel %vm2785, %v2769, %v1935
        %v2819 = vsel %vm2785, %v2770, %v1937
        %v2820 = vsel %vm2785, %v2771, %v1939
        %v2821 = vsel %vm2785, %v2772, %v1941
        %v2822 = vsel %vm2785, %v2773, %v1943
        %v2823 = vsel %vm2785, %v2774, %v1945
        %v2824 = vsel %vm2785, %v2775, %v1947
        %v2825 = vsel %vm2785, %v2776, %v1949
        %v2826 = vsel %vm2785, %v2777, %v1951
        %v2827 = vsel %vm2785, %v2778, %v1953
        %v2828 = vsel %vm2785, %v2779, %v1955
        %v2829 = vsel %vm2785, %v2780, %v1957
        %v2830 = vsel %vm2785, %v2781, %v1959
        %v2831 = vsel %vm2785, %v2782, %v1961
        %v2832 = vsel %vm2785, %v2783, %v1963
        %v2833 = vsel %vm2785, %v2784, %v1965
        %vm2834 = vcmask 195584
        %v2835 = vsel %vm2834, %v2786, %v2063
        %v2836 = vsel %vm2834, %v2787, %v2065
        %v2837 = vsel %vm2834, %v2788, %v2067
        %v2838 = vsel %vm2834, %v2789, %v2069
        %v2839 = vsel %vm2834, %v2790, %v2071
        %v2840 = vsel %vm2834, %v2791, %v2073
        %v2841 = vsel %vm2834, %v2792, %v2075
        %v2842 = vsel %vm2834, %v2793, %v2077
        %v2843 = vsel %vm2834, %v2794, %v2079
        %v2844 = vsel %vm2834, %v2795, %v2081
        %v2845 = vsel %vm2834, %v2796, %v2083
        %v2846 = vsel %vm2834, %v2797, %v2085
        %v2847 = vsel %vm2834, %v2798, %v2087
        %v2848 = vsel %vm2834, %v2799, %v2089
        %v2849 = vsel %vm2834, %v2800, %v2091
        %v2850 = vsel %vm2834, %v2801, %v2093
        %v2851 = vsel %vm2834, %v2802, %v2095
        %v2852 = vsel %vm2834, %v2803, %v2097
        %v2853 = vsel %vm2834, %v2804, %v2099
        %v2854 = vsel %vm2834, %v2805, %v2101
        %v2855 = vsel %vm2834, %v2806, %v2103
        %v2856 = vsel %vm2834, %v2807, %v2105
        %v2857 = vsel %vm2834, %v2808, %v2107
        %v2858 = vsel %vm2834, %v2809, %v2109
        %v2859 = vsel %vm2834, %v2810, %v2111
        %v2860 = vsel %vm2834, %v2811, %v2113
        %v2861 = vsel %vm2834, %v2812, %v2115
        %v2862 = vsel %vm2834, %v2813, %v2117
        %v2863 = vsel %vm2834, %v2814, %v2119
        %v2864 = vsel %vm2834, %v2815, %v2121
        %v2865 = vsel %vm2834, %v2816, %v2123
        %v2866 = vsel %vm2834, %v2817, %v2125
        %v2867 = vsel %vm2834, %v2818, %v2127
        %v2868 = vsel %vm2834, %v2819, %v2129
        %v2869 = vsel %vm2834, %v2820, %v2131
        %v2870 = vsel %vm2834, %v2821, %v2133
        %v2871 = vsel %vm2834, %v2822, %v2135
        %v2872 = vsel %vm2834, %v2823, %v2137
        %v2873 = vsel %vm2834, %v2824, %v2139
        %v2874 = vsel %vm2834, %v2825, %v2141
        %v2875 = vsel %vm2834, %v2826, %v2143
        %v2876 = vsel %vm2834, %v2827, %v2145
        %v2877 = vsel %vm2834, %v2828, %v2147
        %v2878 = vsel %vm2834, %v2829, %v2149
        %v2879 = vsel %vm2834, %v2830, %v2151
        %v2880 = vsel %vm2834, %v2831, %v2153
        %v2881 = vsel %vm2834, %v2832, %v2155
        %v2882 = vsel %vm2834, %v2833, %v2157
        %vm2883 = vcmask 228352
        %v2884 = vsel %vm2883, %v2835, %v2255
        %v2885 = vsel %vm2883, %v2836, %v2257
        %v2886 = vsel %vm2883, %v2837, %v2259
        %v2887 = vsel %vm2883, %v2838, %v2261
        %v2888 = vsel %vm2883, %v2839, %v2263
        %v2889 = vsel %vm2883, %v2840, %v2265
        %v2890 = vsel %vm2883, %v2841, %v2267
        %v2891 = vsel %vm2883, %v2842, %v2269
        %v2892 = vsel %vm2883, %v2843, %v2271
        %v2893 = vsel %vm2883, %v2844, %v2273
        %v2894 = vsel %vm2883, %v2845, %v2275
        %v2895 = vsel %vm2883, %v2846, %v2277
        %v2896 = vsel %vm2883, %v2847, %v2279
        %v2897 = vsel %vm2883, %v2848, %v2281
        %v2898 = vsel %vm2883, %v2849, %v2283
        %v2899 = vsel %vm2883, %v2850, %v2285
        %v2900 = vsel %vm2883, %v2851, %v2287
        %v2901 = vsel %vm2883, %v2852, %v2289
        %v2902 = vsel %vm2883, %v2853, %v2291
        %v2903 = vsel %vm2883, %v2854, %v2293
        %v2904 = vsel %vm2883, %v2855, %v2295
        %v2905 = vsel %vm2883, %v2856, %v2297
        %v2906 = vsel %vm2883, %v2857, %v2299
        %v2907 = vsel %vm2883, %v2858, %v2301
        %v2908 = vsel %vm2883, %v2859, %v2303
        %v2909 = vsel %vm2883, %v2860, %v2305
        %v2910 = vsel %vm2883, %v2861, %v2307
        %v2911 = vsel %vm2883, %v2862, %v2309
        %v2912 = vsel %vm2883, %v2863, %v2311
        %v2913 = vsel %vm2883, %v2864, %v2313
        %v2914 = vsel %vm2883, %v2865, %v2315
        %v2915 = vsel %vm2883, %v2866, %v2317
        %v2916 = vsel %vm2883, %v2867, %v2319
        %v2917 = vsel %vm2883, %v2868, %v2321
        %v2918 = vsel %vm2883, %v2869, %v2323
        %v2919 = vsel %vm2883, %v2870, %v2325
        %v2920 = vsel %vm2883, %v2871, %v2327
        %v2921 = vsel %vm2883, %v2872, %v2329
        %v2922 = vsel %vm2883, %v2873, %v2331
        %v2923 = vsel %vm2883, %v2874, %v2333
        %v2924 = vsel %vm2883, %v2875, %v2335
        %v2925 = vsel %vm2883, %v2876, %v2337
        %v2926 = vsel %vm2883, %v2877, %v2339
        %v2927 = vsel %vm2883, %v2878, %v2341
        %v2928 = vsel %vm2883, %v2879, %v2343
        %v2929 = vsel %vm2883, %v2880, %v2345
        %v2930 = vsel %vm2883, %v2881, %v2347
        %v2931 = vsel %vm2883, %v2882, %v2349
        %vm2932 = vcmask 261120
        %v2933 = vsel %vm2932, %v2884, %v2447
        %v2934 = vsel %vm2932, %v2885, %v2449
        %v2935 = vsel %vm2932, %v2886, %v2451
        %v2936 = vsel %vm2932, %v2887, %v2453
        %v2937 = vsel %vm2932, %v2888, %v2455
        %v2938 = vsel %vm2932, %v2889, %v2457
        %v2939 = vsel %vm2932, %v2890, %v2459
        %v2940 = vsel %vm2932, %v2891, %v2461
        %v2941 = vsel %vm2932, %v2892, %v2463
        %v2942 = vsel %vm2932, %v2893, %v2465
        %v2943 = vsel %vm2932, %v2894, %v2467
        %v2944 = vsel %vm2932, %v2895, %v2469
        %v2945 = vsel %vm2932, %v2896, %v2471
        %v2946 = vsel %vm2932, %v2897, %v2473
        %v2947 = vsel %vm2932, %v2898, %v2475
        %v2948 = vsel %vm2932, %v2899, %v2477
        %v2949 = vsel %vm2932, %v2900, %v2479
        %v2950 = vsel %vm2932, %v2901, %v2481
        %v2951 = vsel %vm2932, %v2902, %v2483
        %v2952 = vsel %vm2932, %v2903, %v2485
        %v2953 = vsel %vm2932, %v2904, %v2487
        %v2954 = vsel %vm2932, %v2905, %v2489
        %v2955 = vsel %vm2932, %v2906, %v2491
        %v2956 = vsel %vm2932, %v2907, %v2493
        %v2957 = vsel %vm2932, %v2908, %v2495
        %v2958 = vsel %vm2932, %v2909, %v2497
        %v2959 = vsel %vm2932, %v2910, %v2499
        %v2960 = vsel %vm2932, %v2911, %v2501
        %v2961 = vsel %vm2932, %v2912, %v2503
        %v2962 = vsel %vm2932, %v2913, %v2505
        %v2963 = vsel %vm2932, %v2914, %v2507
        %v2964 = vsel %vm2932, %v2915, %v2509
        %v2965 = vsel %vm2932, %v2916, %v2511
        %v2966 = vsel %vm2932, %v2917, %v2513
        %v2967 = vsel %vm2932, %v2918, %v2515
        %v2968 = vsel %vm2932, %v2919, %v2517
        %v2969 = vsel %vm2932, %v2920, %v2519
        %v2970 = vsel %vm2932, %v2921, %v2521
        %v2971 = vsel %vm2932, %v2922, %v2523
        %v2972 = vsel %vm2932, %v2923, %v2525
        %v2973 = vsel %vm2932, %v2924, %v2527
        %v2974 = vsel %vm2932, %v2925, %v2529
        %v2975 = vsel %vm2932, %v2926, %v2531
        %v2976 = vsel %vm2932, %v2927, %v2533
        %v2977 = vsel %vm2932, %v2928, %v2535
        %v2978 = vsel %vm2932, %v2929, %v2537
        %v2979 = vsel %vm2932, %v2930, %v2539
        %v2980 = vsel %vm2932, %v2931, %v2541
        %v2981 = vld [vmem:[%s1] sm:$0xff]
        %v2982 = vld [vmem:[%s1 + $0x8] sm:$0xff]
        %v2983 = vld [vmem:[%s1 + $0x10] sm:$0xff]
        %v2984 = vld [vmem:[%s1 + $0x18] sm:$0xff]
        %v2985 = vld [vmem:[%s1 + $0x20] sm:$0xf]
        %v2986 = vld [vmem:[%s2] sm:$0x1]
        %v2988 = vlaneseq
        %v2989 = vshrl.u32 %v2988, 7
        %v2990 = vsub.s32 0, %v2989
        %v2991 = vrot.slane %v2986, %v2990
        %vm2993 = vcmask 293888
        %v2995 = vsel %vm2993, %v2933, 0
        %v2998 = vsel %vm2993, %v2934, 0
        %v3001 = vsel %vm2993, %v2935, 0
        %v3004 = vsel %vm2993, %v2936, 0
        %v3007 = vsel %vm2993, %v2937, 0
        %v3010 = vsel %vm2993, %v2938, 0
        %v3013 = vsel %vm2993, %v2939, 0
        %v3016 = vsel %vm2993, %v2940, 0
        %v3019 = vsel %vm2993, %v2941, 0
        %v3022 = vsel %vm2993, %v2942, 0
        %v3025 = vsel %vm2993, %v2943, 0
        %v3028 = vsel %vm2993, %v2944, 0
        %v3031 = vsel %vm2993, %v2945, 0
        %v3034 = vsel %vm2993, %v2946, 0
        %v3037 = vsel %vm2993, %v2947, 0
        %v3040 = vsel %vm2993, %v2948, 0
        %v3043 = vsel %vm2993, %v2949, 0
        %v3046 = vsel %vm2993, %v2950, 0
        %v3049 = vsel %vm2993, %v2951, 0
        %v3052 = vsel %vm2993, %v2952, 0
        %v3055 = vsel %vm2993, %v2953, 0
        %v3058 = vsel %vm2993, %v2954, 0
        %v3061 = vsel %vm2993, %v2955, 0
        %v3064 = vsel %vm2993, %v2956, 0
        %v3067 = vsel %vm2993, %v2957, 0
        %v3070 = vsel %vm2993, %v2958, 0
        %v3073 = vsel %vm2993, %v2959, 0
        %v3076 = vsel %vm2993, %v2960, 0
        %v3079 = vsel %vm2993, %v2961, 0
        %v3082 = vsel %vm2993, %v2962, 0
        %v3085 = vsel %vm2993, %v2963, 0
        %v3088 = vsel %vm2993, %v2964, 0
        %v3091 = vsel %vm2993, %v2965, 0
        %v3094 = vsel %vm2993, %v2966, 0
        %v3097 = vsel %vm2993, %v2967, 0
        %v3100 = vsel %vm2993, %v2968, 0
        %v3103 = vsel %vm2993, %v2969, 0
        %v3106 = vsel %vm2993, %v2970, 0
        %v3109 = vsel %vm2993, %v2971, 0
        %v3112 = vsel %vm2993, %v2972, 0
        %v3115 = vsel %vm2993, %v2973, 0
        %v3118 = vsel %vm2993, %v2974, 0
        %v3121 = vsel %vm2993, %v2975, 0
        %v3124 = vsel %vm2993, %v2976, 0
        %v3127 = vsel %vm2993, %v2977, 0
        %v3130 = vsel %vm2993, %v2978, 0
        %v3133 = vsel %vm2993, %v2979, 0
        %v3136 = vsel %vm2993, %v2980, 0
        %vm3138 = vcmask 1043456
        %v3140 = vsel %vm3138, %v2985, 0
        %3142 = vmatprep.subr.mxu0 0.0
        %3143 = vmatpush1.msra.mxu0 %v2981
        %3144 = vmatprep.subr.mxu0 0.0
        %3145 = vmatpush1.msra.mxu0 %v2982
        %3146 = vmatprep.subr.mxu0 0.0
        %3147 = vmatpush1.msra.mxu0 %v2983
        %3148 = vmatprep.subr.mxu0 0.0
        %3149 = vmatpush1.msra.mxu0 %v2984
        %3150 = vmatprep.subr.mxu0 0.0
        %3151 = vmatpush1.msra.mxu0 %v3140
        %3152 = vmatprep.subr.mxu0 0.0
        %3153 = vmatpush1.msra.mxu0 0.0
        %3154 = vmatprep.subr.mxu0 0.0
        %3155 = vmatpush1.msra.mxu0 0.0
        %3156 = vmatprep.subr.mxu0 0.0
        %3157 = vmatpush1.msra.mxu0 0.0
        %3158 = vmatprep.subr.mxu0 0.0
        %3159 = vmatpush1.msra.mxu0 0.0
        %3160 = vmatprep.subr.mxu0 0.0
        %3161 = vmatpush1.msra.mxu0 0.0
        %3162 = vmatprep.subr.mxu0 0.0
        %3163 = vmatpush1.msra.mxu0 0.0
        %3164 = vmatprep.subr.mxu0 0.0
        %3165 = vmatpush1.msra.mxu0 0.0
        %3166 = vmatprep.subr.mxu0 0.0
        %3167 = vmatpush1.msra.mxu0 0.0
        %3168 = vmatprep.subr.mxu0 0.0
        %3169 = vmatpush1.msra.mxu0 0.0
        %3170 = vmatprep.subr.mxu0 0.0
        %3171 = vmatpush1.msra.mxu0 0.0
        %3172 = vmatprep.subr.mxu0 0.0
        %3173 = vmatpush1.msra.mxu0 0.0
        %3174 = vmatprep.subr.mxu0 0.0
        %3175 = vmatpush1.msra.mxu0 0.0
        %3176 = vmatprep.subr.mxu0 0.0
        %3177 = vmatpush1.msra.mxu0 0.0
        %3178 = vmatprep.subr.mxu0 0.0
        %3179 = vmatpush1.msra.mxu0 0.0
        %3180 = vmatprep.subr.mxu0 0.0
        %3181 = vmatpush1.msra.mxu0 0.0
        %3182 = vmatprep.subr.mxu0 0.0
        %3183 = vmatpush1.msra.mxu0 0.0
        %3184 = vmatprep.subr.mxu0 0.0
        %3185 = vmatpush1.msra.mxu0 0.0
        %3186 = vmatprep.subr.mxu0 0.0
        %3187 = vmatpush1.msra.mxu0 0.0
        %3188 = vmatprep.subr.mxu0 0.0
        %3189 = vmatpush1.msra.mxu0 0.0
        %3190 = vmatprep.subr.mxu0 0.0
        %3191 = vmatpush1.msra.mxu0 0.0
        %3192 = vmatprep.subr.mxu0 0.0
        %3193 = vmatpush1.msra.mxu0 0.0
        %3194 = vmatprep.subr.mxu0 0.0
        %3195 = vmatpush1.msra.mxu0 0.0
        %3196 = vmatprep.subr.mxu0 0.0
        %3197 = vmatpush1.msra.mxu0 0.0
        %3198 = vmatprep.subr.mxu0 0.0
        %3199 = vmatpush1.msra.mxu0 0.0
        %3200 = vmatprep.subr.mxu0 0.0
        %3201 = vmatpush1.msra.mxu0 0.0
        %3202 = vmatprep.subr.mxu0 0.0
        %3203 = vmatpush1.msra.mxu0 0.0
        %3204 = vmatprep.subr.mxu0 0.0
        %3205 = vmatpush1.msra.mxu0 0.0
        %3206 = vmatprep.mubr.f32.mxu0 0.0
        %3207 = vmatmul.mubr.f32.gmra.mrb[0].mxu0 %v2995
        %v3208 = vpop.f32.mrb[0].mxu0
        %v3209 = vadd.f32 %v2991, %v3208
        %v3210 = vpop.f32.mrb[0].mxu0
        %3211 = vmatprep.mubr.f32.mxu0 0.0
        %3212 = vmatmul.mubr.f32.gmra.mrb[0].mxu0 %v2998
        %v3213 = vpop.f32.mrb[0].mxu0
        %v3214 = vadd.f32 %v2991, %v3213
        %v3215 = vpop.f32.mrb[0].mxu0
        %3216 = vmatprep.mubr.f32.mxu0 0.0
        %3217 = vmatmul.mubr.f32.gmra.mrb[0].mxu0 %v3001
        %v3218 = vpop.f32.mrb[0].mxu0
        %v3219 = vpop.f32.mrb[0].mxu0
        %3220 = vmatprep.mubr.f32.mxu0 0.0
        %3221 = vmatmul.mubr.f32.gmra.mrb[0].mxu0 %v3004
        %v3222 = vpop.f32.mrb[0].mxu0
        %v3223 = vadd.f32 %v2991, %v3222
        %v3224 = vpop.f32.mrb[0].mxu0
        %3225 = vmatprep.mubr.f32.mxu0 0.0
        %3226 = vmatmul.mubr.f32.gmra.mrb[0].mxu0 %v3007
        %v3227 = vpop.f32.mrb[0].mxu0
        %v3228 = vadd.f32 %v2991, %v3227
        %v3229 = vpop.f32.mrb[0].mxu0
        %3230 = vmatprep.mubr.f32.mxu0 0.0
        %3231 = vmatmul.mubr.f32.gmra.mrb[0].mxu0 %v3010
        %v3232 = vpop.f32.mrb[0].mxu0
        %v3233 = vpop.f32.mrb[0].mxu0
        %3234 = vmatprep.mubr.f32.mxu0 0.0
        %3235 = vmatmul.mubr.f32.gmra.mrb[0].mxu0 %v3013
        %v3236 = vpop.f32.mrb[0].mxu0
        %v3237 = vadd.f32 %v2991, %v3236
        %v3238 = vpop.f32.mrb[0].mxu0
        %3239 = vmatprep.mubr.f32.mxu0 0.0
        %3240 = vmatmul.mubr.f32.gmra.mrb[0].mxu0 %v3016
        %v3241 = vpop.f32.mrb[0].mxu0
        %v3242 = vadd.f32 %v2991, %v3241
        %v3243 = vpop.f32.mrb[0].mxu0
        %3244 = vmatprep.mubr.f32.mxu0 0.0
        %3245 = vmatmul.mubr.f32.gmra.mrb[0].mxu0 %v3019
        %v3246 = vpop.f32.mrb[0].mxu0
        %v3247 = vpop.f32.mrb[0].mxu0
        %3248 = vmatprep.mubr.f32.mxu0 0.0
        %3249 = vmatmul.mubr.f32.gmra.mrb[0].mxu0 %v3022
        %v3250 = vpop.f32.mrb[0].mxu0
        %v3251 = vadd.f32 %v2991, %v3250
        %v3252 = vpop.f32.mrb[0].mxu0
        %3253 = vmatprep.mubr.f32.mxu0 0.0
        %3254 = vmatmul.mubr.f32.gmra.mrb[0].mxu0 %v3025
        %v3255 = vpop.f32.mrb[0].mxu0
        %v3256 = vadd.f32 %v2991, %v3255
        %v3257 = vpop.f32.mrb[0].mxu0
        %3258 = vmatprep.mubr.f32.mxu0 0.0
        %3259 = vmatmul.mubr.f32.gmra.mrb[0].mxu0 %v3028
        %v3260 = vpop.f32.mrb[0].mxu0
        %v3261 = vpop.f32.mrb[0].mxu0
        %3262 = vmatprep.mubr.f32.mxu0 0.0
        %3263 = vmatmul.mubr.f32.gmra.mrb[0].mxu0 %v3031
        %v3264 = vpop.f32.mrb[0].mxu0
        %v3265 = vadd.f32 %v2991, %v3264
        %v3266 = vpop.f32.mrb[0].mxu0
        %3267 = vmatprep.mubr.f32.mxu0 0.0
        %3268 = vmatmul.mubr.f32.gmra.mrb[0].mxu0 %v3034
        %v3269 = vpop.f32.mrb[0].mxu0
        %v3270 = vadd.f32 %v2991, %v3269
        %v3271 = vpop.f32.mrb[0].mxu0
        %3272 = vmatprep.mubr.f32.mxu0 0.0
        %3273 = vmatmul.mubr.f32.gmra.mrb[0].mxu0 %v3037
        %v3274 = vpop.f32.mrb[0].mxu0
        %v3275 = vpop.f32.mrb[0].mxu0
        %3276 = vmatprep.mubr.f32.mxu0 0.0
        %3277 = vmatmul.mubr.f32.gmra.mrb[0].mxu0 %v3040
        %v3278 = vpop.f32.mrb[0].mxu0
        %v3279 = vadd.f32 %v2991, %v3278
        %v3280 = vpop.f32.mrb[0].mxu0
        %3281 = vmatprep.mubr.f32.mxu0 0.0
        %3282 = vmatmul.mubr.f32.gmra.mrb[0].mxu0 %v3043
        %v3283 = vpop.f32.mrb[0].mxu0
        %v3284 = vadd.f32 %v2991, %v3283
        %v3285 = vpop.f32.mrb[0].mxu0
        %3286 = vmatprep.mubr.f32.mxu0 0.0
        %3287 = vmatmul.mubr.f32.gmra.mrb[0].mxu0 %v3046
        %v3288 = vpop.f32.mrb[0].mxu0
        %v3289 = vpop.f32.mrb[0].mxu0
        %3290 = vmatprep.mubr.f32.mxu0 0.0
        %3291 = vmatmul.mubr.f32.gmra.mrb[0].mxu0 %v3049
        %v3292 = vpop.f32.mrb[0].mxu0
        %v3293 = vadd.f32 %v2991, %v3292
        %v3294 = vpop.f32.mrb[0].mxu0
        %3295 = vmatprep.mubr.f32.mxu0 0.0
        %3296 = vmatmul.mubr.f32.gmra.mrb[0].mxu0 %v3052
        %v3297 = vpop.f32.mrb[0].mxu0
        %v3298 = vadd.f32 %v2991, %v3297
        %v3299 = vpop.f32.mrb[0].mxu0
        %3300 = vmatprep.mubr.f32.mxu0 0.0
        %3301 = vmatmul.mubr.f32.gmra.mrb[0].mxu0 %v3055
        %v3302 = vpop.f32.mrb[0].mxu0
        %v3303 = vpop.f32.mrb[0].mxu0
        %3304 = vmatprep.mubr.f32.mxu0 0.0
        %3305 = vmatmul.mubr.f32.gmra.mrb[0].mxu0 %v3058
        %v3306 = vpop.f32.mrb[0].mxu0
        %v3307 = vadd.f32 %v2991, %v3306
        %v3308 = vpop.f32.mrb[0].mxu0
        %3309 = vmatprep.mubr.f32.mxu0 0.0
        %3310 = vmatmul.mubr.f32.gmra.mrb[0].mxu0 %v3061
        %v3311 = vpop.f32.mrb[0].mxu0
        %v3312 = vadd.f32 %v2991, %v3311
        %v3313 = vpop.f32.mrb[0].mxu0
        %3314 = vmatprep.mubr.f32.mxu0 0.0
        %3315 = vmatmul.mubr.f32.gmra.mrb[0].mxu0 %v3064
        %v3316 = vpop.f32.mrb[0].mxu0
        %v3317 = vpop.f32.mrb[0].mxu0
        %3318 = vmatprep.mubr.f32.mxu0 0.0
        %3319 = vmatmul.mubr.f32.gmra.mrb[0].mxu0 %v3067
        %v3320 = vpop.f32.mrb[0].mxu0
        %v3321 = vadd.f32 %v2991, %v3320
        %v3322 = vpop.f32.mrb[0].mxu0
        %3323 = vmatprep.mubr.f32.mxu0 0.0
        %3324 = vmatmul.mubr.f32.gmra.mrb[0].mxu0 %v3070
        %v3325 = vpop.f32.mrb[0].mxu0
        %v3326 = vadd.f32 %v2991, %v3325
        %v3327 = vpop.f32.mrb[0].mxu0
        %3328 = vmatprep.mubr.f32.mxu0 0.0
        %3329 = vmatmul.mubr.f32.gmra.mrb[0].mxu0 %v3073
        %v3330 = vpop.f32.mrb[0].mxu0
        %v3331 = vpop.f32.mrb[0].mxu0
        %3332 = vmatprep.mubr.f32.mxu0 0.0
        %3333 = vmatmul.mubr.f32.gmra.mrb[0].mxu0 %v3076
        %v3334 = vpop.f32.mrb[0].mxu0
        %v3335 = vadd.f32 %v2991, %v3334
        %v3336 = vpop.f32.mrb[0].mxu0
        %3337 = vmatprep.mubr.f32.mxu0 0.0
        %3338 = vmatmul.mubr.f32.gmra.mrb[0].mxu0 %v3079
        %v3339 = vpop.f32.mrb[0].mxu0
        %v3340 = vadd.f32 %v2991, %v3339
        %v3341 = vpop.f32.mrb[0].mxu0
        %3342 = vmatprep.mubr.f32.mxu0 0.0
        %3343 = vmatmul.mubr.f32.gmra.mrb[0].mxu0 %v3082
        %v3344 = vpop.f32.mrb[0].mxu0
        %v3345 = vpop.f32.mrb[0].mxu0
        %3346 = vmatprep.mubr.f32.mxu0 0.0
        %3347 = vmatmul.mubr.f32.gmra.mrb[0].mxu0 %v3085
        %v3348 = vpop.f32.mrb[0].mxu0
        %v3349 = vadd.f32 %v2991, %v3348
        %v3350 = vpop.f32.mrb[0].mxu0
        %3351 = vmatprep.mubr.f32.mxu0 0.0
        %3352 = vmatmul.mubr.f32.gmra.mrb[0].mxu0 %v3088
        %v3353 = vpop.f32.mrb[0].mxu0
        %v3354 = vadd.f32 %v2991, %v3353
        %v3355 = vpop.f32.mrb[0].mxu0
        %3356 = vmatprep.mubr.f32.mxu0 0.0
        %3357 = vmatmul.mubr.f32.gmra.mrb[0].mxu0 %v3091
        %v3358 = vpop.f32.mrb[0].mxu0
        %v3359 = vpop.f32.mrb[0].mxu0
        %3360 = vmatprep.mubr.f32.mxu0 0.0
        %3361 = vmatmul.mubr.f32.gmra.mrb[0].mxu0 %v3094
        %v3362 = vpop.f32.mrb[0].mxu0
        %v3363 = vadd.f32 %v2991, %v3362
        %v3364 = vpop.f32.mrb[0].mxu0
        %3365 = vmatprep.mubr.f32.mxu0 0.0
        %3366 = vmatmul.mubr.f32.gmra.mrb[0].mxu0 %v3097
        %v3367 = vpop.f32.mrb[0].mxu0
        %v3368 = vadd.f32 %v2991, %v3367
        %v3369 = vpop.f32.mrb[0].mxu0
        %3370 = vmatprep.mubr.f32.mxu0 0.0
        %3371 = vmatmul.mubr.f32.gmra.mrb[0].mxu0 %v3100
        %v3372 = vpop.f32.mrb[0].mxu0
        %v3373 = vpop.f32.mrb[0].mxu0
        %3374 = vmatprep.mubr.f32.mxu0 0.0
        %3375 = vmatmul.mubr.f32.gmra.mrb[0].mxu0 %v3103
        %v3376 = vpop.f32.mrb[0].mxu0
        %v3377 = vadd.f32 %v2991, %v3376
        %v3378 = vpop.f32.mrb[0].mxu0
        %3379 = vmatprep.mubr.f32.mxu0 0.0
        %3380 = vmatmul.mubr.f32.gmra.mrb[0].mxu0 %v3106
        %v3381 = vpop.f32.mrb[0].mxu0
        %v3382 = vadd.f32 %v2991, %v3381
        %v3383 = vpop.f32.mrb[0].mxu0
        %3384 = vmatprep.mubr.f32.mxu0 0.0
        %3385 = vmatmul.mubr.f32.gmra.mrb[0].mxu0 %v3109
        %v3386 = vpop.f32.mrb[0].mxu0
        %v3387 = vpop.f32.mrb[0].mxu0
        %3388 = vmatprep.mubr.f32.mxu0 0.0
        %3389 = vmatmul.mubr.f32.gmra.mrb[0].mxu0 %v3112
        %v3390 = vpop.f32.mrb[0].mxu0
        %v3391 = vadd.f32 %v2991, %v3390
        %v3392 = vpop.f32.mrb[0].mxu0
        %3393 = vmatprep.mubr.f32.mxu0 0.0
        %3394 = vmatmul.mubr.f32.gmra.mrb[0].mxu0 %v3115
        %v3395 = vpop.f32.mrb[0].mxu0
        %v3396 = vadd.f32 %v2991, %v3395
        %v3397 = vpop.f32.mrb[0].mxu0
        %3398 = vmatprep.mubr.f32.mxu0 0.0
        %3399 = vmatmul.mubr.f32.gmra.mrb[0].mxu0 %v3118
        %v3400 = vpop.f32.mrb[0].mxu0
        %v3401 = vpop.f32.mrb[0].mxu0
        %3402 = vmatprep.mubr.f32.mxu0 0.0
        %3403 = vmatmul.mubr.f32.gmra.mrb[0].mxu0 %v3121
        %v3404 = vpop.f32.mrb[0].mxu0
        %v3405 = vadd.f32 %v2991, %v3404
        %v3406 = vpop.f32.mrb[0].mxu0
        %3407 = vmatprep.mubr.f32.mxu0 0.0
        %3408 = vmatmul.mubr.f32.gmra.mrb[0].mxu0 %v3124
        %v3409 = vpop.f32.mrb[0].mxu0
        %v3410 = vadd.f32 %v2991, %v3409
        %v3411 = vpop.f32.mrb[0].mxu0
        %3412 = vmatprep.mubr.f32.mxu0 0.0
        %3413 = vmatmul.mubr.f32.gmra.mrb[0].mxu0 %v3127
        %v3414 = vpop.f32.mrb[0].mxu0
        %v3415 = vpop.f32.mrb[0].mxu0
        %3416 = vmatprep.mubr.f32.mxu0 0.0
        %3417 = vmatmul.mubr.f32.gmra.mrb[0].mxu0 %v3130
        %v3418 = vpop.f32.mrb[0].mxu0
        %v3419 = vadd.f32 %v2991, %v3418
        %v3420 = vpop.f32.mrb[0].mxu0
        %3421 = vmatprep.mubr.f32.mxu0 0.0
        %3422 = vmatmul.mubr.f32.gmra.mrb[0].mxu0 %v3133
        %v3423 = vpop.f32.mrb[0].mxu0
        %v3424 = vadd.f32 %v2991, %v3423
        %v3425 = vpop.f32.mrb[0].mxu0
        %3426 = vmatprep.mubr.f32.mxu0 0.0
        %3427 = vmatmul.mubr.f32.gmra.mrb[0].mxu0 %v3136
        %v3428 = vpop.f32.mrb[0].mxu0
        %v3429 = vpop.f32.mrb[0].mxu0
        %3430 = vdwg.mxu0
        %v3431 = vmax.f32 %v3209, 0.0
        %v3432 = vmax.f32 %v3214, 0.0
        %v3433 = vmax.f32 %v3223, 0.0
        %v3434 = vmax.f32 %v3228, 0.0
        %v3435 = vmax.f32 %v3237, 0.0
        %v3436 = vmax.f32 %v3242, 0.0
        %v3437 = vmax.f32 %v3251, 0.0
        %v3438 = vmax.f32 %v3256, 0.0
        %v3439 = vmax.f32 %v3265, 0.0
        %v3440 = vmax.f32 %v3270, 0.0
        %v3441 = vmax.f32 %v3279, 0.0
        %v3442 = vmax.f32 %v3284, 0.0
        %v3443 = vmax.f32 %v3293, 0.0
        %v3444 = vmax.f32 %v3298, 0.0
        %v3445 = vmax.f32 %v3307, 0.0
        %v3446 = vmax.f32 %v3312, 0.0
        %v3447 = vmax.f32 %v3321, 0.0
        %v3448 = vmax.f32 %v3326, 0.0
        %v3449 = vmax.f32 %v3335, 0.0
        %v3450 = vmax.f32 %v3340, 0.0
        %v3451 = vmax.f32 %v3349, 0.0
        %v3452 = vmax.f32 %v3354, 0.0
        %v3453 = vmax.f32 %v3363, 0.0
        %v3454 = vmax.f32 %v3368, 0.0
        %v3455 = vmax.f32 %v3377, 0.0
        %v3456 = vmax.f32 %v3382, 0.0
        %v3457 = vmax.f32 %v3391, 0.0
        %v3458 = vmax.f32 %v3396, 0.0
        %v3459 = vmax.f32 %v3405, 0.0
        %v3460 = vmax.f32 %v3410, 0.0
        %v3461 = vmax.f32 %v3419, 0.0
        %v3462 = vmax.f32 %v3424, 0.0
        %3463 = vst [vmem:[#allocation3] sm:$0xff] 0.0
        %3464 = vst [vmem:[#allocation3 + $0x8] sm:$0xff] 0.0
        %3465 = vst [vmem:[#allocation3 + $0x10] sm:$0xff] 0.0
        %s3466 = scalar_lea.vmem [#allocation3], 408
        %3467 = vst [vmem:[%s3466] sm:$0xff] 0.0
        %3468 = vst [vmem:[%s3466 + $0x8] sm:$0xff] 0.0
        %3469 = vst [vmem:[%s3466 + $0x10] sm:$0xff] 0.0
        %3470 = vst [vmem:[#allocation3 + $0x10] sm:$0xff] 0.0
        %3471 = vst [vmem:[#allocation3 + $0x28] sm:$0xff] 0.0
        %3472 = vst [vmem:[#allocation3 + $0x40] sm:$0xff] 0.0
        %3473 = vst [vmem:[#allocation3 + $0x58] sm:$0xff] 0.0
        %3474 = vst [vmem:[#allocation3 + $0x70] sm:$0xff] 0.0
        %3475 = vst [vmem:[#allocation3 + $0x88] sm:$0xff] 0.0
        %3476 = vst [vmem:[#allocation3 + $0xa0] sm:$0xff] 0.0
        %3477 = vst [vmem:[#allocation3 + $0xb8] sm:$0xff] 0.0
        %3478 = vst [vmem:[#allocation3 + $0xd0] sm:$0xff] 0.0
        %3479 = vst [vmem:[#allocation3 + $0xe8] sm:$0xff] 0.0
        %3480 = vst [vmem:[#allocation3 + $0x100] sm:$0xff] 0.0
        %3481 = vst [vmem:[#allocation3 + $0x118] sm:$0xff] 0.0
        %3482 = vst [vmem:[#allocation3 + $0x130] sm:$0xff] 0.0
        %3483 = vst [vmem:[#allocation3 + $0x148] sm:$0xff] 0.0
        %3484 = vst [vmem:[#allocation3 + $0x160] sm:$0xff] 0.0
        %3485 = vst [vmem:[#allocation3 + $0x178] sm:$0xff] 0.0
        %3486 = vst [vmem:[#allocation3 + $0x190] sm:$0xff] 0.0
        %3487 = vst [vmem:[#allocation3 + $0x1a8] sm:$0xff] 0.0
        %s3488 = scalar_lea.vmem [#allocation3], 24
        %3489 = vst [vmem:[%s3488] sm:$0xff] %v3431
        %3490 = vst [vmem:[%s3488 + $0x8] sm:$0xff] %v3432
        %3491 = vst [vmem:[%s3488 + $0x18] sm:$0xff] %v3433
        %3492 = vst [vmem:[%s3488 + $0x20] sm:$0xff] %v3434
        %3493 = vst [vmem:[%s3488 + $0x30] sm:$0xff] %v3435
        %3494 = vst [vmem:[%s3488 + $0x38] sm:$0xff] %v3436
        %3495 = vst [vmem:[%s3488 + $0x48] sm:$0xff] %v3437
        %3496 = vst [vmem:[%s3488 + $0x50] sm:$0xff] %v3438
        %3497 = vst [vmem:[%s3488 + $0x60] sm:$0xff] %v3439
        %3498 = vst [vmem:[%s3488 + $0x68] sm:$0xff] %v3440
        %3499 = vst [vmem:[%s3488 + $0x78] sm:$0xff] %v3441
        %3500 = vst [vmem:[%s3488 + $0x80] sm:$0xff] %v3442
        %3501 = vst [vmem:[%s3488 + $0x90] sm:$0xff] %v3443
        %3502 = vst [vmem:[%s3488 + $0x98] sm:$0xff] %v3444
        %3503 = vst [vmem:[%s3488 + $0xa8] sm:$0xff] %v3445
        %3504 = vst [vmem:[%s3488 + $0xb0] sm:$0xff] %v3446
        %3505 = vst [vmem:[%s3488 + $0xc0] sm:$0xff] %v3447
        %3506 = vst [vmem:[%s3488 + $0xc8] sm:$0xff] %v3448
        %3507 = vst [vmem:[%s3488 + $0xd8] sm:$0xff] %v3449
        %3508 = vst [vmem:[%s3488 + $0xe0] sm:$0xff] %v3450
        %3509 = vst [vmem:[%s3488 + $0xf0] sm:$0xff] %v3451
        %3510 = vst [vmem:[%s3488 + $0xf8] sm:$0xff] %v3452
        %3511 = vst [vmem:[%s3488 + $0x108] sm:$0xff] %v3453
        %3512 = vst [vmem:[%s3488 + $0x110] sm:$0xff] %v3454
        %3513 = vst [vmem:[%s3488 + $0x120] sm:$0xff] %v3455
        %3514 = vst [vmem:[%s3488 + $0x128] sm:$0xff] %v3456
        %3515 = vst [vmem:[%s3488 + $0x138] sm:$0xff] %v3457
        %3516 = vst [vmem:[%s3488 + $0x140] sm:$0xff] %v3458
        %3517 = vst [vmem:[%s3488 + $0x150] sm:$0xff] %v3459
        %3518 = vst [vmem:[%s3488 + $0x158] sm:$0xff] %v3460
        %3519 = vst [vmem:[%s3488 + $0x168] sm:$0xff] %v3461
        %3520 = vst [vmem:[%s3488 + $0x170] sm:$0xff] %v3462
        %v3521 = vld [vmem:[#allocation3] sm:$0xff]
        %v3522 = vld [vmem:[#allocation3 + $0x8] sm:$0xff]
        %v3523 = vld [vmem:[#allocation3 + $0x10] sm:$0xff]
        %v3524 = vld [vmem:[#allocation3 + $0x18] sm:$0xff]
        %v3525 = vld [vmem:[#allocation3 + $0x20] sm:$0xff]
        %v3526 = vld [vmem:[#allocation3 + $0x28] sm:$0xff]
        %v3527 = vld [vmem:[#allocation3 + $0x30] sm:$0xff]
        %v3528 = vld [vmem:[#allocation3 + $0x38] sm:$0xff]
        %v3529 = vld [vmem:[#allocation3 + $0x40] sm:$0xff]
        %v3530 = vld [vmem:[#allocation3 + $0x48] sm:$0xff]
        %v3531 = vld [vmem:[#allocation3 + $0x50] sm:$0xff]
        %v3532 = vld [vmem:[#allocation3 + $0x58] sm:$0xff]
        %v3533 = vld [vmem:[#allocation3 + $0x60] sm:$0xff]
        %v3534 = vld [vmem:[#allocation3 + $0x68] sm:$0xff]
        %v3535 = vld [vmem:[#allocation3 + $0x70] sm:$0xff]
        %v3536 = vld [vmem:[#allocation3 + $0x78] sm:$0xff]
        %v3537 = vld [vmem:[#allocation3 + $0x80] sm:$0xff]
        %v3538 = vld [vmem:[#allocation3 + $0x88] sm:$0xff]
        %v3539 = vld [vmem:[#allocation3 + $0x90] sm:$0xff]
        %v3540 = vld [vmem:[#allocation3 + $0x98] sm:$0xff]
        %v3541 = vld [vmem:[#allocation3 + $0xa0] sm:$0xff]
        %v3542 = vld [vmem:[#allocation3 + $0xa8] sm:$0xff]
        %v3543 = vld [vmem:[#allocation3 + $0xb0] sm:$0xff]
        %v3544 = vld [vmem:[#allocation3 + $0xb8] sm:$0xff]
        %v3545 = vld [vmem:[#allocation3 + $0xc0] sm:$0xff]
        %v3546 = vld [vmem:[#allocation3 + $0xc8] sm:$0xff]
        %v3547 = vld [vmem:[#allocation3 + $0xd0] sm:$0xff]
        %v3548 = vld [vmem:[#allocation3 + $0xd8] sm:$0xff]
        %v3549 = vld [vmem:[#allocation3 + $0xe0] sm:$0xff]
        %v3550 = vld [vmem:[#allocation3 + $0xe8] sm:$0xff]
        %v3551 = vld [vmem:[#allocation3 + $0xf0] sm:$0xff]
        %v3552 = vld [vmem:[#allocation3 + $0xf8] sm:$0xff]
        %v3553 = vld [vmem:[#allocation3 + $0x100] sm:$0xff]
        %v3554 = vld [vmem:[#allocation3 + $0x108] sm:$0xff]
        %v3555 = vld [vmem:[#allocation3 + $0x110] sm:$0xff]
        %v3556 = vld [vmem:[#allocation3 + $0x118] sm:$0xff]
        %v3557 = vld [vmem:[#allocation3 + $0x120] sm:$0xff]
        %v3558 = vld [vmem:[#allocation3 + $0x128] sm:$0xff]
        %v3559 = vld [vmem:[#allocation3 + $0x130] sm:$0xff]
        %v3560 = vld [vmem:[#allocation3 + $0x138] sm:$0xff]
        %v3561 = vld [vmem:[#allocation3 + $0x140] sm:$0xff]
        %v3562 = vld [vmem:[#allocation3 + $0x148] sm:$0xff]
        %v3563 = vld [vmem:[#allocation3 + $0x150] sm:$0xff]
        %v3564 = vld [vmem:[#allocation3 + $0x158] sm:$0xff]
        %v3565 = vld [vmem:[#allocation3 + $0x160] sm:$0xff]
        %v3566 = vld [vmem:[#allocation3 + $0x168] sm:$0xff]
        %v3567 = vld [vmem:[#allocation3 + $0x170] sm:$0xff]
        %v3568 = vld [vmem:[#allocation3 + $0x178] sm:$0xff]
        %v3569 = vrot.slane %v3521, 7
        %v3570 = vrot.slane %v3522, 7
        %v3571 = vrot.slane %v3523, 7
        %v3572 = vrot.slane %v3524, 7
        %v3573 = vrot.slane %v3525, 7
        %v3574 = vrot.slane %v3526, 7
        %v3575 = vrot.slane %v3527, 7
        %v3576 = vrot.slane %v3528, 7
        %v3577 = vrot.slane %v3529, 7
        %v3578 = vrot.slane %v3530, 7
        %v3579 = vrot.slane %v3531, 7
        %v3580 = vrot.slane %v3532, 7
        %v3581 = vrot.slane %v3533, 7
        %v3582 = vrot.slane %v3534, 7
        %v3583 = vrot.slane %v3535, 7
        %v3584 = vrot.slane %v3536, 7
        %v3585 = vrot.slane %v3537, 7
        %v3586 = vrot.slane %v3538, 7
        %v3587 = vrot.slane %v3539, 7
        %v3588 = vrot.slane %v3540, 7
        %v3589 = vrot.slane %v3541, 7
        %v3590 = vrot.slane %v3542, 7
        %v3591 = vrot.slane %v3543, 7
        %v3592 = vrot.slane %v3544, 7
        %v3593 = vrot.slane %v3545, 7
        %v3594 = vrot.slane %v3546, 7
        %v3595 = vrot.slane %v3547, 7
        %v3596 = vrot.slane %v3548, 7
        %v3597 = vrot.slane %v3549, 7
        %v3598 = vrot.slane %v3550, 7
        %v3599 = vrot.slane %v3551, 7
        %v3600 = vrot.slane %v3552, 7
        %v3601 = vrot.slane %v3553, 7
        %v3602 = vrot.slane %v3554, 7
        %v3603 = vrot.slane %v3555, 7
        %v3604 = vrot.slane %v3556, 7
        %v3605 = vrot.slane %v3557, 7
        %v3606 = vrot.slane %v3558, 7
        %v3607 = vrot.slane %v3559, 7
        %v3608 = vrot.slane %v3560, 7
        %v3609 = vrot.slane %v3561, 7
        %v3610 = vrot.slane %v3562, 7
        %v3611 = vrot.slane %v3563, 7
        %v3612 = vrot.slane %v3564, 7
        %v3613 = vrot.slane %v3565, 7
        %v3614 = vrot.slane %v3566, 7
        %v3615 = vrot.slane %v3567, 7
        %v3616 = vrot.slane %v3568, 7
        %v3617 = vsel %vm427, %v3615, %v3616
        %v3618 = vsel %vm427, %v3614, %v3615
        %v3619 = vsel %vm427, %v3613, %v3614
        %v3620 = vsel %vm427, %v3612, %v3613
        %v3621 = vsel %vm427, %v3611, %v3612
        %v3622 = vsel %vm427, %v3610, %v3611
        %v3623 = vsel %vm427, %v3609, %v3610
        %v3624 = vsel %vm427, %v3608, %v3609
        %v3625 = vsel %vm427, %v3607, %v3608
        %v3626 = vsel %vm427, %v3606, %v3607
        %v3627 = vsel %vm427, %v3605, %v3606
        %v3628 = vsel %vm427, %v3604, %v3605
        %v3629 = vsel %vm427, %v3603, %v3604
        %v3630 = vsel %vm427, %v3602, %v3603
        %v3631 = vsel %vm427, %v3601, %v3602
        %v3632 = vsel %vm427, %v3600, %v3601
        %v3633 = vsel %vm427, %v3599, %v3600
        %v3634 = vsel %vm427, %v3598, %v3599
        %v3635 = vsel %vm427, %v3597, %v3598
        %v3636 = vsel %vm427, %v3596, %v3597
        %v3637 = vsel %vm427, %v3595, %v3596
        %v3638 = vsel %vm427, %v3594, %v3595
        %v3639 = vsel %vm427, %v3593, %v3594
        %v3640 = vsel %vm427, %v3592, %v3593
        %v3641 = vsel %vm427, %v3591, %v3592
        %v3642 = vsel %vm427, %v3590, %v3591
        %v3643 = vsel %vm427, %v3589, %v3590
        %v3644 = vsel %vm427, %v3588, %v3589
        %v3645 = vsel %vm427, %v3587, %v3588
        %v3646 = vsel %vm427, %v3586, %v3587
        %v3647 = vsel %vm427, %v3585, %v3586
        %v3648 = vsel %vm427, %v3584, %v3585
        %v3649 = vsel %vm427, %v3583, %v3584
        %v3650 = vsel %vm427, %v3582, %v3583
        %v3651 = vsel %vm427, %v3581, %v3582
        %v3652 = vsel %vm427, %v3580, %v3581
        %v3653 = vsel %vm427, %v3579, %v3580
        %v3654 = vsel %vm427, %v3578, %v3579
        %v3655 = vsel %vm427, %v3577, %v3578
        %v3656 = vsel %vm427, %v3576, %v3577
        %v3657 = vsel %vm427, %v3575, %v3576
        %v3658 = vsel %vm427, %v3574, %v3575
        %v3659 = vsel %vm427, %v3573, %v3574
        %v3660 = vsel %vm427, %v3572, %v3573
        %v3661 = vsel %vm427, %v3571, %v3572
        %v3662 = vsel %vm427, %v3570, %v3571
        %v3663 = vsel %vm427, %v3569, %v3570
        %v3664 = vsel %vm427, %v3616, %v3569
        %v3665 = vrot.slane %v3521, 1
        %v3666 = vrot.slane %v3522, 1
        %v3667 = vrot.slane %v3523, 1
        %v3668 = vrot.slane %v3524, 1
        %v3669 = vrot.slane %v3525, 1
        %v3670 = vrot.slane %v3526, 1
        %v3671 = vrot.slane %v3527, 1
        %v3672 = vrot.slane %v3528, 1
        %v3673 = vrot.slane %v3529, 1
        %v3674 = vrot.slane %v3530, 1
        %v3675 = vrot.slane %v3531, 1
        %v3676 = vrot.slane %v3532, 1
        %v3677 = vrot.slane %v3533, 1
        %v3678 = vrot.slane %v3534, 1
        %v3679 = vrot.slane %v3535, 1
        %v3680 = vrot.slane %v3536, 1
        %v3681 = vrot.slane %v3537, 1
        %v3682 = vrot.slane %v3538, 1
        %v3683 = vrot.slane %v3539, 1
        %v3684 = vrot.slane %v3540, 1
        %v3685 = vrot.slane %v3541, 1
        %v3686 = vrot.slane %v3542, 1
        %v3687 = vrot.slane %v3543, 1
        %v3688 = vrot.slane %v3544, 1
        %v3689 = vrot.slane %v3545, 1
        %v3690 = vrot.slane %v3546, 1
        %v3691 = vrot.slane %v3547, 1
        %v3692 = vrot.slane %v3548, 1
        %v3693 = vrot.slane %v3549, 1
        %v3694 = vrot.slane %v3550, 1
        %v3695 = vrot.slane %v3551, 1
        %v3696 = vrot.slane %v3552, 1
        %v3697 = vrot.slane %v3553, 1
        %v3698 = vrot.slane %v3554, 1
        %v3699 = vrot.slane %v3555, 1
        %v3700 = vrot.slane %v3556, 1
        %v3701 = vrot.slane %v3557, 1
        %v3702 = vrot.slane %v3558, 1
        %v3703 = vrot.slane %v3559, 1
        %v3704 = vrot.slane %v3560, 1
        %v3705 = vrot.slane %v3561, 1
        %v3706 = vrot.slane %v3562, 1
        %v3707 = vrot.slane %v3563, 1
        %v3708 = vrot.slane %v3564, 1
        %v3709 = vrot.slane %v3565, 1
        %v3710 = vrot.slane %v3566, 1
        %v3711 = vrot.slane %v3567, 1
        %v3712 = vrot.slane %v3568, 1
        %v3713 = vsel %vm524, %v3711, %v3712
        %v3714 = vsel %vm524, %v3710, %v3711
        %v3715 = vsel %vm524, %v3709, %v3710
        %v3716 = vsel %vm524, %v3708, %v3709
        %v3717 = vsel %vm524, %v3707, %v3708
        %v3718 = vsel %vm524, %v3706, %v3707
        %v3719 = vsel %vm524, %v3705, %v3706
        %v3720 = vsel %vm524, %v3704, %v3705
        %v3721 = vsel %vm524, %v3703, %v3704
        %v3722 = vsel %vm524, %v3702, %v3703
        %v3723 = vsel %vm524, %v3701, %v3702
        %v3724 = vsel %vm524, %v3700, %v3701
        %v3725 = vsel %vm524, %v3699, %v3700
        %v3726 = vsel %vm524, %v3698, %v3699
        %v3727 = vsel %vm524, %v3697, %v3698
        %v3728 = vsel %vm524, %v3696, %v3697
        %v3729 = vsel %vm524, %v3695, %v3696
        %v3730 = vsel %vm524, %v3694, %v3695
        %v3731 = vsel %vm524, %v3693, %v3694
        %v3732 = vsel %vm524, %v3692, %v3693
        %v3733 = vsel %vm524, %v3691, %v3692
        %v3734 = vsel %vm524, %v3690, %v3691
        %v3735 = vsel %vm524, %v3689, %v3690
        %v3736 = vsel %vm524, %v3688, %v3689
        %v3737 = vsel %vm524, %v3687, %v3688
        %v3738 = vsel %vm524, %v3686, %v3687
        %v3739 = vsel %vm524, %v3685, %v3686
        %v3740 = vsel %vm524, %v3684, %v3685
        %v3741 = vsel %vm524, %v3683, %v3684
        %v3742 = vsel %vm524, %v3682, %v3683
        %v3743 = vsel %vm524, %v3681, %v3682
        %v3744 = vsel %vm524, %v3680, %v3681
        %v3745 = vsel %vm524, %v3679, %v3680
        %v3746 = vsel %vm524, %v3678, %v3679
        %v3747 = vsel %vm524, %v3677, %v3678
        %v3748 = vsel %vm524, %v3676, %v3677
        %v3749 = vsel %vm524, %v3675, %v3676
        %v3750 = vsel %vm524, %v3674, %v3675
        %v3751 = vsel %vm524, %v3673, %v3674
        %v3752 = vsel %vm524, %v3672, %v3673
        %v3753 = vsel %vm524, %v3671, %v3672
        %v3754 = vsel %vm524, %v3670, %v3671
        %v3755 = vsel %vm524, %v3669, %v3670
        %v3756 = vsel %vm524, %v3668, %v3669
        %v3757 = vsel %vm524, %v3667, %v3668
        %v3758 = vsel %vm524, %v3666, %v3667
        %v3759 = vsel %vm524, %v3665, %v3666
        %v3760 = vsel %vm524, %v3712, %v3665
        %v3761 = vld [vmem:[%s3488] sm:$0xff]
        %v3762 = vld [vmem:[%s3488 + $0x8] sm:$0xff]
        %v3763 = vld [vmem:[%s3488 + $0x10] sm:$0xff]
        %v3764 = vld [vmem:[%s3488 + $0x18] sm:$0xff]
        %v3765 = vld [vmem:[%s3488 + $0x20] sm:$0xff]
        %v3766 = vld [vmem:[%s3488 + $0x28] sm:$0xff]
        %v3767 = vld [vmem:[%s3488 + $0x30] sm:$0xff]
        %v3768 = vld [vmem:[%s3488 + $0x38] sm:$0xff]
        %v3769 = vld [vmem:[%s3488 + $0x40] sm:$0xff]
        %v3770 = vld [vmem:[%s3488 + $0x48] sm:$0xff]
        %v3771 = vld [vmem:[%s3488 + $0x50] sm:$0xff]
        %v3772 = vld [vmem:[%s3488 + $0x58] sm:$0xff]
        %v3773 = vld [vmem:[%s3488 + $0x60] sm:$0xff]
        %v3774 = vld [vmem:[%s3488 + $0x68] sm:$0xff]
        %v3775 = vld [vmem:[%s3488 + $0x70] sm:$0xff]
        %v3776 = vld [vmem:[%s3488 + $0x78] sm:$0xff]
        %v3777 = vld [vmem:[%s3488 + $0x80] sm:$0xff]
        %v3778 = vld [vmem:[%s3488 + $0x88] sm:$0xff]
        %v3779 = vld [vmem:[%s3488 + $0x90] sm:$0xff]
        %v3780 = vld [vmem:[%s3488 + $0x98] sm:$0xff]
        %v3781 = vld [vmem:[%s3488 + $0xa0] sm:$0xff]
        %v3782 = vld [vmem:[%s3488 + $0xa8] sm:$0xff]
        %v3783 = vld [vmem:[%s3488 + $0xb0] sm:$0xff]
        %v3784 = vld [vmem:[%s3488 + $0xb8] sm:$0xff]
        %v3785 = vld [vmem:[%s3488 + $0xc0] sm:$0xff]
        %v3786 = vld [vmem:[%s3488 + $0xc8] sm:$0xff]
        %v3787 = vld [vmem:[%s3488 + $0xd0] sm:$0xff]
        %v3788 = vld [vmem:[%s3488 + $0xd8] sm:$0xff]
        %v3789 = vld [vmem:[%s3488 + $0xe0] sm:$0xff]
        %v3790 = vld [vmem:[%s3488 + $0xe8] sm:$0xff]
        %v3791 = vld [vmem:[%s3488 + $0xf0] sm:$0xff]
        %v3792 = vld [vmem:[%s3488 + $0xf8] sm:$0xff]
        %v3793 = vld [vmem:[%s3488 + $0x100] sm:$0xff]
        %v3794 = vld [vmem:[%s3488 + $0x108] sm:$0xff]
        %v3795 = vld [vmem:[%s3488 + $0x110] sm:$0xff]
        %v3796 = vld [vmem:[%s3488 + $0x118] sm:$0xff]
        %v3797 = vld [vmem:[%s3488 + $0x120] sm:$0xff]
        %v3798 = vld [vmem:[%s3488 + $0x128] sm:$0xff]
        %v3799 = vld [vmem:[%s3488 + $0x130] sm:$0xff]
        %v3800 = vld [vmem:[%s3488 + $0x138] sm:$0xff]
        %v3801 = vld [vmem:[%s3488 + $0x140] sm:$0xff]
        %v3802 = vld [vmem:[%s3488 + $0x148] sm:$0xff]
        %v3803 = vld [vmem:[%s3488 + $0x150] sm:$0xff]
        %v3804 = vld [vmem:[%s3488 + $0x158] sm:$0xff]
        %v3805 = vld [vmem:[%s3488 + $0x160] sm:$0xff]
        %v3806 = vld [vmem:[%s3488 + $0x168] sm:$0xff]
        %v3807 = vld [vmem:[%s3488 + $0x170] sm:$0xff]
        %v3808 = vld [vmem:[%s3488 + $0x178] sm:$0xff]
        %v3809 = vrot.slane %v3761, 7
        %v3810 = vrot.slane %v3762, 7
        %v3811 = vrot.slane %v3763, 7
        %v3812 = vrot.slane %v3764, 7
        %v3813 = vrot.slane %v3765, 7
        %v3814 = vrot.slane %v3766, 7
        %v3815 = vrot.slane %v3767, 7
        %v3816 = vrot.slane %v3768, 7
        %v3817 = vrot.slane %v3769, 7
        %v3818 = vrot.slane %v3770, 7
        %v3819 = vrot.slane %v3771, 7
        %v3820 = vrot.slane %v3772, 7
        %v3821 = vrot.slane %v3773, 7
        %v3822 = vrot.slane %v3774, 7
        %v3823 = vrot.slane %v3775, 7
        %v3824 = vrot.slane %v3776, 7
        %v3825 = vrot.slane %v3777, 7
        %v3826 = vrot.slane %v3778, 7
        %v3827 = vrot.slane %v3779, 7
        %v3828 = vrot.slane %v3780, 7
        %v3829 = vrot.slane %v3781, 7
        %v3830 = vrot.slane %v3782, 7
        %v3831 = vrot.slane %v3783, 7
        %v3832 = vrot.slane %v3784, 7
        %v3833 = vrot.slane %v3785, 7
        %v3834 = vrot.slane %v3786, 7
        %v3835 = vrot.slane %v3787, 7
        %v3836 = vrot.slane %v3788, 7
        %v3837 = vrot.slane %v3789, 7
        %v3838 = vrot.slane %v3790, 7
        %v3839 = vrot.slane %v3791, 7
        %v3840 = vrot.slane %v3792, 7
        %v3841 = vrot.slane %v3793, 7
        %v3842 = vrot.slane %v3794, 7
        %v3843 = vrot.slane %v3795, 7
        %v3844 = vrot.slane %v3796, 7
        %v3845 = vrot.slane %v3797, 7
        %v3846 = vrot.slane %v3798, 7
        %v3847 = vrot.slane %v3799, 7
        %v3848 = vrot.slane %v3800, 7
        %v3849 = vrot.slane %v3801, 7
        %v3850 = vrot.slane %v3802, 7
        %v3851 = vrot.slane %v3803, 7
        %v3852 = vrot.slane %v3804, 7
        %v3853 = vrot.slane %v3805, 7
        %v3854 = vrot.slane %v3806, 7
        %v3855 = vrot.slane %v3807, 7
        %v3856 = vrot.slane %v3808, 7
        %v3857 = vsel %vm427, %v3855, %v3856
        %v3858 = vsel %vm427, %v3854, %v3855
        %v3859 = vsel %vm427, %v3853, %v3854
        %v3860 = vsel %vm427, %v3852, %v3853
        %v3861 = vsel %vm427, %v3851, %v3852
        %v3862 = vsel %vm427, %v3850, %v3851
        %v3863 = vsel %vm427, %v3849, %v3850
        %v3864 = vsel %vm427, %v3848, %v3849
        %v3865 = vsel %vm427, %v3847, %v3848
        %v3866 = vsel %vm427, %v3846, %v3847
        %v3867 = vsel %vm427, %v3845, %v3846
        %v3868 = vsel %vm427, %v3844, %v3845
        %v3869 = vsel %vm427, %v3843, %v3844
        %v3870 = vsel %vm427, %v3842, %v3843
        %v3871 = vsel %vm427, %v3841, %v3842
        %v3872 = vsel %vm427, %v3840, %v3841
        %v3873 = vsel %vm427, %v3839, %v3840
        %v3874 = vsel %vm427, %v3838, %v3839
        %v3875 = vsel %vm427, %v3837, %v3838
        %v3876 = vsel %vm427, %v3836, %v3837
        %v3877 = vsel %vm427, %v3835, %v3836
        %v3878 = vsel %vm427, %v3834, %v3835
        %v3879 = vsel %vm427, %v3833, %v3834
        %v3880 = vsel %vm427, %v3832, %v3833
        %v3881 = vsel %vm427, %v3831, %v3832
        %v3882 = vsel %vm427, %v3830, %v3831
        %v3883 = vsel %vm427, %v3829, %v3830
        %v3884 = vsel %vm427, %v3828, %v3829
        %v3885 = vsel %vm427, %v3827, %v3828
        %v3886 = vsel %vm427, %v3826, %v3827
        %v3887 = vsel %vm427, %v3825, %v3826
        %v3888 = vsel %vm427, %v3824, %v3825
        %v3889 = vsel %vm427, %v3823, %v3824
        %v3890 = vsel %vm427, %v3822, %v3823
        %v3891 = vsel %vm427, %v3821, %v3822
        %v3892 = vsel %vm427, %v3820, %v3821
        %v3893 = vsel %vm427, %v3819, %v3820
        %v3894 = vsel %vm427, %v3818, %v3819
        %v3895 = vsel %vm427, %v3817, %v3818
        %v3896 = vsel %vm427, %v3816, %v3817
        %v3897 = vsel %vm427, %v3815, %v3816
        %v3898 = vsel %vm427, %v3814, %v3815
        %v3899 = vsel %vm427, %v3813, %v3814
        %v3900 = vsel %vm427, %v3812, %v3813
        %v3901 = vsel %vm427, %v3811, %v3812
        %v3902 = vsel %vm427, %v3810, %v3811
        %v3903 = vsel %vm427, %v3809, %v3810
        %v3904 = vsel %vm427, %v3856, %v3809
        %v3905 = vrot.slane %v3761, 1
        %v3906 = vrot.slane %v3762, 1
        %v3907 = vrot.slane %v3763, 1
        %v3908 = vrot.slane %v3764, 1
        %v3909 = vrot.slane %v3765, 1
        %v3910 = vrot.slane %v3766, 1
        %v3911 = vrot.slane %v3767, 1
        %v3912 = vrot.slane %v3768, 1
        %v3913 = vrot.slane %v3769, 1
        %v3914 = vrot.slane %v3770, 1
        %v3915 = vrot.slane %v3771, 1
        %v3916 = vrot.slane %v3772, 1
        %v3917 = vrot.slane %v3773, 1
        %v3918 = vrot.slane %v3774, 1
        %v3919 = vrot.slane %v3775, 1
        %v3920 = vrot.slane %v3776, 1
        %v3921 = vrot.slane %v3777, 1
        %v3922 = vrot.slane %v3778, 1
        %v3923 = vrot.slane %v3779, 1
        %v3924 = vrot.slane %v3780, 1
        %v3925 = vrot.slane %v3781, 1
        %v3926 = vrot.slane %v3782, 1
        %v3927 = vrot.slane %v3783, 1
        %v3928 = vrot.slane %v3784, 1
        %v3929 = vrot.slane %v3785, 1
        %v3930 = vrot.slane %v3786, 1
        %v3931 = vrot.slane %v3787, 1
        %v3932 = vrot.slane %v3788, 1
        %v3933 = vrot.slane %v3789, 1
        %v3934 = vrot.slane %v3790, 1
        %v3935 = vrot.slane %v3791, 1
        %v3936 = vrot.slane %v3792, 1
        %v3937 = vrot.slane %v3793, 1
        %v3938 = vrot.slane %v3794, 1
        %v3939 = vrot.slane %v3795, 1
        %v3940 = vrot.slane %v3796, 1
        %v3941 = vrot.slane %v3797, 1
        %v3942 = vrot.slane %v3798, 1
        %v3943 = vrot.slane %v3799, 1
        %v3944 = vrot.slane %v3800, 1
        %v3945 = vrot.slane %v3801, 1
        %v3946 = vrot.slane %v3802, 1
        %v3947 = vrot.slane %v3803, 1
        %v3948 = vrot.slane %v3804, 1
        %v3949 = vrot.slane %v3805, 1
        %v3950 = vrot.slane %v3806, 1
        %v3951 = vrot.slane %v3807, 1
        %v3952 = vrot.slane %v3808, 1
        %v3953 = vsel %vm524, %v3951, %v3952
        %v3954 = vsel %vm524, %v3950, %v3951
        %v3955 = vsel %vm524, %v3949, %v3950
        %v3956 = vsel %vm524, %v3948, %v3949
        %v3957 = vsel %vm524, %v3947, %v3948
        %v3958 = vsel %vm524, %v3946, %v3947
        %v3959 = vsel %vm524, %v3945, %v3946
        %v3960 = vsel %vm524, %v3944, %v3945
        %v3961 = vsel %vm524, %v3943, %v3944
        %v3962 = vsel %vm524, %v3942, %v3943
        %v3963 = vsel %vm524, %v3941, %v3942
        %v3964 = vsel %vm524, %v3940, %v3941
        %v3965 = vsel %vm524, %v3939, %v3940
        %v3966 = vsel %vm524, %v3938, %v3939
        %v3967 = vsel %vm524, %v3937, %v3938
        %v3968 = vsel %vm524, %v3936, %v3937
        %v3969 = vsel %vm524, %v3935, %v3936
        %v3970 = vsel %vm524, %v3934, %v3935
        %v3971 = vsel %vm524, %v3933, %v3934
        %v3972 = vsel %vm524, %v3932, %v3933
        %v3973 = vsel %vm524, %v3931, %v3932
        %v3974 = vsel %vm524, %v3930, %v3931
        %v3975 = vsel %vm524, %v3929, %v3930
        %v3976 = vsel %vm524, %v3928, %v3929
        %v3977 = vsel %vm524, %v3927, %v3928
        %v3978 = vsel %vm524, %v3926, %v3927
        %v3979 = vsel %vm524, %v3925, %v3926
        %v3980 = vsel %vm524, %v3924, %v3925
        %v3981 = vsel %vm524, %v3923, %v3924
        %v3982 = vsel %vm524, %v3922, %v3923
        %v3983 = vsel %vm524, %v3921, %v3922
        %v3984 = vsel %vm524, %v3920, %v3921
        %v3985 = vsel %vm524, %v3919, %v3920
        %v3986 = vsel %vm524, %v3918, %v3919
        %v3987 = vsel %vm524, %v3917, %v3918
        %v3988 = vsel %vm524, %v3916, %v3917
        %v3989 = vsel %vm524, %v3915, %v3916
        %v3990 = vsel %vm524, %v3914, %v3915
        %v3991 = vsel %vm524, %v3913, %v3914
        %v3992 = vsel %vm524, %v3912, %v3913
        %v3993 = vsel %vm524, %v3911, %v3912
        %v3994 = vsel %vm524, %v3910, %v3911
        %v3995 = vsel %vm524, %v3909, %v3910
        %v3996 = vsel %vm524, %v3908, %v3909
        %v3997 = vsel %vm524, %v3907, %v3908
        %v3998 = vsel %vm524, %v3906, %v3907
        %v3999 = vsel %vm524, %v3905, %v3906
        %v4000 = vsel %vm524, %v3952, %v3905
        %s4001 = scalar_lea.vmem [#allocation3], 48
        %v4002 = vld [vmem:[%s4001] sm:$0xff]
        %v4003 = vld [vmem:[%s4001 + $0x8] sm:$0xff]
        %v4004 = vld [vmem:[%s4001 + $0x10] sm:$0xff]
        %v4005 = vld [vmem:[%s4001 + $0x18] sm:$0xff]
        %v4006 = vld [vmem:[%s4001 + $0x20] sm:$0xff]
        %v4007 = vld [vmem:[%s4001 + $0x28] sm:$0xff]
        %v4008 = vld [vmem:[%s4001 + $0x30] sm:$0xff]
        %v4009 = vld [vmem:[%s4001 + $0x38] sm:$0xff]
        %v4010 = vld [vmem:[%s4001 + $0x40] sm:$0xff]
        %v4011 = vld [vmem:[%s4001 + $0x48] sm:$0xff]
        %v4012 = vld [vmem:[%s4001 + $0x50] sm:$0xff]
        %v4013 = vld [vmem:[%s4001 + $0x58] sm:$0xff]
        %v4014 = vld [vmem:[%s4001 + $0x60] sm:$0xff]
        %v4015 = vld [vmem:[%s4001 + $0x68] sm:$0xff]
        %v4016 = vld [vmem:[%s4001 + $0x70] sm:$0xff]
        %v4017 = vld [vmem:[%s4001 + $0x78] sm:$0xff]
        %v4018 = vld [vmem:[%s4001 + $0x80] sm:$0xff]
        %v4019 = vld [vmem:[%s4001 + $0x88] sm:$0xff]
        %v4020 = vld [vmem:[%s4001 + $0x90] sm:$0xff]
        %v4021 = vld [vmem:[%s4001 + $0x98] sm:$0xff]
        %v4022 = vld [vmem:[%s4001 + $0xa0] sm:$0xff]
        %v4023 = vld [vmem:[%s4001 + $0xa8] sm:$0xff]
        %v4024 = vld [vmem:[%s4001 + $0xb0] sm:$0xff]
        %v4025 = vld [vmem:[%s4001 + $0xb8] sm:$0xff]
        %v4026 = vld [vmem:[%s4001 + $0xc0] sm:$0xff]
        %v4027 = vld [vmem:[%s4001 + $0xc8] sm:$0xff]
        %v4028 = vld [vmem:[%s4001 + $0xd0] sm:$0xff]
        %v4029 = vld [vmem:[%s4001 + $0xd8] sm:$0xff]
        %v4030 = vld [vmem:[%s4001 + $0xe0] sm:$0xff]
        %v4031 = vld [vmem:[%s4001 + $0xe8] sm:$0xff]
        %v4032 = vld [vmem:[%s4001 + $0xf0] sm:$0xff]
        %v4033 = vld [vmem:[%s4001 + $0xf8] sm:$0xff]
        %v4034 = vld [vmem:[%s4001 + $0x100] sm:$0xff]
        %v4035 = vld [vmem:[%s4001 + $0x108] sm:$0xff]
        %v4036 = vld [vmem:[%s4001 + $0x110] sm:$0xff]
        %v4037 = vld [vmem:[%s4001 + $0x118] sm:$0xff]
        %v4038 = vld [vmem:[%s4001 + $0x120] sm:$0xff]
        %v4039 = vld [vmem:[%s4001 + $0x128] sm:$0xff]
        %v4040 = vld [vmem:[%s4001 + $0x130] sm:$0xff]
        %v4041 = vld [vmem:[%s4001 + $0x138] sm:$0xff]
        %v4042 = vld [vmem:[%s4001 + $0x140] sm:$0xff]
        %v4043 = vld [vmem:[%s4001 + $0x148] sm:$0xff]
        %v4044 = vld [vmem:[%s4001 + $0x150] sm:$0xff]
        %v4045 = vld [vmem:[%s4001 + $0x158] sm:$0xff]
        %v4046 = vld [vmem:[%s4001 + $0x160] sm:$0xff]
        %v4047 = vld [vmem:[%s4001 + $0x168] sm:$0xff]
        %v4048 = vld [vmem:[%s4001 + $0x170] sm:$0xff]
        %v4049 = vld [vmem:[%s4001 + $0x178] sm:$0xff]
        %v4050 = vrot.slane %v4002, 7
        %v4051 = vrot.slane %v4003, 7
        %v4052 = vrot.slane %v4004, 7
        %v4053 = vrot.slane %v4005, 7
        %v4054 = vrot.slane %v4006, 7
        %v4055 = vrot.slane %v4007, 7
        %v4056 = vrot.slane %v4008, 7
        %v4057 = vrot.slane %v4009, 7
        %v4058 = vrot.slane %v4010, 7
        %v4059 = vrot.slane %v4011, 7
        %v4060 = vrot.slane %v4012, 7
        %v4061 = vrot.slane %v4013, 7
        %v4062 = vrot.slane %v4014, 7
        %v4063 = vrot.slane %v4015, 7
        %v4064 = vrot.slane %v4016, 7
        %v4065 = vrot.slane %v4017, 7
        %v4066 = vrot.slane %v4018, 7
        %v4067 = vrot.slane %v4019, 7
        %v4068 = vrot.slane %v4020, 7
        %v4069 = vrot.slane %v4021, 7
        %v4070 = vrot.slane %v4022, 7
        %v4071 = vrot.slane %v4023, 7
        %v4072 = vrot.slane %v4024, 7
        %v4073 = vrot.slane %v4025, 7
        %v4074 = vrot.slane %v4026, 7
        %v4075 = vrot.slane %v4027, 7
        %v4076 = vrot.slane %v4028, 7
        %v4077 = vrot.slane %v4029, 7
        %v4078 = vrot.slane %v4030, 7
        %v4079 = vrot.slane %v4031, 7
        %v4080 = vrot.slane %v4032, 7
        %v4081 = vrot.slane %v4033, 7
        %v4082 = vrot.slane %v4034, 7
        %v4083 = vrot.slane %v4035, 7
        %v4084 = vrot.slane %v4036, 7
        %v4085 = vrot.slane %v4037, 7
        %v4086 = vrot.slane %v4038, 7
        %v4087 = vrot.slane %v4039, 7
        %v4088 = vrot.slane %v4040, 7
        %v4089 = vrot.slane %v4041, 7
        %v4090 = vrot.slane %v4042, 7
        %v4091 = vrot.slane %v4043, 7
        %v4092 = vrot.slane %v4044, 7
        %v4093 = vrot.slane %v4045, 7
        %v4094 = vrot.slane %v4046, 7
        %v4095 = vrot.slane %v4047, 7
        %v4096 = vrot.slane %v4048, 7
        %v4097 = vrot.slane %v4049, 7
        %v4098 = vsel %vm427, %v4096, %v4097
        %v4099 = vsel %vm427, %v4095, %v4096
        %v4100 = vsel %vm427, %v4094, %v4095
        %v4101 = vsel %vm427, %v4093, %v4094
        %v4102 = vsel %vm427, %v4092, %v4093
        %v4103 = vsel %vm427, %v4091, %v4092
        %v4104 = vsel %vm427, %v4090, %v4091
        %v4105 = vsel %vm427, %v4089, %v4090
        %v4106 = vsel %vm427, %v4088, %v4089
        %v4107 = vsel %vm427, %v4087, %v4088
        %v4108 = vsel %vm427, %v4086, %v4087
        %v4109 = vsel %vm427, %v4085, %v4086
        %v4110 = vsel %vm427, %v4084, %v4085
        %v4111 = vsel %vm427, %v4083, %v4084
        %v4112 = vsel %vm427, %v4082, %v4083
        %v4113 = vsel %vm427, %v4081, %v4082
        %v4114 = vsel %vm427, %v4080, %v4081
        %v4115 = vsel %vm427, %v4079, %v4080
        %v4116 = vsel %vm427, %v4078, %v4079
        %v4117 = vsel %vm427, %v4077, %v4078
        %v4118 = vsel %vm427, %v4076, %v4077
        %v4119 = vsel %vm427, %v4075, %v4076
        %v4120 = vsel %vm427, %v4074, %v4075
        %v4121 = vsel %vm427, %v4073, %v4074
        %v4122 = vsel %vm427, %v4072, %v4073
        %v4123 = vsel %vm427, %v4071, %v4072
        %v4124 = vsel %vm427, %v4070, %v4071
        %v4125 = vsel %vm427, %v4069, %v4070
        %v4126 = vsel %vm427, %v4068, %v4069
        %v4127 = vsel %vm427, %v4067, %v4068
        %v4128 = vsel %vm427, %v4066, %v4067
        %v4129 = vsel %vm427, %v4065, %v4066
        %v4130 = vsel %vm427, %v4064, %v4065
        %v4131 = vsel %vm427, %v4063, %v4064
        %v4132 = vsel %vm427, %v4062, %v4063
        %v4133 = vsel %vm427, %v4061, %v4062
        %v4134 = vsel %vm427, %v4060, %v4061
        %v4135 = vsel %vm427, %v4059, %v4060
        %v4136 = vsel %vm427, %v4058, %v4059
        %v4137 = vsel %vm427, %v4057, %v4058
        %v4138 = vsel %vm427, %v4056, %v4057
        %v4139 = vsel %vm427, %v4055, %v4056
        %v4140 = vsel %vm427, %v4054, %v4055
        %v4141 = vsel %vm427, %v4053, %v4054
        %v4142 = vsel %vm427, %v4052, %v4053
        %v4143 = vsel %vm427, %v4051, %v4052
        %v4144 = vsel %vm427, %v4050, %v4051
        %v4145 = vsel %vm427, %v4097, %v4050
        %v4146 = vrot.slane %v4002, 1
        %v4147 = vrot.slane %v4003, 1
        %v4148 = vrot.slane %v4004, 1
        %v4149 = vrot.slane %v4005, 1
        %v4150 = vrot.slane %v4006, 1
        %v4151 = vrot.slane %v4007, 1
        %v4152 = vrot.slane %v4008, 1
        %v4153 = vrot.slane %v4009, 1
        %v4154 = vrot.slane %v4010, 1
        %v4155 = vrot.slane %v4011, 1
        %v4156 = vrot.slane %v4012, 1
        %v4157 = vrot.slane %v4013, 1
        %v4158 = vrot.slane %v4014, 1
        %v4159 = vrot.slane %v4015, 1
        %v4160 = vrot.slane %v4016, 1
        %v4161 = vrot.slane %v4017, 1
        %v4162 = vrot.slane %v4018, 1
        %v4163 = vrot.slane %v4019, 1
        %v4164 = vrot.slane %v4020, 1
        %v4165 = vrot.slane %v4021, 1
        %v4166 = vrot.slane %v4022, 1
        %v4167 = vrot.slane %v4023, 1
        %v4168 = vrot.slane %v4024, 1
        %v4169 = vrot.slane %v4025, 1
        %v4170 = vrot.slane %v4026, 1
        %v4171 = vrot.slane %v4027, 1
        %v4172 = vrot.slane %v4028, 1
        %v4173 = vrot.slane %v4029, 1
        %v4174 = vrot.slane %v4030, 1
        %v4175 = vrot.slane %v4031, 1
        %v4176 = vrot.slane %v4032, 1
        %v4177 = vrot.slane %v4033, 1
        %v4178 = vrot.slane %v4034, 1
        %v4179 = vrot.slane %v4035, 1
        %v4180 = vrot.slane %v4036, 1
        %v4181 = vrot.slane %v4037, 1
        %v4182 = vrot.slane %v4038, 1
        %v4183 = vrot.slane %v4039, 1
        %v4184 = vrot.slane %v4040, 1
        %v4185 = vrot.slane %v4041, 1
        %v4186 = vrot.slane %v4042, 1
        %v4187 = vrot.slane %v4043, 1
        %v4188 = vrot.slane %v4044, 1
        %v4189 = vrot.slane %v4045, 1
        %v4190 = vrot.slane %v4046, 1
        %v4191 = vrot.slane %v4047, 1
        %v4192 = vrot.slane %v4048, 1
        %v4193 = vrot.slane %v4049, 1
        %v4194 = vsel %vm524, %v4192, %v4193
        %v4195 = vsel %vm524, %v4191, %v4192
        %v4196 = vsel %vm524, %v4190, %v4191
        %v4197 = vsel %vm524, %v4189, %v4190
        %v4198 = vsel %vm524, %v4188, %v4189
        %v4199 = vsel %vm524, %v4187, %v4188
        %v4200 = vsel %vm524, %v4186, %v4187
        %v4201 = vsel %vm524, %v4185, %v4186
        %v4202 = vsel %vm524, %v4184, %v4185
        %v4203 = vsel %vm524, %v4183, %v4184
        %v4204 = vsel %vm524, %v4182, %v4183
        %v4205 = vsel %vm524, %v4181, %v4182
        %v4206 = vsel %vm524, %v4180, %v4181
        %v4207 = vsel %vm524, %v4179, %v4180
        %v4208 = vsel %vm524, %v4178, %v4179
        %v4209 = vsel %vm524, %v4177, %v4178
        %v4210 = vsel %vm524, %v4176, %v4177
        %v4211 = vsel %vm524, %v4175, %v4176
        %v4212 = vsel %vm524, %v4174, %v4175
        %v4213 = vsel %vm524, %v4173, %v4174
        %v4214 = vsel %vm524, %v4172, %v4173
        %v4215 = vsel %vm524, %v4171, %v4172
        %v4216 = vsel %vm524, %v4170, %v4171
        %v4217 = vsel %vm524, %v4169, %v4170
        %v4218 = vsel %vm524, %v4168, %v4169
        %v4219 = vsel %vm524, %v4167, %v4168
        %v4220 = vsel %vm524, %v4166, %v4167
        %v4221 = vsel %vm524, %v4165, %v4166
        %v4222 = vsel %vm524, %v4164, %v4165
        %v4223 = vsel %vm524, %v4163, %v4164
        %v4224 = vsel %vm524, %v4162, %v4163
        %v4225 = vsel %vm524, %v4161, %v4162
        %v4226 = vsel %vm524, %v4160, %v4161
        %v4227 = vsel %vm524, %v4159, %v4160
        %v4228 = vsel %vm524, %v4158, %v4159
        %v4229 = vsel %vm524, %v4157, %v4158
        %v4230 = vsel %vm524, %v4156, %v4157
        %v4231 = vsel %vm524, %v4155, %v4156
        %v4232 = vsel %vm524, %v4154, %v4155
        %v4233 = vsel %vm524, %v4153, %v4154
        %v4234 = vsel %vm524, %v4152, %v4153
        %v4235 = vsel %vm524, %v4151, %v4152
        %v4236 = vsel %vm524, %v4150, %v4151
        %v4237 = vsel %vm524, %v4149, %v4150
        %v4238 = vsel %vm524, %v4148, %v4149
        %v4239 = vsel %vm524, %v4147, %v4148
        %v4240 = vsel %vm524, %v4146, %v4147
        %v4241 = vsel %vm524, %v4193, %v4146
        %v4242 = vld [vmem:[#allocation4] sm:$0xff]
        %v4243 = vld [vmem:[#allocation4 + $0x8] sm:$0xff]
        %v4244 = vld [vmem:[#allocation4 + $0x10] sm:$0xff]
        %v4245 = vld [vmem:[#allocation4 + $0x18] sm:$0xff]
        %v4246 = vld [vmem:[#allocation4 + $0x20] sm:$0xff]
        %v4247 = vld [vmem:[#allocation4 + $0x28] sm:$0xff]
        %v4248 = vld [vmem:[#allocation4 + $0x30] sm:$0xff]
        %v4249 = vld [vmem:[#allocation4 + $0x38] sm:$0xff]
        %v4250 = vld [vmem:[#allocation4 + $0x40] sm:$0xff]
        %v4251 = vld [vmem:[#allocation4 + $0x48] sm:$0xff]
        %v4252 = vld [vmem:[#allocation4 + $0x50] sm:$0xff]
        %v4253 = vld [vmem:[#allocation4 + $0x58] sm:$0xff]
        %v4254 = vld [vmem:[#allocation4 + $0x60] sm:$0xff]
        %v4255 = vld [vmem:[#allocation4 + $0x68] sm:$0xff]
        %v4256 = vld [vmem:[#allocation4 + $0x70] sm:$0xff]
        %v4257 = vld [vmem:[#allocation4 + $0x78] sm:$0xff]
        %v4258 = vld [vmem:[#allocation4 + $0x80] sm:$0xff]
        %v4259 = vld [vmem:[#allocation4 + $0x88] sm:$0xff]
        %v4260 = vld [vmem:[#allocation4 + $0x90] sm:$0xff]
        %v4261 = vld [vmem:[#allocation4 + $0x98] sm:$0xff]
        %v4262 = vld [vmem:[#allocation4 + $0xa0] sm:$0xff]
        %v4263 = vld [vmem:[#allocation4 + $0xa8] sm:$0xff]
        %v4264 = vld [vmem:[#allocation4 + $0xb0] sm:$0xff]
        %v4265 = vld [vmem:[#allocation4 + $0xb8] sm:$0xff]
        %v4266 = vld [vmem:[#allocation4 + $0xc0] sm:$0xff]
        %v4267 = vld [vmem:[#allocation4 + $0xc8] sm:$0xff]
        %v4268 = vld [vmem:[#allocation4 + $0xd0] sm:$0xff]
        %v4269 = vld [vmem:[#allocation4 + $0xd8] sm:$0xff]
        %v4270 = vld [vmem:[#allocation4 + $0xe0] sm:$0xff]
        %v4271 = vld [vmem:[#allocation4 + $0xe8] sm:$0xff]
        %v4272 = vld [vmem:[#allocation4 + $0xf0] sm:$0xff]
        %v4273 = vld [vmem:[#allocation4 + $0xf8] sm:$0xff]
        %v4274 = vld [vmem:[#allocation4 + $0x100] sm:$0xff]
        %v4275 = vld [vmem:[#allocation4 + $0x108] sm:$0xff]
        %v4276 = vld [vmem:[#allocation4 + $0x110] sm:$0xff]
        %v4277 = vld [vmem:[#allocation4 + $0x118] sm:$0xff]
        %v4278 = vld [vmem:[#allocation4 + $0x120] sm:$0xff]
        %v4279 = vld [vmem:[#allocation4 + $0x128] sm:$0xff]
        %v4280 = vld [vmem:[#allocation4 + $0x130] sm:$0xff]
        %v4281 = vld [vmem:[#allocation4 + $0x138] sm:$0xff]
        %v4282 = vld [vmem:[#allocation4 + $0x140] sm:$0xff]
        %v4283 = vld [vmem:[#allocation4 + $0x148] sm:$0xff]
        %v4284 = vld [vmem:[#allocation4 + $0x150] sm:$0xff]
        %v4285 = vld [vmem:[#allocation4 + $0x158] sm:$0xff]
        %v4286 = vld [vmem:[#allocation4 + $0x160] sm:$0xff]
        %v4287 = vld [vmem:[#allocation4 + $0x168] sm:$0xff]
        %v4288 = vld [vmem:[#allocation4 + $0x170] sm:$0xff]
        %v4289 = vld [vmem:[#allocation4 + $0x178] sm:$0xff]
        %v4290 = vld [vmem:[#allocation4 + $0x180] sm:$0xff]
        %v4291 = vld [vmem:[#allocation4 + $0x188] sm:$0xff]
        %v4292 = vld [vmem:[#allocation4 + $0x190] sm:$0xff]
        %v4293 = vld [vmem:[#allocation4 + $0x198] sm:$0xff]
        %v4294 = vld [vmem:[#allocation4 + $0x1a0] sm:$0xff]
        %v4295 = vld [vmem:[#allocation4 + $0x1a8] sm:$0xff]
        %v4296 = vld [vmem:[#allocation4 + $0x1b0] sm:$0xff]
        %v4297 = vld [vmem:[#allocation4 + $0x1b8] sm:$0xff]
        %v4298 = vld [vmem:[#allocation4 + $0x1c0] sm:$0xff]
        %v4299 = vld [vmem:[#allocation4 + $0x1c8] sm:$0xff]
        %v4300 = vld [vmem:[#allocation4 + $0x1d0] sm:$0xff]
        %v4301 = vld [vmem:[#allocation4 + $0x1d8] sm:$0xff]
        %v4302 = vld [vmem:[#allocation4 + $0x1e0] sm:$0xff]
        %v4303 = vld [vmem:[#allocation4 + $0x1e8] sm:$0xff]
        %v4304 = vld [vmem:[#allocation4 + $0x1f0] sm:$0xff]
        %v4305 = vld [vmem:[#allocation4 + $0x1f8] sm:$0xff]
        %v4306 = vld [vmem:[#allocation4 + $0x200] sm:$0xff]
        %v4307 = vld [vmem:[#allocation4 + $0x208] sm:$0xff]
        %v4308 = vld [vmem:[#allocation4 + $0x210] sm:$0xff]
        %v4309 = vld [vmem:[#allocation4 + $0x218] sm:$0xff]
        %v4310 = vld [vmem:[#allocation4 + $0x220] sm:$0xff]
        %v4311 = vld [vmem:[#allocation4 + $0x228] sm:$0xff]
        %v4312 = vld [vmem:[#allocation4 + $0x230] sm:$0xff]
        %v4313 = vld [vmem:[#allocation4 + $0x238] sm:$0xff]
        %v4314 = vld [vmem:[#allocation4 + $0x240] sm:$0xff]
        %v4315 = vld [vmem:[#allocation4 + $0x248] sm:$0xff]
        %v4316 = vld [vmem:[#allocation4 + $0x250] sm:$0xff]
        %v4317 = vld [vmem:[#allocation4 + $0x258] sm:$0xff]
        %v4318 = vld [vmem:[#allocation4 + $0x260] sm:$0xff]
        %v4319 = vld [vmem:[#allocation4 + $0x268] sm:$0xff]
        %v4320 = vld [vmem:[#allocation4 + $0x270] sm:$0xff]
        %v4321 = vld [vmem:[#allocation4 + $0x278] sm:$0xff]
        %v4322 = vld [vmem:[#allocation4 + $0x280] sm:$0xff]
        %v4323 = vld [vmem:[#allocation4 + $0x288] sm:$0xff]
        %v4324 = vld [vmem:[#allocation4 + $0x290] sm:$0xff]
        %v4325 = vld [vmem:[#allocation4 + $0x298] sm:$0xff]
        %v4326 = vld [vmem:[#allocation4 + $0x2a0] sm:$0xff]
        %v4327 = vld [vmem:[#allocation4 + $0x2a8] sm:$0xff]
        %v4328 = vld [vmem:[#allocation4 + $0x2b0] sm:$0xff]
        %v4329 = vld [vmem:[#allocation4 + $0x2b8] sm:$0xff]
        %v4330 = vld [vmem:[#allocation4 + $0x2c0] sm:$0xff]
        %v4331 = vld [vmem:[#allocation4 + $0x2c8] sm:$0xff]
        %v4332 = vld [vmem:[#allocation4 + $0x2d0] sm:$0xff]
        %v4333 = vld [vmem:[#allocation4 + $0x2d8] sm:$0xff]
        %v4334 = vld [vmem:[#allocation4 + $0x2e0] sm:$0xff]
        %v4335 = vld [vmem:[#allocation4 + $0x2e8] sm:$0xff]
        %v4336 = vld [vmem:[#allocation4 + $0x2f0] sm:$0xff]
        %v4337 = vld [vmem:[#allocation4 + $0x2f8] sm:$0xff]
        %v4338 = vld [vmem:[#allocation4 + $0x300] sm:$0xff]
        %v4339 = vld [vmem:[#allocation4 + $0x308] sm:$0xff]
        %v4340 = vld [vmem:[#allocation4 + $0x310] sm:$0xff]
        %v4341 = vld [vmem:[#allocation4 + $0x318] sm:$0xff]
        %v4342 = vld [vmem:[#allocation4 + $0x320] sm:$0xff]
        %v4343 = vld [vmem:[#allocation4 + $0x328] sm:$0xff]
        %v4344 = vld [vmem:[#allocation4 + $0x330] sm:$0xff]
        %v4345 = vld [vmem:[#allocation4 + $0x338] sm:$0xff]
        %v4346 = vld [vmem:[#allocation4 + $0x340] sm:$0xff]
        %v4347 = vld [vmem:[#allocation4 + $0x348] sm:$0xff]
        %v4348 = vld [vmem:[#allocation4 + $0x350] sm:$0xff]
        %v4349 = vld [vmem:[#allocation4 + $0x358] sm:$0xff]
        %v4350 = vld [vmem:[#allocation4 + $0x360] sm:$0xff]
        %v4351 = vld [vmem:[#allocation4 + $0x368] sm:$0xff]
        %v4352 = vld [vmem:[#allocation4 + $0x370] sm:$0xff]
        %v4353 = vld [vmem:[#allocation4 + $0x378] sm:$0xff]
        %v4354 = vld [vmem:[#allocation4 + $0x380] sm:$0xff]
        %v4355 = vld [vmem:[#allocation4 + $0x388] sm:$0xff]
        %v4356 = vld [vmem:[#allocation4 + $0x390] sm:$0xff]
        %v4357 = vld [vmem:[#allocation4 + $0x398] sm:$0xff]
        %v4358 = vld [vmem:[#allocation4 + $0x3a0] sm:$0xff]
        %v4359 = vld [vmem:[#allocation4 + $0x3a8] sm:$0xff]
        %v4360 = vld [vmem:[#allocation4 + $0x3b0] sm:$0xff]
        %v4361 = vld [vmem:[#allocation4 + $0x3b8] sm:$0xff]
        %v4362 = vld [vmem:[#allocation4 + $0x3c0] sm:$0xff]
        %v4363 = vld [vmem:[#allocation4 + $0x3c8] sm:$0xff]
        %v4364 = vld [vmem:[#allocation4 + $0x3d0] sm:$0xff]
        %v4365 = vld [vmem:[#allocation4 + $0x3d8] sm:$0xff]
        %v4366 = vld [vmem:[#allocation4 + $0x3e0] sm:$0xff]
        %v4367 = vld [vmem:[#allocation4 + $0x3e8] sm:$0xff]
        %v4368 = vld [vmem:[#allocation4 + $0x3f0] sm:$0xff]
        %v4369 = vld [vmem:[#allocation4 + $0x3f8] sm:$0xff]
        %v4370 = vld [vmem:[#allocation4 + $0x400] sm:$0xff]
        %v4371 = vld [vmem:[#allocation4 + $0x408] sm:$0xff]
        %v4372 = vld [vmem:[#allocation4 + $0x410] sm:$0xff]
        %v4373 = vld [vmem:[#allocation4 + $0x418] sm:$0xff]
        %v4374 = vld [vmem:[#allocation4 + $0x420] sm:$0xff]
        %v4375 = vld [vmem:[#allocation4 + $0x428] sm:$0xff]
        %v4376 = vld [vmem:[#allocation4 + $0x430] sm:$0xff]
        %v4377 = vld [vmem:[#allocation4 + $0x438] sm:$0xff]
        %v4378 = vld [vmem:[#allocation4 + $0x440] sm:$0xff]
        %v4379 = vld [vmem:[#allocation4 + $0x448] sm:$0xff]
        %v4380 = vld [vmem:[#allocation4 + $0x450] sm:$0xff]
        %v4381 = vld [vmem:[#allocation4 + $0x458] sm:$0xff]
        %v4382 = vld [vmem:[#allocation4 + $0x460] sm:$0xff]
        %v4383 = vld [vmem:[#allocation4 + $0x468] sm:$0xff]
        %v4384 = vld [vmem:[#allocation4 + $0x470] sm:$0xff]
        %v4385 = vld [vmem:[#allocation4 + $0x478] sm:$0xff]
        %v4386 = vld [vmem:[%s4] sm:$0x1]
        %v4388 = vlaneseq
        %v4389 = vshrl.u32 %v4388, 7
        %v4390 = vsub.s32 0, %v4389
        %v4391 = vrot.slane %v4386, %v4390
        %4393 = vmatprep.subr.mxu0 0.0
        %4394 = vmatpush1.msra.mxu0 %v4242
        %4395 = vmatprep.subr.mxu0 0.0
        %4396 = vmatpush1.msra.mxu0 %v4243
        %4397 = vmatprep.subr.mxu0 0.0
        %4398 = vmatpush1.msra.mxu0 %v4244
        %4399 = vmatprep.subr.mxu0 0.0
        %4400 = vmatpush1.msra.mxu0 %v4245
        %4401 = vmatprep.subr.mxu0 0.0
        %4402 = vmatpush1.msra.mxu0 %v4246
        %4403 = vmatprep.subr.mxu0 0.0
        %4404 = vmatpush1.msra.mxu0 %v4247
        %4405 = vmatprep.subr.mxu0 0.0
        %4406 = vmatpush1.msra.mxu0 %v4248
        %4407 = vmatprep.subr.mxu0 0.0
        %4408 = vmatpush1.msra.mxu0 %v4249
        %4409 = vmatprep.subr.mxu0 0.0
        %4410 = vmatpush1.msra.mxu0 %v4250
        %4411 = vmatprep.subr.mxu0 0.0
        %4412 = vmatpush1.msra.mxu0 %v4251
        %4413 = vmatprep.subr.mxu0 0.0
        %4414 = vmatpush1.msra.mxu0 %v4252
        %4415 = vmatprep.subr.mxu0 0.0
        %4416 = vmatpush1.msra.mxu0 %v4253
        %4417 = vmatprep.subr.mxu0 0.0
        %4418 = vmatpush1.msra.mxu0 %v4254
        %4419 = vmatprep.subr.mxu0 0.0
        %4420 = vmatpush1.msra.mxu0 %v4255
        %4421 = vmatprep.subr.mxu0 0.0
        %4422 = vmatpush1.msra.mxu0 %v4256
        %4423 = vmatprep.subr.mxu0 0.0
        %4424 = vmatpush1.msra.mxu0 %v4257
        %4425 = vmatprep.subr.mxu0 0.0
        %4426 = vmatpush1.msra.mxu0 %v4258
        %4427 = vmatprep.subr.mxu0 0.0
        %4428 = vmatpush1.msra.mxu0 %v4259
        %4429 = vmatprep.subr.mxu0 0.0
        %4430 = vmatpush1.msra.mxu0 %v4260
        %4431 = vmatprep.subr.mxu0 0.0
        %4432 = vmatpush1.msra.mxu0 %v4261
        %4433 = vmatprep.subr.mxu0 0.0
        %4434 = vmatpush1.msra.mxu0 %v4262
        %4435 = vmatprep.subr.mxu0 0.0
        %4436 = vmatpush1.msra.mxu0 %v4263
        %4437 = vmatprep.subr.mxu0 0.0
        %4438 = vmatpush1.msra.mxu0 %v4264
        %4439 = vmatprep.subr.mxu0 0.0
        %4440 = vmatpush1.msra.mxu0 %v4265
        %4441 = vmatprep.subr.mxu0 0.0
        %4442 = vmatpush1.msra.mxu0 %v4266
        %4443 = vmatprep.subr.mxu0 0.0
        %4444 = vmatpush1.msra.mxu0 %v4267
        %4445 = vmatprep.subr.mxu0 0.0
        %4446 = vmatpush1.msra.mxu0 %v4268
        %4447 = vmatprep.subr.mxu0 0.0
        %4448 = vmatpush1.msra.mxu0 %v4269
        %4449 = vmatprep.subr.mxu0 0.0
        %4450 = vmatpush1.msra.mxu0 %v4270
        %4451 = vmatprep.subr.mxu0 0.0
        %4452 = vmatpush1.msra.mxu0 %v4271
        %4453 = vmatprep.subr.mxu0 0.0
        %4454 = vmatpush1.msra.mxu0 %v4272
        %4455 = vmatprep.subr.mxu0 0.0
        %4456 = vmatpush1.msra.mxu0 %v4273
        %4457 = vmatprep.mubr.f32.mxu0 %v3521
        %4458 = vmatmul.mubr.f32.gmra.mrb[0].mxu0 %v3664
        %v4459 = vpop.f32.mrb[0].mxu0
        %v4460 = vadd.f32 %v4391, %v4459
        %v4461 = vpop.f32.mrb[0].mxu0
        %4462 = vmatprep.mubr.f32.mxu0 %v3522
        %4463 = vmatmul.mubr.f32.gmra.mrb[0].mxu0 %v3663
        %v4464 = vpop.f32.mrb[0].mxu0
        %v4465 = vadd.f32 %v4391, %v4464
        %v4466 = vpop.f32.mrb[0].mxu0
        %4467 = vmatprep.mubr.f32.mxu0 %v3523
        %4468 = vmatmul.mubr.f32.gmra.mrb[0].mxu0 %v3662
        %v4469 = vpop.f32.mrb[0].mxu0
        %v4470 = vpop.f32.mrb[0].mxu0
        %4471 = vmatprep.mubr.f32.mxu0 %v3524
        %4472 = vmatmul.mubr.f32.gmra.mrb[0].mxu0 %v3661
        %v4473 = vpop.f32.mrb[0].mxu0
        %v4474 = vadd.f32 %v4391, %v4473
        %v4475 = vpop.f32.mrb[0].mxu0
        %4476 = vmatprep.mubr.f32.mxu0 %v3525
        %4477 = vmatmul.mubr.f32.gmra.mrb[0].mxu0 %v3660
        %v4478 = vpop.f32.mrb[0].mxu0
        %v4479 = vadd.f32 %v4391, %v4478
        %v4480 = vpop.f32.mrb[0].mxu0
        %4481 = vmatprep.mubr.f32.mxu0 %v3526
        %4482 = vmatmul.mubr.f32.gmra.mrb[0].mxu0 %v3659
        %v4483 = vpop.f32.mrb[0].mxu0
        %v4484 = vpop.f32.mrb[0].mxu0
        %4485 = vmatprep.mubr.f32.mxu0 %v3527
        %4486 = vmatmul.mubr.f32.gmra.mrb[0].mxu0 %v3658
        %v4487 = vpop.f32.mrb[0].mxu0
        %v4488 = vadd.f32 %v4391, %v4487
        %v4489 = vpop.f32.mrb[0].mxu0
        %4490 = vmatprep.mubr.f32.mxu0 %v3528
        %4491 = vmatmul.mubr.f32.gmra.mrb[0].mxu0 %v3657
        %v4492 = vpop.f32.mrb[0].mxu0
        %v4493 = vadd.f32 %v4391, %v4492
        %v4494 = vpop.f32.mrb[0].mxu0
        %4495 = vmatprep.mubr.f32.mxu0 %v3529
        %4496 = vmatmul.mubr.f32.gmra.mrb[0].mxu0 %v3656
        %v4497 = vpop.f32.mrb[0].mxu0
        %v4498 = vpop.f32.mrb[0].mxu0
        %4499 = vmatprep.mubr.f32.mxu0 %v3530
        %4500 = vmatmul.mubr.f32.gmra.mrb[0].mxu0 %v3655
        %v4501 = vpop.f32.mrb[0].mxu0
        %v4502 = vadd.f32 %v4391, %v4501
        %v4503 = vpop.f32.mrb[0].mxu0
        %4504 = vmatprep.mubr.f32.mxu0 %v3531
        %4505 = vmatmul.mubr.f32.gmra.mrb[0].mxu0 %v3654
        %v4506 = vpop.f32.mrb[0].mxu0
        %v4507 = vadd.f32 %v4391, %v4506
        %v4508 = vpop.f32.mrb[0].mxu0
        %4509 = vmatprep.mubr.f32.mxu0 %v3532
        %4510 = vmatmul.mubr.f32.gmra.mrb[0].mxu0 %v3653
        %v4511 = vpop.f32.mrb[0].mxu0
        %v4512 = vpop.f32.mrb[0].mxu0
        %4513 = vmatprep.mubr.f32.mxu0 %v3533
        %4514 = vmatmul.mubr.f32.gmra.mrb[0].mxu0 %v3652
        %v4515 = vpop.f32.mrb[0].mxu0
        %v4516 = vadd.f32 %v4391, %v4515
        %v4517 = vpop.f32.mrb[0].mxu0
        %4518 = vmatprep.mubr.f32.mxu0 %v3534
        %4519 = vmatmul.mubr.f32.gmra.mrb[0].mxu0 %v3651
        %v4520 = vpop.f32.mrb[0].mxu0
        %v4521 = vadd.f32 %v4391, %v4520
        %v4522 = vpop.f32.mrb[0].mxu0
        %4523 = vmatprep.mubr.f32.mxu0 %v3535
        %4524 = vmatmul.mubr.f32.gmra.mrb[0].mxu0 %v3650
        %v4525 = vpop.f32.mrb[0].mxu0
        %v4526 = vpop.f32.mrb[0].mxu0
        %4527 = vmatprep.mubr.f32.mxu0 %v3536
        %4528 = vmatmul.mubr.f32.gmra.mrb[0].mxu0 %v3649
        %v4529 = vpop.f32.mrb[0].mxu0
        %v4530 = vadd.f32 %v4391, %v4529
        %v4531 = vpop.f32.mrb[0].mxu0
        %4532 = vmatprep.mubr.f32.mxu0 %v3537
        %4533 = vmatmul.mubr.f32.gmra.mrb[0].mxu0 %v3648
        %v4534 = vpop.f32.mrb[0].mxu0
        %v4535 = vadd.f32 %v4391, %v4534
        %v4536 = vpop.f32.mrb[0].mxu0
        %4537 = vmatprep.mubr.f32.mxu0 %v3538
        %4538 = vmatmul.mubr.f32.gmra.mrb[0].mxu0 %v3647
        %v4539 = vpop.f32.mrb[0].mxu0
        %v4540 = vpop.f32.mrb[0].mxu0
        %4541 = vmatprep.mubr.f32.mxu0 %v3539
        %4542 = vmatmul.mubr.f32.gmra.mrb[0].mxu0 %v3646
        %v4543 = vpop.f32.mrb[0].mxu0
        %v4544 = vadd.f32 %v4391, %v4543
        %v4545 = vpop.f32.mrb[0].mxu0
        %4546 = vmatprep.mubr.f32.mxu0 %v3540
        %4547 = vmatmul.mubr.f32.gmra.mrb[0].mxu0 %v3645
        %v4548 = vpop.f32.mrb[0].mxu0
        %v4549 = vadd.f32 %v4391, %v4548
        %v4550 = vpop.f32.mrb[0].mxu0
        %4551 = vmatprep.mubr.f32.mxu0 %v3541
        %4552 = vmatmul.mubr.f32.gmra.mrb[0].mxu0 %v3644
        %v4553 = vpop.f32.mrb[0].mxu0
        %v4554 = vpop.f32.mrb[0].mxu0
        %4555 = vmatprep.mubr.f32.mxu0 %v3542
        %4556 = vmatmul.mubr.f32.gmra.mrb[0].mxu0 %v3643
        %v4557 = vpop.f32.mrb[0].mxu0
        %v4558 = vadd.f32 %v4391, %v4557
        %v4559 = vpop.f32.mrb[0].mxu0
        %4560 = vmatprep.mubr.f32.mxu0 %v3543
        %4561 = vmatmul.mubr.f32.gmra.mrb[0].mxu0 %v3642
        %v4562 = vpop.f32.mrb[0].mxu0
        %v4563 = vadd.f32 %v4391, %v4562
        %v4564 = vpop.f32.mrb[0].mxu0
        %4565 = vmatprep.mubr.f32.mxu0 %v3544
        %4566 = vmatmul.mubr.f32.gmra.mrb[0].mxu0 %v3641
        %v4567 = vpop.f32.mrb[0].mxu0
        %v4568 = vpop.f32.mrb[0].mxu0
        %4569 = vmatprep.mubr.f32.mxu0 %v3545
        %4570 = vmatmul.mubr.f32.gmra.mrb[0].mxu0 %v3640
        %v4571 = vpop.f32.mrb[0].mxu0
        %v4572 = vadd.f32 %v4391, %v4571
        %v4573 = vpop.f32.mrb[0].mxu0
        %4574 = vmatprep.mubr.f32.mxu0 %v3546
        %4575 = vmatmul.mubr.f32.gmra.mrb[0].mxu0 %v3639
        %v4576 = vpop.f32.mrb[0].mxu0
        %v4577 = vadd.f32 %v4391, %v4576
        %v4578 = vpop.f32.mrb[0].mxu0
        %4579 = vmatprep.mubr.f32.mxu0 %v3547
        %4580 = vmatmul.mubr.f32.gmra.mrb[0].mxu0 %v3638
        %v4581 = vpop.f32.mrb[0].mxu0
        %v4582 = vpop.f32.mrb[0].mxu0
        %4583 = vmatprep.mubr.f32.mxu0 %v3548
        %4584 = vmatmul.mubr.f32.gmra.mrb[0].mxu0 %v3637
        %v4585 = vpop.f32.mrb[0].mxu0
        %v4586 = vadd.f32 %v4391, %v4585
        %v4587 = vpop.f32.mrb[0].mxu0
        %4588 = vmatprep.mubr.f32.mxu0 %v3549
        %4589 = vmatmul.mubr.f32.gmra.mrb[0].mxu0 %v3636
        %v4590 = vpop.f32.mrb[0].mxu0
        %v4591 = vadd.f32 %v4391, %v4590
        %v4592 = vpop.f32.mrb[0].mxu0
        %4593 = vmatprep.mubr.f32.mxu0 %v3550
        %4594 = vmatmul.mubr.f32.gmra.mrb[0].mxu0 %v3635
        %v4595 = vpop.f32.mrb[0].mxu0
        %v4596 = vpop.f32.mrb[0].mxu0
        %4597 = vmatprep.mubr.f32.mxu0 %v3551
        %4598 = vmatmul.mubr.f32.gmra.mrb[0].mxu0 %v3634
        %v4599 = vpop.f32.mrb[0].mxu0
        %v4600 = vadd.f32 %v4391, %v4599
        %v4601 = vpop.f32.mrb[0].mxu0
        %4602 = vmatprep.mubr.f32.mxu0 %v3552
        %4603 = vmatmul.mubr.f32.gmra.mrb[0].mxu0 %v3633
        %v4604 = vpop.f32.mrb[0].mxu0
        %v4605 = vadd.f32 %v4391, %v4604
        %v4606 = vpop.f32.mrb[0].mxu0
        %4607 = vmatprep.mubr.f32.mxu0 %v3553
        %4608 = vmatmul.mubr.f32.gmra.mrb[0].mxu0 %v3632
        %v4609 = vpop.f32.mrb[0].mxu0
        %v4610 = vpop.f32.mrb[0].mxu0
        %4611 = vmatprep.mubr.f32.mxu0 %v3554
        %4612 = vmatmul.mubr.f32.gmra.mrb[0].mxu0 %v3631
        %v4613 = vpop.f32.mrb[0].mxu0
        %v4614 = vadd.f32 %v4391, %v4613
        %v4615 = vpop.f32.mrb[0].mxu0
        %4616 = vmatprep.mubr.f32.mxu0 %v3555
        %4617 = vmatmul.mubr.f32.gmra.mrb[0].mxu0 %v3630
        %v4618 = vpop.f32.mrb[0].mxu0
        %v4619 = vadd.f32 %v4391, %v4618
        %v4620 = vpop.f32.mrb[0].mxu0
        %4621 = vmatprep.mubr.f32.mxu0 %v3556
        %4622 = vmatmul.mubr.f32.gmra.mrb[0].mxu0 %v3629
        %v4623 = vpop.f32.mrb[0].mxu0
        %v4624 = vpop.f32.mrb[0].mxu0
        %4625 = vmatprep.mubr.f32.mxu0 %v3557
        %4626 = vmatmul.mubr.f32.gmra.mrb[0].mxu0 %v3628
        %v4627 = vpop.f32.mrb[0].mxu0
        %v4628 = vadd.f32 %v4391, %v4627
        %v4629 = vpop.f32.mrb[0].mxu0
        %4630 = vmatprep.mubr.f32.mxu0 %v3558
        %4631 = vmatmul.mubr.f32.gmra.mrb[0].mxu0 %v3627
        %v4632 = vpop.f32.mrb[0].mxu0
        %v4633 = vadd.f32 %v4391, %v4632
        %v4634 = vpop.f32.mrb[0].mxu0
        %4635 = vmatprep.mubr.f32.mxu0 %v3559
        %4636 = vmatmul.mubr.f32.gmra.mrb[0].mxu0 %v3626
        %v4637 = vpop.f32.mrb[0].mxu0
        %v4638 = vpop.f32.mrb[0].mxu0
        %4639 = vmatprep.mubr.f32.mxu0 %v3560
        %4640 = vmatmul.mubr.f32.gmra.mrb[0].mxu0 %v3625
        %v4641 = vpop.f32.mrb[0].mxu0
        %v4642 = vadd.f32 %v4391, %v4641
        %v4643 = vpop.f32.mrb[0].mxu0
        %4644 = vmatprep.mubr.f32.mxu0 %v3561
        %4645 = vmatmul.mubr.f32.gmra.mrb[0].mxu0 %v3624
        %v4646 = vpop.f32.mrb[0].mxu0
        %v4647 = vadd.f32 %v4391, %v4646
        %v4648 = vpop.f32.mrb[0].mxu0
        %4649 = vmatprep.mubr.f32.mxu0 %v3562
        %4650 = vmatmul.mubr.f32.gmra.mrb[0].mxu0 %v3623
        %v4651 = vpop.f32.mrb[0].mxu0
        %v4652 = vpop.f32.mrb[0].mxu0
        %4653 = vmatprep.mubr.f32.mxu0 %v3563
        %4654 = vmatmul.mubr.f32.gmra.mrb[0].mxu0 %v3622
        %v4655 = vpop.f32.mrb[0].mxu0
        %v4656 = vadd.f32 %v4391, %v4655
        %v4657 = vpop.f32.mrb[0].mxu0
        %4658 = vmatprep.mubr.f32.mxu0 %v3564
        %4659 = vmatmul.mubr.f32.gmra.mrb[0].mxu0 %v3621
        %v4660 = vpop.f32.mrb[0].mxu0
        %v4661 = vadd.f32 %v4391, %v4660
        %v4662 = vpop.f32.mrb[0].mxu0
        %4663 = vmatprep.mubr.f32.mxu0 %v3565
        %4664 = vmatmul.mubr.f32.gmra.mrb[0].mxu0 %v3620
        %v4665 = vpop.f32.mrb[0].mxu0
        %v4666 = vpop.f32.mrb[0].mxu0
        %4667 = vmatprep.mubr.f32.mxu0 %v3566
        %4668 = vmatmul.mubr.f32.gmra.mrb[0].mxu0 %v3619
        %v4669 = vpop.f32.mrb[0].mxu0
        %v4670 = vadd.f32 %v4391, %v4669
        %v4671 = vpop.f32.mrb[0].mxu0
        %4672 = vmatprep.mubr.f32.mxu0 %v3567
        %4673 = vmatmul.mubr.f32.gmra.mrb[0].mxu0 %v3618
        %v4674 = vpop.f32.mrb[0].mxu0
        %v4675 = vadd.f32 %v4391, %v4674
        %v4676 = vpop.f32.mrb[0].mxu0
        %4677 = vmatprep.mubr.f32.mxu0 %v3568
        %4678 = vmatmul.mubr.f32.gmra.mrb[0].mxu0 %v3617
        %v4679 = vpop.f32.mrb[0].mxu0
        %v4680 = vpop.f32.mrb[0].mxu0
        %4681 = vdwg.mxu0
        %4682 = vmatprep.subr.mxu0 0.0
        %4683 = vmatpush1.msra.mxu0 %v4274
        %4684 = vmatprep.subr.mxu0 0.0
        %4685 = vmatpush1.msra.mxu0 %v4275
        %4686 = vmatprep.subr.mxu0 0.0
        %4687 = vmatpush1.msra.mxu0 %v4276
        %4688 = vmatprep.subr.mxu0 0.0
        %4689 = vmatpush1.msra.mxu0 %v4277
        %4690 = vmatprep.subr.mxu0 0.0
        %4691 = vmatpush1.msra.mxu0 %v4278
        %4692 = vmatprep.subr.mxu0 0.0
        %4693 = vmatpush1.msra.mxu0 %v4279
        %4694 = vmatprep.subr.mxu0 0.0
        %4695 = vmatpush1.msra.mxu0 %v4280
        %4696 = vmatprep.subr.mxu0 0.0
        %4697 = vmatpush1.msra.mxu0 %v4281
        %4698 = vmatprep.subr.mxu0 0.0
        %4699 = vmatpush1.msra.mxu0 %v4282
        %4700 = vmatprep.subr.mxu0 0.0
        %4701 = vmatpush1.msra.mxu0 %v4283
        %4702 = vmatprep.subr.mxu0 0.0
        %4703 = vmatpush1.msra.mxu0 %v4284
        %4704 = vmatprep.subr.mxu0 0.0
        %4705 = vmatpush1.msra.mxu0 %v4285
        %4706 = vmatprep.subr.mxu0 0.0
        %4707 = vmatpush1.msra.mxu0 %v4286
        %4708 = vmatprep.subr.mxu0 0.0
        %4709 = vmatpush1.msra.mxu0 %v4287
        %4710 = vmatprep.subr.mxu0 0.0
        %4711 = vmatpush1.msra.mxu0 %v4288
        %4712 = vmatprep.subr.mxu0 0.0
        %4713 = vmatpush1.msra.mxu0 %v4289
        %4714 = vmatprep.subr.mxu0 0.0
        %4715 = vmatpush1.msra.mxu0 %v4290
        %4716 = vmatprep.subr.mxu0 0.0
        %4717 = vmatpush1.msra.mxu0 %v4291
        %4718 = vmatprep.subr.mxu0 0.0
        %4719 = vmatpush1.msra.mxu0 %v4292
        %4720 = vmatprep.subr.mxu0 0.0
        %4721 = vmatpush1.msra.mxu0 %v4293
        %4722 = vmatprep.subr.mxu0 0.0
        %4723 = vmatpush1.msra.mxu0 %v4294
        %4724 = vmatprep.subr.mxu0 0.0
        %4725 = vmatpush1.msra.mxu0 %v4295
        %4726 = vmatprep.subr.mxu0 0.0
        %4727 = vmatpush1.msra.mxu0 %v4296
        %4728 = vmatprep.subr.mxu0 0.0
        %4729 = vmatpush1.msra.mxu0 %v4297
        %4730 = vmatprep.subr.mxu0 0.0
        %4731 = vmatpush1.msra.mxu0 %v4298
        %4732 = vmatprep.subr.mxu0 0.0
        %4733 = vmatpush1.msra.mxu0 %v4299
        %4734 = vmatprep.subr.mxu0 0.0
        %4735 = vmatpush1.msra.mxu0 %v4300
        %4736 = vmatprep.subr.mxu0 0.0
        %4737 = vmatpush1.msra.mxu0 %v4301
        %4738 = vmatprep.subr.mxu0 0.0
        %4739 = vmatpush1.msra.mxu0 %v4302
        %4740 = vmatprep.subr.mxu0 0.0
        %4741 = vmatpush1.msra.mxu0 %v4303
        %4742 = vmatprep.subr.mxu0 0.0
        %4743 = vmatpush1.msra.mxu0 %v4304
        %4744 = vmatprep.subr.mxu0 0.0
        %4745 = vmatpush1.msra.mxu0 %v4305
        %4746 = vmatprep.mubr.f32.mxu0 %v3904
        %4747 = vmatmul.mubr.f32.gmra.mrb[0].mxu0 %v3759
        %v4748 = vpop.f32.mrb[0].mxu0
        %v4749 = vadd.f32 %v4460, %v4748
        %v4750 = vpop.f32.mrb[0].mxu0
        %4751 = vmatprep.mubr.f32.mxu0 %v3903
        %4752 = vmatmul.mubr.f32.gmra.mrb[0].mxu0 %v3758
        %v4753 = vpop.f32.mrb[0].mxu0
        %v4754 = vadd.f32 %v4465, %v4753
        %v4755 = vpop.f32.mrb[0].mxu0
        %4756 = vmatprep.mubr.f32.mxu0 %v3902
        %4757 = vmatmul.mubr.f32.gmra.mrb[0].mxu0 %v3757
        %v4758 = vpop.f32.mrb[0].mxu0
        %v4759 = vpop.f32.mrb[0].mxu0
        %4760 = vmatprep.mubr.f32.mxu0 %v3901
        %4761 = vmatmul.mubr.f32.gmra.mrb[0].mxu0 %v3756
        %v4762 = vpop.f32.mrb[0].mxu0
        %v4763 = vadd.f32 %v4474, %v4762
        %v4764 = vpop.f32.mrb[0].mxu0
        %4765 = vmatprep.mubr.f32.mxu0 %v3900
        %4766 = vmatmul.mubr.f32.gmra.mrb[0].mxu0 %v3755
        %v4767 = vpop.f32.mrb[0].mxu0
        %v4768 = vadd.f32 %v4479, %v4767
        %v4769 = vpop.f32.mrb[0].mxu0
        %4770 = vmatprep.mubr.f32.mxu0 %v3899
        %4771 = vmatmul.mubr.f32.gmra.mrb[0].mxu0 %v3754
        %v4772 = vpop.f32.mrb[0].mxu0
        %v4773 = vpop.f32.mrb[0].mxu0
        %4774 = vmatprep.mubr.f32.mxu0 %v3898
        %4775 = vmatmul.mubr.f32.gmra.mrb[0].mxu0 %v3753
        %v4776 = vpop.f32.mrb[0].mxu0
        %v4777 = vadd.f32 %v4488, %v4776
        %v4778 = vpop.f32.mrb[0].mxu0
        %4779 = vmatprep.mubr.f32.mxu0 %v3897
        %4780 = vmatmul.mubr.f32.gmra.mrb[0].mxu0 %v3752
        %v4781 = vpop.f32.mrb[0].mxu0
        %v4782 = vadd.f32 %v4493, %v4781
        %v4783 = vpop.f32.mrb[0].mxu0
        %4784 = vmatprep.mubr.f32.mxu0 %v3896
        %4785 = vmatmul.mubr.f32.gmra.mrb[0].mxu0 %v3751
        %v4786 = vpop.f32.mrb[0].mxu0
        %v4787 = vpop.f32.mrb[0].mxu0
        %4788 = vmatprep.mubr.f32.mxu0 %v3895
        %4789 = vmatmul.mubr.f32.gmra.mrb[0].mxu0 %v3750
        %v4790 = vpop.f32.mrb[0].mxu0
        %v4791 = vadd.f32 %v4502, %v4790
        %v4792 = vpop.f32.mrb[0].mxu0
        %4793 = vmatprep.mubr.f32.mxu0 %v3894
        %4794 = vmatmul.mubr.f32.gmra.mrb[0].mxu0 %v3749
        %v4795 = vpop.f32.mrb[0].mxu0
        %v4796 = vadd.f32 %v4507, %v4795
        %v4797 = vpop.f32.mrb[0].mxu0
        %4798 = vmatprep.mubr.f32.mxu0 %v3893
        %4799 = vmatmul.mubr.f32.gmra.mrb[0].mxu0 %v3748
        %v4800 = vpop.f32.mrb[0].mxu0
        %v4801 = vpop.f32.mrb[0].mxu0
        %4802 = vmatprep.mubr.f32.mxu0 %v3892
        %4803 = vmatmul.mubr.f32.gmra.mrb[0].mxu0 %v3747
        %v4804 = vpop.f32.mrb[0].mxu0
        %v4805 = vadd.f32 %v4516, %v4804
        %v4806 = vpop.f32.mrb[0].mxu0
        %4807 = vmatprep.mubr.f32.mxu0 %v3891
        %4808 = vmatmul.mubr.f32.gmra.mrb[0].mxu0 %v3746
        %v4809 = vpop.f32.mrb[0].mxu0
        %v4810 = vadd.f32 %v4521, %v4809
        %v4811 = vpop.f32.mrb[0].mxu0
        %4812 = vmatprep.mubr.f32.mxu0 %v3890
        %4813 = vmatmul.mubr.f32.gmra.mrb[0].mxu0 %v3745
        %v4814 = vpop.f32.mrb[0].mxu0
        %v4815 = vpop.f32.mrb[0].mxu0
        %4816 = vmatprep.mubr.f32.mxu0 %v3889
        %4817 = vmatmul.mubr.f32.gmra.mrb[0].mxu0 %v3744
        %v4818 = vpop.f32.mrb[0].mxu0
        %v4819 = vadd.f32 %v4530, %v4818
        %v4820 = vpop.f32.mrb[0].mxu0
        %4821 = vmatprep.mubr.f32.mxu0 %v3888
        %4822 = vmatmul.mubr.f32.gmra.mrb[0].mxu0 %v3743
        %v4823 = vpop.f32.mrb[0].mxu0
        %v4824 = vadd.f32 %v4535, %v4823
        %v4825 = vpop.f32.mrb[0].mxu0
        %4826 = vmatprep.mubr.f32.mxu0 %v3887
        %4827 = vmatmul.mubr.f32.gmra.mrb[0].mxu0 %v3742
        %v4828 = vpop.f32.mrb[0].mxu0
        %v4829 = vpop.f32.mrb[0].mxu0
        %4830 = vmatprep.mubr.f32.mxu0 %v3886
        %4831 = vmatmul.mubr.f32.gmra.mrb[0].mxu0 %v3741
        %v4832 = vpop.f32.mrb[0].mxu0
        %v4833 = vadd.f32 %v4544, %v4832
        %v4834 = vpop.f32.mrb[0].mxu0
        %4835 = vmatprep.mubr.f32.mxu0 %v3885
        %4836 = vmatmul.mubr.f32.gmra.mrb[0].mxu0 %v3740
        %v4837 = vpop.f32.mrb[0].mxu0
        %v4838 = vadd.f32 %v4549, %v4837
        %v4839 = vpop.f32.mrb[0].mxu0
        %4840 = vmatprep.mubr.f32.mxu0 %v3884
        %4841 = vmatmul.mubr.f32.gmra.mrb[0].mxu0 %v3739
        %v4842 = vpop.f32.mrb[0].mxu0
        %v4843 = vpop.f32.mrb[0].mxu0
        %4844 = vmatprep.mubr.f32.mxu0 %v3883
        %4845 = vmatmul.mubr.f32.gmra.mrb[0].mxu0 %v3738
        %v4846 = vpop.f32.mrb[0].mxu0
        %v4847 = vadd.f32 %v4558, %v4846
        %v4848 = vpop.f32.mrb[0].mxu0
        %4849 = vmatprep.mubr.f32.mxu0 %v3882
        %4850 = vmatmul.mubr.f32.gmra.mrb[0].mxu0 %v3737
        %v4851 = vpop.f32.mrb[0].mxu0
        %v4852 = vadd.f32 %v4563, %v4851
        %v4853 = vpop.f32.mrb[0].mxu0
        %4854 = vmatprep.mubr.f32.mxu0 %v3881
        %4855 = vmatmul.mubr.f32.gmra.mrb[0].mxu0 %v3736
        %v4856 = vpop.f32.mrb[0].mxu0
        %v4857 = vpop.f32.mrb[0].mxu0
        %4858 = vmatprep.mubr.f32.mxu0 %v3880
        %4859 = vmatmul.mubr.f32.gmra.mrb[0].mxu0 %v3735
        %v4860 = vpop.f32.mrb[0].mxu0
        %v4861 = vadd.f32 %v4572, %v4860
        %v4862 = vpop.f32.mrb[0].mxu0
        %4863 = vmatprep.mubr.f32.mxu0 %v3879
        %4864 = vmatmul.mubr.f32.gmra.mrb[0].mxu0 %v3734
        %v4865 = vpop.f32.mrb[0].mxu0
        %v4866 = vadd.f32 %v4577, %v4865
        %v4867 = vpop.f32.mrb[0].mxu0
        %4868 = vmatprep.mubr.f32.mxu0 %v3878
        %4869 = vmatmul.mubr.f32.gmra.mrb[0].mxu0 %v3733
        %v4870 = vpop.f32.mrb[0].mxu0
        %v4871 = vpop.f32.mrb[0].mxu0
        %4872 = vmatprep.mubr.f32.mxu0 %v3877
        %4873 = vmatmul.mubr.f32.gmra.mrb[0].mxu0 %v3732
        %v4874 = vpop.f32.mrb[0].mxu0
        %v4875 = vadd.f32 %v4586, %v4874
        %v4876 = vpop.f32.mrb[0].mxu0
        %4877 = vmatprep.mubr.f32.mxu0 %v3876
        %4878 = vmatmul.mubr.f32.gmra.mrb[0].mxu0 %v3731
        %v4879 = vpop.f32.mrb[0].mxu0
        %v4880 = vadd.f32 %v4591, %v4879
        %v4881 = vpop.f32.mrb[0].mxu0
        %4882 = vmatprep.mubr.f32.mxu0 %v3875
        %4883 = vmatmul.mubr.f32.gmra.mrb[0].mxu0 %v3730
        %v4884 = vpop.f32.mrb[0].mxu0
        %v4885 = vpop.f32.mrb[0].mxu0
        %4886 = vmatprep.mubr.f32.mxu0 %v3874
        %4887 = vmatmul.mubr.f32.gmra.mrb[0].mxu0 %v3729
        %v4888 = vpop.f32.mrb[0].mxu0
        %v4889 = vadd.f32 %v4600, %v4888
        %v4890 = vpop.f32.mrb[0].mxu0
        %4891 = vmatprep.mubr.f32.mxu0 %v3873
        %4892 = vmatmul.mubr.f32.gmra.mrb[0].mxu0 %v3728
        %v4893 = vpop.f32.mrb[0].mxu0
        %v4894 = vadd.f32 %v4605, %v4893
        %v4895 = vpop.f32.mrb[0].mxu0
        %4896 = vmatprep.mubr.f32.mxu0 %v3872
        %4897 = vmatmul.mubr.f32.gmra.mrb[0].mxu0 %v3727
        %v4898 = vpop.f32.mrb[0].mxu0
        %v4899 = vpop.f32.mrb[0].mxu0
        %4900 = vmatprep.mubr.f32.mxu0 %v3871
        %4901 = vmatmul.mubr.f32.gmra.mrb[0].mxu0 %v3726
        %v4902 = vpop.f32.mrb[0].mxu0
        %v4903 = vadd.f32 %v4614, %v4902
        %v4904 = vpop.f32.mrb[0].mxu0
        %4905 = vmatprep.mubr.f32.mxu0 %v3870
        %4906 = vmatmul.mubr.f32.gmra.mrb[0].mxu0 %v3725
        %v4907 = vpop.f32.mrb[0].mxu0
        %v4908 = vadd.f32 %v4619, %v4907
        %v4909 = vpop.f32.mrb[0].mxu0
        %4910 = vmatprep.mubr.f32.mxu0 %v3869
        %4911 = vmatmul.mubr.f32.gmra.mrb[0].mxu0 %v3724
        %v4912 = vpop.f32.mrb[0].mxu0
        %v4913 = vpop.f32.mrb[0].mxu0
        %4914 = vmatprep.mubr.f32.mxu0 %v3868
        %4915 = vmatmul.mubr.f32.gmra.mrb[0].mxu0 %v3723
        %v4916 = vpop.f32.mrb[0].mxu0
        %v4917 = vadd.f32 %v4628, %v4916
        %v4918 = vpop.f32.mrb[0].mxu0
        %4919 = vmatprep.mubr.f32.mxu0 %v3867
        %4920 = vmatmul.mubr.f32.gmra.mrb[0].mxu0 %v3722
        %v4921 = vpop.f32.mrb[0].mxu0
        %v4922 = vadd.f32 %v4633, %v4921
        %v4923 = vpop.f32.mrb[0].mxu0
        %4924 = vmatprep.mubr.f32.mxu0 %v3866
        %4925 = vmatmul.mubr.f32.gmra.mrb[0].mxu0 %v3721
        %v4926 = vpop.f32.mrb[0].mxu0
        %v4927 = vpop.f32.mrb[0].mxu0
        %4928 = vmatprep.mubr.f32.mxu0 %v3865
        %4929 = vmatmul.mubr.f32.gmra.mrb[0].mxu0 %v3720
        %v4930 = vpop.f32.mrb[0].mxu0
        %v4931 = vadd.f32 %v4642, %v4930
        %v4932 = vpop.f32.mrb[0].mxu0
        %4933 = vmatprep.mubr.f32.mxu0 %v3864
        %4934 = vmatmul.mubr.f32.gmra.mrb[0].mxu0 %v3719
        %v4935 = vpop.f32.mrb[0].mxu0
        %v4936 = vadd.f32 %v4647, %v4935
        %v4937 = vpop.f32.mrb[0].mxu0
        %4938 = vmatprep.mubr.f32.mxu0 %v3863
        %4939 = vmatmul.mubr.f32.gmra.mrb[0].mxu0 %v3718
        %v4940 = vpop.f32.mrb[0].mxu0
        %v4941 = vpop.f32.mrb[0].mxu0
        %4942 = vmatprep.mubr.f32.mxu0 %v3862
        %4943 = vmatmul.mubr.f32.gmra.mrb[0].mxu0 %v3717
        %v4944 = vpop.f32.mrb[0].mxu0
        %v4945 = vadd.f32 %v4656, %v4944
        %v4946 = vpop.f32.mrb[0].mxu0
        %4947 = vmatprep.mubr.f32.mxu0 %v3861
        %4948 = vmatmul.mubr.f32.gmra.mrb[0].mxu0 %v3716
        %v4949 = vpop.f32.mrb[0].mxu0
        %v4950 = vadd.f32 %v4661, %v4949
        %v4951 = vpop.f32.mrb[0].mxu0
        %4952 = vmatprep.mubr.f32.mxu0 %v3860
        %4953 = vmatmul.mubr.f32.gmra.mrb[0].mxu0 %v3715
        %v4954 = vpop.f32.mrb[0].mxu0
        %v4955 = vpop.f32.mrb[0].mxu0
        %4956 = vmatprep.mubr.f32.mxu0 %v3859
        %4957 = vmatmul.mubr.f32.gmra.mrb[0].mxu0 %v3714
        %v4958 = vpop.f32.mrb[0].mxu0
        %v4959 = vadd.f32 %v4670, %v4958
        %v4960 = vpop.f32.mrb[0].mxu0
        %4961 = vmatprep.mubr.f32.mxu0 %v3858
        %4962 = vmatmul.mubr.f32.gmra.mrb[0].mxu0 %v3713
        %v4963 = vpop.f32.mrb[0].mxu0
        %v4964 = vadd.f32 %v4675, %v4963
        %v4965 = vpop.f32.mrb[0].mxu0
        %4966 = vmatprep.mubr.f32.mxu0 %v3857
        %4967 = vmatmul.mubr.f32.gmra.mrb[0].mxu0 %v3760
        %v4968 = vpop.f32.mrb[0].mxu0
        %v4969 = vpop.f32.mrb[0].mxu0
        %4970 = vdwg.mxu0
        %4971 = vmatprep.subr.mxu0 0.0
        %4972 = vmatpush1.msra.mxu0 %v4306
        %4973 = vmatprep.subr.mxu0 0.0
        %4974 = vmatpush1.msra.mxu0 %v4307
        %4975 = vmatprep.subr.mxu0 0.0
        %4976 = vmatpush1.msra.mxu0 %v4308
        %4977 = vmatprep.subr.mxu0 0.0
        %4978 = vmatpush1.msra.mxu0 %v4309
        %4979 = vmatprep.subr.mxu0 0.0
        %4980 = vmatpush1.msra.mxu0 %v4310
        %4981 = vmatprep.subr.mxu0 0.0
        %4982 = vmatpush1.msra.mxu0 %v4311
        %4983 = vmatprep.subr.mxu0 0.0
        %4984 = vmatpush1.msra.mxu0 %v4312
        %4985 = vmatprep.subr.mxu0 0.0
        %4986 = vmatpush1.msra.mxu0 %v4313
        %4987 = vmatprep.subr.mxu0 0.0
        %4988 = vmatpush1.msra.mxu0 %v4314
        %4989 = vmatprep.subr.mxu0 0.0
        %4990 = vmatpush1.msra.mxu0 %v4315
        %4991 = vmatprep.subr.mxu0 0.0
        %4992 = vmatpush1.msra.mxu0 %v4316
        %4993 = vmatprep.subr.mxu0 0.0
        %4994 = vmatpush1.msra.mxu0 %v4317
        %4995 = vmatprep.subr.mxu0 0.0
        %4996 = vmatpush1.msra.mxu0 %v4318
        %4997 = vmatprep.subr.mxu0 0.0
        %4998 = vmatpush1.msra.mxu0 %v4319
        %4999 = vmatprep.subr.mxu0 0.0
        %5000 = vmatpush1.msra.mxu0 %v4320
        %5001 = vmatprep.subr.mxu0 0.0
        %5002 = vmatpush1.msra.mxu0 %v4321
        %5003 = vmatprep.subr.mxu0 0.0
        %5004 = vmatpush1.msra.mxu0 %v4322
        %5005 = vmatprep.subr.mxu0 0.0
        %5006 = vmatpush1.msra.mxu0 %v4323
        %5007 = vmatprep.subr.mxu0 0.0
        %5008 = vmatpush1.msra.mxu0 %v4324
        %5009 = vmatprep.subr.mxu0 0.0
        %5010 = vmatpush1.msra.mxu0 %v4325
        %5011 = vmatprep.subr.mxu0 0.0
        %5012 = vmatpush1.msra.mxu0 %v4326
        %5013 = vmatprep.subr.mxu0 0.0
        %5014 = vmatpush1.msra.mxu0 %v4327
        %5015 = vmatprep.subr.mxu0 0.0
        %5016 = vmatpush1.msra.mxu0 %v4328
        %5017 = vmatprep.subr.mxu0 0.0
        %5018 = vmatpush1.msra.mxu0 %v4329
        %5019 = vmatprep.subr.mxu0 0.0
        %5020 = vmatpush1.msra.mxu0 %v4330
        %5021 = vmatprep.subr.mxu0 0.0
        %5022 = vmatpush1.msra.mxu0 %v4331
        %5023 = vmatprep.subr.mxu0 0.0
        %5024 = vmatpush1.msra.mxu0 %v4332
        %5025 = vmatprep.subr.mxu0 0.0
        %5026 = vmatpush1.msra.mxu0 %v4333
        %5027 = vmatprep.subr.mxu0 0.0
        %5028 = vmatpush1.msra.mxu0 %v4334
        %5029 = vmatprep.subr.mxu0 0.0
        %5030 = vmatpush1.msra.mxu0 %v4335
        %5031 = vmatprep.subr.mxu0 0.0
        %5032 = vmatpush1.msra.mxu0 %v4336
        %5033 = vmatprep.subr.mxu0 0.0
        %5034 = vmatpush1.msra.mxu0 %v4337
        %5035 = vmatprep.mubr.f32.mxu0 %v3999
        %5036 = vmatmul.mubr.f32.gmra.mrb[0].mxu0 %v3761
        %v5037 = vpop.f32.mrb[0].mxu0
        %v5038 = vadd.f32 %v4749, %v5037
        %v5039 = vpop.f32.mrb[0].mxu0
        %5040 = vmatprep.mubr.f32.mxu0 %v3998
        %5041 = vmatmul.mubr.f32.gmra.mrb[0].mxu0 %v3762
        %v5042 = vpop.f32.mrb[0].mxu0
        %v5043 = vadd.f32 %v4754, %v5042
        %v5044 = vpop.f32.mrb[0].mxu0
        %5045 = vmatprep.mubr.f32.mxu0 %v3997
        %5046 = vmatmul.mubr.f32.gmra.mrb[0].mxu0 %v3763
        %v5047 = vpop.f32.mrb[0].mxu0
        %v5048 = vpop.f32.mrb[0].mxu0
        %5049 = vmatprep.mubr.f32.mxu0 %v3996
        %5050 = vmatmul.mubr.f32.gmra.mrb[0].mxu0 %v3764
        %v5051 = vpop.f32.mrb[0].mxu0
        %v5052 = vadd.f32 %v4763, %v5051
        %v5053 = vpop.f32.mrb[0].mxu0
        %5054 = vmatprep.mubr.f32.mxu0 %v3995
        %5055 = vmatmul.mubr.f32.gmra.mrb[0].mxu0 %v3765
        %v5056 = vpop.f32.mrb[0].mxu0
        %v5057 = vadd.f32 %v4768, %v5056
        %v5058 = vpop.f32.mrb[0].mxu0
        %5059 = vmatprep.mubr.f32.mxu0 %v3994
        %5060 = vmatmul.mubr.f32.gmra.mrb[0].mxu0 %v3766
        %v5061 = vpop.f32.mrb[0].mxu0
        %v5062 = vpop.f32.mrb[0].mxu0
        %5063 = vmatprep.mubr.f32.mxu0 %v3993
        %5064 = vmatmul.mubr.f32.gmra.mrb[0].mxu0 %v3767
        %v5065 = vpop.f32.mrb[0].mxu0
        %v5066 = vadd.f32 %v4777, %v5065
        %v5067 = vpop.f32.mrb[0].mxu0
        %5068 = vmatprep.mubr.f32.mxu0 %v3992
        %5069 = vmatmul.mubr.f32.gmra.mrb[0].mxu0 %v3768
        %v5070 = vpop.f32.mrb[0].mxu0
        %v5071 = vadd.f32 %v4782, %v5070
        %v5072 = vpop.f32.mrb[0].mxu0
        %5073 = vmatprep.mubr.f32.mxu0 %v3991
        %5074 = vmatmul.mubr.f32.gmra.mrb[0].mxu0 %v3769
        %v5075 = vpop.f32.mrb[0].mxu0
        %v5076 = vpop.f32.mrb[0].mxu0
        %5077 = vmatprep.mubr.f32.mxu0 %v3990
        %5078 = vmatmul.mubr.f32.gmra.mrb[0].mxu0 %v3770
        %v5079 = vpop.f32.mrb[0].mxu0
        %v5080 = vadd.f32 %v4791, %v5079
        %v5081 = vpop.f32.mrb[0].mxu0
        %5082 = vmatprep.mubr.f32.mxu0 %v3989
        %5083 = vmatmul.mubr.f32.gmra.mrb[0].mxu0 %v3771
        %v5084 = vpop.f32.mrb[0].mxu0
        %v5085 = vadd.f32 %v4796, %v5084
        %v5086 = vpop.f32.mrb[0].mxu0
        %5087 = vmatprep.mubr.f32.mxu0 %v3988
        %5088 = vmatmul.mubr.f32.gmra.mrb[0].mxu0 %v3772
        %v5089 = vpop.f32.mrb[0].mxu0
        %v5090 = vpop.f32.mrb[0].mxu0
        %5091 = vmatprep.mubr.f32.mxu0 %v3987
        %5092 = vmatmul.mubr.f32.gmra.mrb[0].mxu0 %v3773
        %v5093 = vpop.f32.mrb[0].mxu0
        %v5094 = vadd.f32 %v4805, %v5093
        %v5095 = vpop.f32.mrb[0].mxu0
        %5096 = vmatprep.mubr.f32.mxu0 %v3986
        %5097 = vmatmul.mubr.f32.gmra.mrb[0].mxu0 %v3774
        %v5098 = vpop.f32.mrb[0].mxu0
        %v5099 = vadd.f32 %v4810, %v5098
        %v5100 = vpop.f32.mrb[0].mxu0
        %5101 = vmatprep.mubr.f32.mxu0 %v3985
        %5102 = vmatmul.mubr.f32.gmra.mrb[0].mxu0 %v3775
        %v5103 = vpop.f32.mrb[0].mxu0
        %v5104 = vpop.f32.mrb[0].mxu0
        %5105 = vmatprep.mubr.f32.mxu0 %v3984
        %5106 = vmatmul.mubr.f32.gmra.mrb[0].mxu0 %v3776
        %v5107 = vpop.f32.mrb[0].mxu0
        %v5108 = vadd.f32 %v4819, %v5107
        %v5109 = vpop.f32.mrb[0].mxu0
        %5110 = vmatprep.mubr.f32.mxu0 %v3983
        %5111 = vmatmul.mubr.f32.gmra.mrb[0].mxu0 %v3777
        %v5112 = vpop.f32.mrb[0].mxu0
        %v5113 = vadd.f32 %v4824, %v5112
        %v5114 = vpop.f32.mrb[0].mxu0
        %5115 = vmatprep.mubr.f32.mxu0 %v3982
        %5116 = vmatmul.mubr.f32.gmra.mrb[0].mxu0 %v3778
        %v5117 = vpop.f32.mrb[0].mxu0
        %v5118 = vpop.f32.mrb[0].mxu0
        %5119 = vmatprep.mubr.f32.mxu0 %v3981
        %5120 = vmatmul.mubr.f32.gmra.mrb[0].mxu0 %v3779
        %v5121 = vpop.f32.mrb[0].mxu0
        %v5122 = vadd.f32 %v4833, %v5121
        %v5123 = vpop.f32.mrb[0].mxu0
        %5124 = vmatprep.mubr.f32.mxu0 %v3980
        %5125 = vmatmul.mubr.f32.gmra.mrb[0].mxu0 %v3780
        %v5126 = vpop.f32.mrb[0].mxu0
        %v5127 = vadd.f32 %v4838, %v5126
        %v5128 = vpop.f32.mrb[0].mxu0
        %5129 = vmatprep.mubr.f32.mxu0 %v3979
        %5130 = vmatmul.mubr.f32.gmra.mrb[0].mxu0 %v3781
        %v5131 = vpop.f32.mrb[0].mxu0
        %v5132 = vpop.f32.mrb[0].mxu0
        %5133 = vmatprep.mubr.f32.mxu0 %v3978
        %5134 = vmatmul.mubr.f32.gmra.mrb[0].mxu0 %v3782
        %v5135 = vpop.f32.mrb[0].mxu0
        %v5136 = vadd.f32 %v4847, %v5135
        %v5137 = vpop.f32.mrb[0].mxu0
        %5138 = vmatprep.mubr.f32.mxu0 %v3977
        %5139 = vmatmul.mubr.f32.gmra.mrb[0].mxu0 %v3783
        %v5140 = vpop.f32.mrb[0].mxu0
        %v5141 = vadd.f32 %v4852, %v5140
        %v5142 = vpop.f32.mrb[0].mxu0
        %5143 = vmatprep.mubr.f32.mxu0 %v3976
        %5144 = vmatmul.mubr.f32.gmra.mrb[0].mxu0 %v3784
        %v5145 = vpop.f32.mrb[0].mxu0
        %v5146 = vpop.f32.mrb[0].mxu0
        %5147 = vmatprep.mubr.f32.mxu0 %v3975
        %5148 = vmatmul.mubr.f32.gmra.mrb[0].mxu0 %v3785
        %v5149 = vpop.f32.mrb[0].mxu0
        %v5150 = vadd.f32 %v4861, %v5149
        %v5151 = vpop.f32.mrb[0].mxu0
        %5152 = vmatprep.mubr.f32.mxu0 %v3974
        %5153 = vmatmul.mubr.f32.gmra.mrb[0].mxu0 %v3786
        %v5154 = vpop.f32.mrb[0].mxu0
        %v5155 = vadd.f32 %v4866, %v5154
        %v5156 = vpop.f32.mrb[0].mxu0
        %5157 = vmatprep.mubr.f32.mxu0 %v3973
        %5158 = vmatmul.mubr.f32.gmra.mrb[0].mxu0 %v3787
        %v5159 = vpop.f32.mrb[0].mxu0
        %v5160 = vpop.f32.mrb[0].mxu0
        %5161 = vmatprep.mubr.f32.mxu0 %v3972
        %5162 = vmatmul.mubr.f32.gmra.mrb[0].mxu0 %v3788
        %v5163 = vpop.f32.mrb[0].mxu0
        %v5164 = vadd.f32 %v4875, %v5163
        %v5165 = vpop.f32.mrb[0].mxu0
        %5166 = vmatprep.mubr.f32.mxu0 %v3971
        %5167 = vmatmul.mubr.f32.gmra.mrb[0].mxu0 %v3789
        %v5168 = vpop.f32.mrb[0].mxu0
        %v5169 = vadd.f32 %v4880, %v5168
        %v5170 = vpop.f32.mrb[0].mxu0
        %5171 = vmatprep.mubr.f32.mxu0 %v3970
        %5172 = vmatmul.mubr.f32.gmra.mrb[0].mxu0 %v3790
        %v5173 = vpop.f32.mrb[0].mxu0
        %v5174 = vpop.f32.mrb[0].mxu0
        %5175 = vmatprep.mubr.f32.mxu0 %v3969
        %5176 = vmatmul.mubr.f32.gmra.mrb[0].mxu0 %v3791
        %v5177 = vpop.f32.mrb[0].mxu0
        %v5178 = vadd.f32 %v4889, %v5177
        %v5179 = vpop.f32.mrb[0].mxu0
        %5180 = vmatprep.mubr.f32.mxu0 %v3968
        %5181 = vmatmul.mubr.f32.gmra.mrb[0].mxu0 %v3792
        %v5182 = vpop.f32.mrb[0].mxu0
        %v5183 = vadd.f32 %v4894, %v5182
        %v5184 = vpop.f32.mrb[0].mxu0
        %5185 = vmatprep.mubr.f32.mxu0 %v3967
        %5186 = vmatmul.mubr.f32.gmra.mrb[0].mxu0 %v3793
        %v5187 = vpop.f32.mrb[0].mxu0
        %v5188 = vpop.f32.mrb[0].mxu0
        %5189 = vmatprep.mubr.f32.mxu0 %v3966
        %5190 = vmatmul.mubr.f32.gmra.mrb[0].mxu0 %v3794
        %v5191 = vpop.f32.mrb[0].mxu0
        %v5192 = vadd.f32 %v4903, %v5191
        %v5193 = vpop.f32.mrb[0].mxu0
        %5194 = vmatprep.mubr.f32.mxu0 %v3965
        %5195 = vmatmul.mubr.f32.gmra.mrb[0].mxu0 %v3795
        %v5196 = vpop.f32.mrb[0].mxu0
        %v5197 = vadd.f32 %v4908, %v5196
        %v5198 = vpop.f32.mrb[0].mxu0
        %5199 = vmatprep.mubr.f32.mxu0 %v3964
        %5200 = vmatmul.mubr.f32.gmra.mrb[0].mxu0 %v3796
        %v5201 = vpop.f32.mrb[0].mxu0
        %v5202 = vpop.f32.mrb[0].mxu0
        %5203 = vmatprep.mubr.f32.mxu0 %v3963
        %5204 = vmatmul.mubr.f32.gmra.mrb[0].mxu0 %v3797
        %v5205 = vpop.f32.mrb[0].mxu0
        %v5206 = vadd.f32 %v4917, %v5205
        %v5207 = vpop.f32.mrb[0].mxu0
        %5208 = vmatprep.mubr.f32.mxu0 %v3962
        %5209 = vmatmul.mubr.f32.gmra.mrb[0].mxu0 %v3798
        %v5210 = vpop.f32.mrb[0].mxu0
        %v5211 = vadd.f32 %v4922, %v5210
        %v5212 = vpop.f32.mrb[0].mxu0
        %5213 = vmatprep.mubr.f32.mxu0 %v3961
        %5214 = vmatmul.mubr.f32.gmra.mrb[0].mxu0 %v3799
        %v5215 = vpop.f32.mrb[0].mxu0
        %v5216 = vpop.f32.mrb[0].mxu0
        %5217 = vmatprep.mubr.f32.mxu0 %v3960
        %5218 = vmatmul.mubr.f32.gmra.mrb[0].mxu0 %v3800
        %v5219 = vpop.f32.mrb[0].mxu0
        %v5220 = vadd.f32 %v4931, %v5219
        %v5221 = vpop.f32.mrb[0].mxu0
        %5222 = vmatprep.mubr.f32.mxu0 %v3959
        %5223 = vmatmul.mubr.f32.gmra.mrb[0].mxu0 %v3801
        %v5224 = vpop.f32.mrb[0].mxu0
        %v5225 = vadd.f32 %v4936, %v5224
        %v5226 = vpop.f32.mrb[0].mxu0
        %5227 = vmatprep.mubr.f32.mxu0 %v3958
        %5228 = vmatmul.mubr.f32.gmra.mrb[0].mxu0 %v3802
        %v5229 = vpop.f32.mrb[0].mxu0
        %v5230 = vpop.f32.mrb[0].mxu0
        %5231 = vmatprep.mubr.f32.mxu0 %v3957
        %5232 = vmatmul.mubr.f32.gmra.mrb[0].mxu0 %v3803
        %v5233 = vpop.f32.mrb[0].mxu0
        %v5234 = vadd.f32 %v4945, %v5233
        %v5235 = vpop.f32.mrb[0].mxu0
        %5236 = vmatprep.mubr.f32.mxu0 %v3956
        %5237 = vmatmul.mubr.f32.gmra.mrb[0].mxu0 %v3804
        %v5238 = vpop.f32.mrb[0].mxu0
        %v5239 = vadd.f32 %v4950, %v5238
        %v5240 = vpop.f32.mrb[0].mxu0
        %5241 = vmatprep.mubr.f32.mxu0 %v3955
        %5242 = vmatmul.mubr.f32.gmra.mrb[0].mxu0 %v3805
        %v5243 = vpop.f32.mrb[0].mxu0
        %v5244 = vpop.f32.mrb[0].mxu0
        %5245 = vmatprep.mubr.f32.mxu0 %v3954
        %5246 = vmatmul.mubr.f32.gmra.mrb[0].mxu0 %v3806
        %v5247 = vpop.f32.mrb[0].mxu0
        %v5248 = vadd.f32 %v4959, %v5247
        %v5249 = vpop.f32.mrb[0].mxu0
        %5250 = vmatprep.mubr.f32.mxu0 %v3953
        %5251 = vmatmul.mubr.f32.gmra.mrb[0].mxu0 %v3807
        %v5252 = vpop.f32.mrb[0].mxu0
        %v5253 = vadd.f32 %v4964, %v5252
        %v5254 = vpop.f32.mrb[0].mxu0
        %5255 = vmatprep.mubr.f32.mxu0 %v4000
        %5256 = vmatmul.mubr.f32.gmra.mrb[0].mxu0 %v3808
        %v5257 = vpop.f32.mrb[0].mxu0
        %v5258 = vpop.f32.mrb[0].mxu0
        %5259 = vdwg.mxu0
        %5260 = vmatprep.subr.mxu0 0.0
        %5261 = vmatpush1.msra.mxu0 %v4338
        %5262 = vmatprep.subr.mxu0 0.0
        %5263 = vmatpush1.msra.mxu0 %v4339
        %5264 = vmatprep.subr.mxu0 0.0
        %5265 = vmatpush1.msra.mxu0 %v4340
        %5266 = vmatprep.subr.mxu0 0.0
        %5267 = vmatpush1.msra.mxu0 %v4341
        %5268 = vmatprep.subr.mxu0 0.0
        %5269 = vmatpush1.msra.mxu0 %v4342
        %5270 = vmatprep.subr.mxu0 0.0
        %5271 = vmatpush1.msra.mxu0 %v4343
        %5272 = vmatprep.subr.mxu0 0.0
        %5273 = vmatpush1.msra.mxu0 %v4344
        %5274 = vmatprep.subr.mxu0 0.0
        %5275 = vmatpush1.msra.mxu0 %v4345
        %5276 = vmatprep.subr.mxu0 0.0
        %5277 = vmatpush1.msra.mxu0 %v4346
        %5278 = vmatprep.subr.mxu0 0.0
        %5279 = vmatpush1.msra.mxu0 %v4347
        %5280 = vmatprep.subr.mxu0 0.0
        %5281 = vmatpush1.msra.mxu0 %v4348
        %5282 = vmatprep.subr.mxu0 0.0
        %5283 = vmatpush1.msra.mxu0 %v4349
        %5284 = vmatprep.subr.mxu0 0.0
        %5285 = vmatpush1.msra.mxu0 %v4350
        %5286 = vmatprep.subr.mxu0 0.0
        %5287 = vmatpush1.msra.mxu0 %v4351
        %5288 = vmatprep.subr.mxu0 0.0
        %5289 = vmatpush1.msra.mxu0 %v4352
        %5290 = vmatprep.subr.mxu0 0.0
        %5291 = vmatpush1.msra.mxu0 %v4353
        %5292 = vmatprep.subr.mxu0 0.0
        %5293 = vmatpush1.msra.mxu0 %v4354
        %5294 = vmatprep.subr.mxu0 0.0
        %5295 = vmatpush1.msra.mxu0 %v4355
        %5296 = vmatprep.subr.mxu0 0.0
        %5297 = vmatpush1.msra.mxu0 %v4356
        %5298 = vmatprep.subr.mxu0 0.0
        %5299 = vmatpush1.msra.mxu0 %v4357
        %5300 = vmatprep.subr.mxu0 0.0
        %5301 = vmatpush1.msra.mxu0 %v4358
        %5302 = vmatprep.subr.mxu0 0.0
        %5303 = vmatpush1.msra.mxu0 %v4359
        %5304 = vmatprep.subr.mxu0 0.0
        %5305 = vmatpush1.msra.mxu0 %v4360
        %5306 = vmatprep.subr.mxu0 0.0
        %5307 = vmatpush1.msra.mxu0 %v4361
        %5308 = vmatprep.subr.mxu0 0.0
        %5309 = vmatpush1.msra.mxu0 %v4362
        %5310 = vmatprep.subr.mxu0 0.0
        %5311 = vmatpush1.msra.mxu0 %v4363
        %5312 = vmatprep.subr.mxu0 0.0
        %5313 = vmatpush1.msra.mxu0 %v4364
        %5314 = vmatprep.subr.mxu0 0.0
        %5315 = vmatpush1.msra.mxu0 %v4365
        %5316 = vmatprep.subr.mxu0 0.0
        %5317 = vmatpush1.msra.mxu0 %v4366
        %5318 = vmatprep.subr.mxu0 0.0
        %5319 = vmatpush1.msra.mxu0 %v4367
        %5320 = vmatprep.subr.mxu0 0.0
        %5321 = vmatpush1.msra.mxu0 %v4368
        %5322 = vmatprep.subr.mxu0 0.0
        %5323 = vmatpush1.msra.mxu0 %v4369
        %5324 = vmatprep.mubr.f32.mxu0 %v4002
        %5325 = vmatmul.mubr.f32.gmra.mrb[0].mxu0 %v4145
        %v5326 = vpop.f32.mrb[0].mxu0
        %v5327 = vadd.f32 %v5038, %v5326
        %v5328 = vpop.f32.mrb[0].mxu0
        %5329 = vmatprep.mubr.f32.mxu0 %v4003
        %5330 = vmatmul.mubr.f32.gmra.mrb[0].mxu0 %v4144
        %v5331 = vpop.f32.mrb[0].mxu0
        %v5332 = vadd.f32 %v5043, %v5331
        %v5333 = vpop.f32.mrb[0].mxu0
        %5334 = vmatprep.mubr.f32.mxu0 %v4004
        %5335 = vmatmul.mubr.f32.gmra.mrb[0].mxu0 %v4143
        %v5336 = vpop.f32.mrb[0].mxu0
        %v5337 = vpop.f32.mrb[0].mxu0
        %5338 = vmatprep.mubr.f32.mxu0 %v4005
        %5339 = vmatmul.mubr.f32.gmra.mrb[0].mxu0 %v4142
        %v5340 = vpop.f32.mrb[0].mxu0
        %v5341 = vadd.f32 %v5052, %v5340
        %v5342 = vpop.f32.mrb[0].mxu0
        %5343 = vmatprep.mubr.f32.mxu0 %v4006
        %5344 = vmatmul.mubr.f32.gmra.mrb[0].mxu0 %v4141
        %v5345 = vpop.f32.mrb[0].mxu0
        %v5346 = vadd.f32 %v5057, %v5345
        %v5347 = vpop.f32.mrb[0].mxu0
        %5348 = vmatprep.mubr.f32.mxu0 %v4007
        %5349 = vmatmul.mubr.f32.gmra.mrb[0].mxu0 %v4140
        %v5350 = vpop.f32.mrb[0].mxu0
        %v5351 = vpop.f32.mrb[0].mxu0
        %5352 = vmatprep.mubr.f32.mxu0 %v4008
        %5353 = vmatmul.mubr.f32.gmra.mrb[0].mxu0 %v4139
        %v5354 = vpop.f32.mrb[0].mxu0
        %v5355 = vadd.f32 %v5066, %v5354
        %v5356 = vpop.f32.mrb[0].mxu0
        %5357 = vmatprep.mubr.f32.mxu0 %v4009
        %5358 = vmatmul.mubr.f32.gmra.mrb[0].mxu0 %v4138
        %v5359 = vpop.f32.mrb[0].mxu0
        %v5360 = vadd.f32 %v5071, %v5359
        %v5361 = vpop.f32.mrb[0].mxu0
        %5362 = vmatprep.mubr.f32.mxu0 %v4010
        %5363 = vmatmul.mubr.f32.gmra.mrb[0].mxu0 %v4137
        %v5364 = vpop.f32.mrb[0].mxu0
        %v5365 = vpop.f32.mrb[0].mxu0
        %5366 = vmatprep.mubr.f32.mxu0 %v4011
        %5367 = vmatmul.mubr.f32.gmra.mrb[0].mxu0 %v4136
        %v5368 = vpop.f32.mrb[0].mxu0
        %v5369 = vadd.f32 %v5080, %v5368
        %v5370 = vpop.f32.mrb[0].mxu0
        %5371 = vmatprep.mubr.f32.mxu0 %v4012
        %5372 = vmatmul.mubr.f32.gmra.mrb[0].mxu0 %v4135
        %v5373 = vpop.f32.mrb[0].mxu0
        %v5374 = vadd.f32 %v5085, %v5373
        %v5375 = vpop.f32.mrb[0].mxu0
        %5376 = vmatprep.mubr.f32.mxu0 %v4013
        %5377 = vmatmul.mubr.f32.gmra.mrb[0].mxu0 %v4134
        %v5378 = vpop.f32.mrb[0].mxu0
        %v5379 = vpop.f32.mrb[0].mxu0
        %5380 = vmatprep.mubr.f32.mxu0 %v4014
        %5381 = vmatmul.mubr.f32.gmra.mrb[0].mxu0 %v4133
        %v5382 = vpop.f32.mrb[0].mxu0
        %v5383 = vadd.f32 %v5094, %v5382
        %v5384 = vpop.f32.mrb[0].mxu0
        %5385 = vmatprep.mubr.f32.mxu0 %v4015
        %5386 = vmatmul.mubr.f32.gmra.mrb[0].mxu0 %v4132
        %v5387 = vpop.f32.mrb[0].mxu0
        %v5388 = vadd.f32 %v5099, %v5387
        %v5389 = vpop.f32.mrb[0].mxu0
        %5390 = vmatprep.mubr.f32.mxu0 %v4016
        %5391 = vmatmul.mubr.f32.gmra.mrb[0].mxu0 %v4131
        %v5392 = vpop.f32.mrb[0].mxu0
        %v5393 = vpop.f32.mrb[0].mxu0
        %5394 = vmatprep.mubr.f32.mxu0 %v4017
        %5395 = vmatmul.mubr.f32.gmra.mrb[0].mxu0 %v4130
        %v5396 = vpop.f32.mrb[0].mxu0
        %v5397 = vadd.f32 %v5108, %v5396
        %v5398 = vpop.f32.mrb[0].mxu0
        %5399 = vmatprep.mubr.f32.mxu0 %v4018
        %5400 = vmatmul.mubr.f32.gmra.mrb[0].mxu0 %v4129
        %v5401 = vpop.f32.mrb[0].mxu0
        %v5402 = vadd.f32 %v5113, %v5401
        %v5403 = vpop.f32.mrb[0].mxu0
        %5404 = vmatprep.mubr.f32.mxu0 %v4019
        %5405 = vmatmul.mubr.f32.gmra.mrb[0].mxu0 %v4128
        %v5406 = vpop.f32.mrb[0].mxu0
        %v5407 = vpop.f32.mrb[0].mxu0
        %5408 = vmatprep.mubr.f32.mxu0 %v4020
        %5409 = vmatmul.mubr.f32.gmra.mrb[0].mxu0 %v4127
        %v5410 = vpop.f32.mrb[0].mxu0
        %v5411 = vadd.f32 %v5122, %v5410
        %v5412 = vpop.f32.mrb[0].mxu0
        %5413 = vmatprep.mubr.f32.mxu0 %v4021
        %5414 = vmatmul.mubr.f32.gmra.mrb[0].mxu0 %v4126
        %v5415 = vpop.f32.mrb[0].mxu0
        %v5416 = vadd.f32 %v5127, %v5415
        %v5417 = vpop.f32.mrb[0].mxu0
        %5418 = vmatprep.mubr.f32.mxu0 %v4022
        %5419 = vmatmul.mubr.f32.gmra.mrb[0].mxu0 %v4125
        %v5420 = vpop.f32.mrb[0].mxu0
        %v5421 = vpop.f32.mrb[0].mxu0
        %5422 = vmatprep.mubr.f32.mxu0 %v4023
        %5423 = vmatmul.mubr.f32.gmra.mrb[0].mxu0 %v4124
        %v5424 = vpop.f32.mrb[0].mxu0
        %v5425 = vadd.f32 %v5136, %v5424
        %v5426 = vpop.f32.mrb[0].mxu0
        %5427 = vmatprep.mubr.f32.mxu0 %v4024
        %5428 = vmatmul.mubr.f32.gmra.mrb[0].mxu0 %v4123
        %v5429 = vpop.f32.mrb[0].mxu0
        %v5430 = vadd.f32 %v5141, %v5429
        %v5431 = vpop.f32.mrb[0].mxu0
        %5432 = vmatprep.mubr.f32.mxu0 %v4025
        %5433 = vmatmul.mubr.f32.gmra.mrb[0].mxu0 %v4122
        %v5434 = vpop.f32.mrb[0].mxu0
        %v5435 = vpop.f32.mrb[0].mxu0
        %5436 = vmatprep.mubr.f32.mxu0 %v4026
        %5437 = vmatmul.mubr.f32.gmra.mrb[0].mxu0 %v4121
        %v5438 = vpop.f32.mrb[0].mxu0
        %v5439 = vadd.f32 %v5150, %v5438
        %v5440 = vpop.f32.mrb[0].mxu0
        %5441 = vmatprep.mubr.f32.mxu0 %v4027
        %5442 = vmatmul.mubr.f32.gmra.mrb[0].mxu0 %v4120
        %v5443 = vpop.f32.mrb[0].mxu0
        %v5444 = vadd.f32 %v5155, %v5443
        %v5445 = vpop.f32.mrb[0].mxu0
        %5446 = vmatprep.mubr.f32.mxu0 %v4028
        %5447 = vmatmul.mubr.f32.gmra.mrb[0].mxu0 %v4119
        %v5448 = vpop.f32.mrb[0].mxu0
        %v5449 = vpop.f32.mrb[0].mxu0
        %5450 = vmatprep.mubr.f32.mxu0 %v4029
        %5451 = vmatmul.mubr.f32.gmra.mrb[0].mxu0 %v4118
        %v5452 = vpop.f32.mrb[0].mxu0
        %v5453 = vadd.f32 %v5164, %v5452
        %v5454 = vpop.f32.mrb[0].mxu0
        %5455 = vmatprep.mubr.f32.mxu0 %v4030
        %5456 = vmatmul.mubr.f32.gmra.mrb[0].mxu0 %v4117
        %v5457 = vpop.f32.mrb[0].mxu0
        %v5458 = vadd.f32 %v5169, %v5457
        %v5459 = vpop.f32.mrb[0].mxu0
        %5460 = vmatprep.mubr.f32.mxu0 %v4031
        %5461 = vmatmul.mubr.f32.gmra.mrb[0].mxu0 %v4116
        %v5462 = vpop.f32.mrb[0].mxu0
        %v5463 = vpop.f32.mrb[0].mxu0
        %5464 = vmatprep.mubr.f32.mxu0 %v4032
        %5465 = vmatmul.mubr.f32.gmra.mrb[0].mxu0 %v4115
        %v5466 = vpop.f32.mrb[0].mxu0
        %v5467 = vadd.f32 %v5178, %v5466
        %v5468 = vpop.f32.mrb[0].mxu0
        %5469 = vmatprep.mubr.f32.mxu0 %v4033
        %5470 = vmatmul.mubr.f32.gmra.mrb[0].mxu0 %v4114
        %v5471 = vpop.f32.mrb[0].mxu0
        %v5472 = vadd.f32 %v5183, %v5471
        %v5473 = vpop.f32.mrb[0].mxu0
        %5474 = vmatprep.mubr.f32.mxu0 %v4034
        %5475 = vmatmul.mubr.f32.gmra.mrb[0].mxu0 %v4113
        %v5476 = vpop.f32.mrb[0].mxu0
        %v5477 = vpop.f32.mrb[0].mxu0
        %5478 = vmatprep.mubr.f32.mxu0 %v4035
        %5479 = vmatmul.mubr.f32.gmra.mrb[0].mxu0 %v4112
        %v5480 = vpop.f32.mrb[0].mxu0
        %v5481 = vadd.f32 %v5192, %v5480
        %v5482 = vpop.f32.mrb[0].mxu0
        %5483 = vmatprep.mubr.f32.mxu0 %v4036
        %5484 = vmatmul.mubr.f32.gmra.mrb[0].mxu0 %v4111
        %v5485 = vpop.f32.mrb[0].mxu0
        %v5486 = vadd.f32 %v5197, %v5485
        %v5487 = vpop.f32.mrb[0].mxu0
        %5488 = vmatprep.mubr.f32.mxu0 %v4037
        %5489 = vmatmul.mubr.f32.gmra.mrb[0].mxu0 %v4110
        %v5490 = vpop.f32.mrb[0].mxu0
        %v5491 = vpop.f32.mrb[0].mxu0
        %5492 = vmatprep.mubr.f32.mxu0 %v4038
        %5493 = vmatmul.mubr.f32.gmra.mrb[0].mxu0 %v4109
        %v5494 = vpop.f32.mrb[0].mxu0
        %v5495 = vadd.f32 %v5206, %v5494
        %v5496 = vpop.f32.mrb[0].mxu0
        %5497 = vmatprep.mubr.f32.mxu0 %v4039
        %5498 = vmatmul.mubr.f32.gmra.mrb[0].mxu0 %v4108
        %v5499 = vpop.f32.mrb[0].mxu0
        %v5500 = vadd.f32 %v5211, %v5499
        %v5501 = vpop.f32.mrb[0].mxu0
        %5502 = vmatprep.mubr.f32.mxu0 %v4040
        %5503 = vmatmul.mubr.f32.gmra.mrb[0].mxu0 %v4107
        %v5504 = vpop.f32.mrb[0].mxu0
        %v5505 = vpop.f32.mrb[0].mxu0
        %5506 = vmatprep.mubr.f32.mxu0 %v4041
        %5507 = vmatmul.mubr.f32.gmra.mrb[0].mxu0 %v4106
        %v5508 = vpop.f32.mrb[0].mxu0
        %v5509 = vadd.f32 %v5220, %v5508
        %v5510 = vpop.f32.mrb[0].mxu0
        %5511 = vmatprep.mubr.f32.mxu0 %v4042
        %5512 = vmatmul.mubr.f32.gmra.mrb[0].mxu0 %v4105
        %v5513 = vpop.f32.mrb[0].mxu0
        %v5514 = vadd.f32 %v5225, %v5513
        %v5515 = vpop.f32.mrb[0].mxu0
        %5516 = vmatprep.mubr.f32.mxu0 %v4043
        %5517 = vmatmul.mubr.f32.gmra.mrb[0].mxu0 %v4104
        %v5518 = vpop.f32.mrb[0].mxu0
        %v5519 = vpop.f32.mrb[0].mxu0
        %5520 = vmatprep.mubr.f32.mxu0 %v4044
        %5521 = vmatmul.mubr.f32.gmra.mrb[0].mxu0 %v4103
        %v5522 = vpop.f32.mrb[0].mxu0
        %v5523 = vadd.f32 %v5234, %v5522
        %v5524 = vpop.f32.mrb[0].mxu0
        %5525 = vmatprep.mubr.f32.mxu0 %v4045
        %5526 = vmatmul.mubr.f32.gmra.mrb[0].mxu0 %v4102
        %v5527 = vpop.f32.mrb[0].mxu0
        %v5528 = vadd.f32 %v5239, %v5527
        %v5529 = vpop.f32.mrb[0].mxu0
        %5530 = vmatprep.mubr.f32.mxu0 %v4046
        %5531 = vmatmul.mubr.f32.gmra.mrb[0].mxu0 %v4101
        %v5532 = vpop.f32.mrb[0].mxu0
        %v5533 = vpop.f32.mrb[0].mxu0
        %5534 = vmatprep.mubr.f32.mxu0 %v4047
        %5535 = vmatmul.mubr.f32.gmra.mrb[0].mxu0 %v4100
        %v5536 = vpop.f32.mrb[0].mxu0
        %v5537 = vadd.f32 %v5248, %v5536
        %v5538 = vpop.f32.mrb[0].mxu0
        %5539 = vmatprep.mubr.f32.mxu0 %v4048
        %5540 = vmatmul.mubr.f32.gmra.mrb[0].mxu0 %v4099
        %v5541 = vpop.f32.mrb[0].mxu0
        %v5542 = vadd.f32 %v5253, %v5541
        %v5543 = vpop.f32.mrb[0].mxu0
        %5544 = vmatprep.mubr.f32.mxu0 %v4049
        %5545 = vmatmul.mubr.f32.gmra.mrb[0].mxu0 %v4098
        %v5546 = vpop.f32.mrb[0].mxu0
        %v5547 = vpop.f32.mrb[0].mxu0
        %5548 = vdwg.mxu0
        %5549 = vmatprep.subr.mxu0 0.0
        %5550 = vmatpush1.msra.mxu0 %v4370
        %5551 = vmatprep.subr.mxu0 0.0
        %5552 = vmatpush1.msra.mxu0 %v4371
        %5553 = vmatprep.subr.mxu0 0.0
        %5554 = vmatpush1.msra.mxu0 %v4372
        %5555 = vmatprep.subr.mxu0 0.0
        %5556 = vmatpush1.msra.mxu0 %v4373
        %5557 = vmatprep.subr.mxu0 0.0
        %5558 = vmatpush1.msra.mxu0 %v4374
        %5559 = vmatprep.subr.mxu0 0.0
        %5560 = vmatpush1.msra.mxu0 %v4375
        %5561 = vmatprep.subr.mxu0 0.0
        %5562 = vmatpush1.msra.mxu0 %v4376
        %5563 = vmatprep.subr.mxu0 0.0
        %5564 = vmatpush1.msra.mxu0 %v4377
        %5565 = vmatprep.subr.mxu0 0.0
        %5566 = vmatpush1.msra.mxu0 %v4378
        %5567 = vmatprep.subr.mxu0 0.0
        %5568 = vmatpush1.msra.mxu0 %v4379
        %5569 = vmatprep.subr.mxu0 0.0
        %5570 = vmatpush1.msra.mxu0 %v4380
        %5571 = vmatprep.subr.mxu0 0.0
        %5572 = vmatpush1.msra.mxu0 %v4381
        %5573 = vmatprep.subr.mxu0 0.0
        %5574 = vmatpush1.msra.mxu0 %v4382
        %5575 = vmatprep.subr.mxu0 0.0
        %5576 = vmatpush1.msra.mxu0 %v4383
        %5577 = vmatprep.subr.mxu0 0.0
        %5578 = vmatpush1.msra.mxu0 %v4384
        %5579 = vmatprep.subr.mxu0 0.0
        %5580 = vmatpush1.msra.mxu0 %v4385
        %5581 = vmatprep.subr.mxu0 0.0
        %5582 = vmatpush1.msra.mxu0 0.0
        %5583 = vmatprep.subr.mxu0 0.0
        %5584 = vmatpush1.msra.mxu0 0.0
        %5585 = vmatprep.subr.mxu0 0.0
        %5586 = vmatpush1.msra.mxu0 0.0
        %5587 = vmatprep.subr.mxu0 0.0
        %5588 = vmatpush1.msra.mxu0 0.0
        %5589 = vmatprep.subr.mxu0 0.0
        %5590 = vmatpush1.msra.mxu0 0.0
        %5591 = vmatprep.subr.mxu0 0.0
        %5592 = vmatpush1.msra.mxu0 0.0
        %5593 = vmatprep.subr.mxu0 0.0
        %5594 = vmatpush1.msra.mxu0 0.0
        %5595 = vmatprep.subr.mxu0 0.0
        %5596 = vmatpush1.msra.mxu0 0.0
        %5597 = vmatprep.subr.mxu0 0.0
        %5598 = vmatpush1.msra.mxu0 0.0
        %5599 = vmatprep.subr.mxu0 0.0
        %5600 = vmatpush1.msra.mxu0 0.0
        %5601 = vmatprep.subr.mxu0 0.0
        %5602 = vmatpush1.msra.mxu0 0.0
        %5603 = vmatprep.subr.mxu0 0.0
        %5604 = vmatpush1.msra.mxu0 0.0
        %5605 = vmatprep.subr.mxu0 0.0
        %5606 = vmatpush1.msra.mxu0 0.0
        %5607 = vmatprep.subr.mxu0 0.0
        %5608 = vmatpush1.msra.mxu0 0.0
        %5609 = vmatprep.subr.mxu0 0.0
        %5610 = vmatpush1.msra.mxu0 0.0
        %5611 = vmatprep.subr.mxu0 0.0
        %5612 = vmatpush1.msra.mxu0 0.0
        %5613 = vmatprep.mubr.f32.mxu0 0.0
        %5614 = vmatmul.mubr.f32.gmra.mrb[0].mxu0 %v4240
        %v5615 = vpop.f32.mrb[0].mxu0
        %v5616 = vadd.f32 %v5327, %v5615
        %v5617 = vpop.f32.mrb[0].mxu0
        %5618 = vmatprep.mubr.f32.mxu0 0.0
        %5619 = vmatmul.mubr.f32.gmra.mrb[0].mxu0 %v4239
        %v5620 = vpop.f32.mrb[0].mxu0
        %v5621 = vadd.f32 %v5332, %v5620
        %v5622 = vpop.f32.mrb[0].mxu0
        %5623 = vmatprep.mubr.f32.mxu0 0.0
        %5624 = vmatmul.mubr.f32.gmra.mrb[0].mxu0 %v4238
        %v5625 = vpop.f32.mrb[0].mxu0
        %v5626 = vpop.f32.mrb[0].mxu0
        %5627 = vmatprep.mubr.f32.mxu0 0.0
        %5628 = vmatmul.mubr.f32.gmra.mrb[0].mxu0 %v4237
        %v5629 = vpop.f32.mrb[0].mxu0
        %v5630 = vadd.f32 %v5341, %v5629
        %v5631 = vpop.f32.mrb[0].mxu0
        %5632 = vmatprep.mubr.f32.mxu0 0.0
        %5633 = vmatmul.mubr.f32.gmra.mrb[0].mxu0 %v4236
        %v5634 = vpop.f32.mrb[0].mxu0
        %v5635 = vadd.f32 %v5346, %v5634
        %v5636 = vpop.f32.mrb[0].mxu0
        %5637 = vmatprep.mubr.f32.mxu0 0.0
        %5638 = vmatmul.mubr.f32.gmra.mrb[0].mxu0 %v4235
        %v5639 = vpop.f32.mrb[0].mxu0
        %v5640 = vpop.f32.mrb[0].mxu0
        %5641 = vmatprep.mubr.f32.mxu0 0.0
        %5642 = vmatmul.mubr.f32.gmra.mrb[0].mxu0 %v4234
        %v5643 = vpop.f32.mrb[0].mxu0
        %v5644 = vadd.f32 %v5355, %v5643
        %v5645 = vpop.f32.mrb[0].mxu0
        %5646 = vmatprep.mubr.f32.mxu0 0.0
        %5647 = vmatmul.mubr.f32.gmra.mrb[0].mxu0 %v4233
        %v5648 = vpop.f32.mrb[0].mxu0
        %v5649 = vadd.f32 %v5360, %v5648
        %v5650 = vpop.f32.mrb[0].mxu0
        %5651 = vmatprep.mubr.f32.mxu0 0.0
        %5652 = vmatmul.mubr.f32.gmra.mrb[0].mxu0 %v4232
        %v5653 = vpop.f32.mrb[0].mxu0
        %v5654 = vpop.f32.mrb[0].mxu0
        %5655 = vmatprep.mubr.f32.mxu0 0.0
        %5656 = vmatmul.mubr.f32.gmra.mrb[0].mxu0 %v4231
        %v5657 = vpop.f32.mrb[0].mxu0
        %v5658 = vadd.f32 %v5369, %v5657
        %v5659 = vpop.f32.mrb[0].mxu0
        %5660 = vmatprep.mubr.f32.mxu0 0.0
        %5661 = vmatmul.mubr.f32.gmra.mrb[0].mxu0 %v4230
        %v5662 = vpop.f32.mrb[0].mxu0
        %v5663 = vadd.f32 %v5374, %v5662
        %v5664 = vpop.f32.mrb[0].mxu0
        %5665 = vmatprep.mubr.f32.mxu0 0.0
        %5666 = vmatmul.mubr.f32.gmra.mrb[0].mxu0 %v4229
        %v5667 = vpop.f32.mrb[0].mxu0
        %v5668 = vpop.f32.mrb[0].mxu0
        %5669 = vmatprep.mubr.f32.mxu0 0.0
        %5670 = vmatmul.mubr.f32.gmra.mrb[0].mxu0 %v4228
        %v5671 = vpop.f32.mrb[0].mxu0
        %v5672 = vadd.f32 %v5383, %v5671
        %v5673 = vpop.f32.mrb[0].mxu0
        %5674 = vmatprep.mubr.f32.mxu0 0.0
        %5675 = vmatmul.mubr.f32.gmra.mrb[0].mxu0 %v4227
        %v5676 = vpop.f32.mrb[0].mxu0
        %v5677 = vadd.f32 %v5388, %v5676
        %v5678 = vpop.f32.mrb[0].mxu0
        %5679 = vmatprep.mubr.f32.mxu0 0.0
        %5680 = vmatmul.mubr.f32.gmra.mrb[0].mxu0 %v4226
        %v5681 = vpop.f32.mrb[0].mxu0
        %v5682 = vpop.f32.mrb[0].mxu0
        %5683 = vmatprep.mubr.f32.mxu0 0.0
        %5684 = vmatmul.mubr.f32.gmra.mrb[0].mxu0 %v4225
        %v5685 = vpop.f32.mrb[0].mxu0
        %v5686 = vadd.f32 %v5397, %v5685
        %v5687 = vpop.f32.mrb[0].mxu0
        %5688 = vmatprep.mubr.f32.mxu0 0.0
        %5689 = vmatmul.mubr.f32.gmra.mrb[0].mxu0 %v4224
        %v5690 = vpop.f32.mrb[0].mxu0
        %v5691 = vadd.f32 %v5402, %v5690
        %v5692 = vpop.f32.mrb[0].mxu0
        %5693 = vmatprep.mubr.f32.mxu0 0.0
        %5694 = vmatmul.mubr.f32.gmra.mrb[0].mxu0 %v4223
        %v5695 = vpop.f32.mrb[0].mxu0
        %v5696 = vpop.f32.mrb[0].mxu0
        %5697 = vmatprep.mubr.f32.mxu0 0.0
        %5698 = vmatmul.mubr.f32.gmra.mrb[0].mxu0 %v4222
        %v5699 = vpop.f32.mrb[0].mxu0
        %v5700 = vadd.f32 %v5411, %v5699
        %v5701 = vpop.f32.mrb[0].mxu0
        %5702 = vmatprep.mubr.f32.mxu0 0.0
        %5703 = vmatmul.mubr.f32.gmra.mrb[0].mxu0 %v4221
        %v5704 = vpop.f32.mrb[0].mxu0
        %v5705 = vadd.f32 %v5416, %v5704
        %v5706 = vpop.f32.mrb[0].mxu0
        %5707 = vmatprep.mubr.f32.mxu0 0.0
        %5708 = vmatmul.mubr.f32.gmra.mrb[0].mxu0 %v4220
        %v5709 = vpop.f32.mrb[0].mxu0
        %v5710 = vpop.f32.mrb[0].mxu0
        %5711 = vmatprep.mubr.f32.mxu0 0.0
        %5712 = vmatmul.mubr.f32.gmra.mrb[0].mxu0 %v4219
        %v5713 = vpop.f32.mrb[0].mxu0
        %v5714 = vadd.f32 %v5425, %v5713
        %v5715 = vpop.f32.mrb[0].mxu0
        %5716 = vmatprep.mubr.f32.mxu0 0.0
        %5717 = vmatmul.mubr.f32.gmra.mrb[0].mxu0 %v4218
        %v5718 = vpop.f32.mrb[0].mxu0
        %v5719 = vadd.f32 %v5430, %v5718
        %v5720 = vpop.f32.mrb[0].mxu0
        %5721 = vmatprep.mubr.f32.mxu0 0.0
        %5722 = vmatmul.mubr.f32.gmra.mrb[0].mxu0 %v4217
        %v5723 = vpop.f32.mrb[0].mxu0
        %v5724 = vpop.f32.mrb[0].mxu0
        %5725 = vmatprep.mubr.f32.mxu0 0.0
        %5726 = vmatmul.mubr.f32.gmra.mrb[0].mxu0 %v4216
        %v5727 = vpop.f32.mrb[0].mxu0
        %v5728 = vadd.f32 %v5439, %v5727
        %v5729 = vpop.f32.mrb[0].mxu0
        %5730 = vmatprep.mubr.f32.mxu0 0.0
        %5731 = vmatmul.mubr.f32.gmra.mrb[0].mxu0 %v4215
        %v5732 = vpop.f32.mrb[0].mxu0
        %v5733 = vadd.f32 %v5444, %v5732
        %v5734 = vpop.f32.mrb[0].mxu0
        %5735 = vmatprep.mubr.f32.mxu0 0.0
        %5736 = vmatmul.mubr.f32.gmra.mrb[0].mxu0 %v4214
        %v5737 = vpop.f32.mrb[0].mxu0
        %v5738 = vpop.f32.mrb[0].mxu0
        %5739 = vmatprep.mubr.f32.mxu0 0.0
        %5740 = vmatmul.mubr.f32.gmra.mrb[0].mxu0 %v4213
        %v5741 = vpop.f32.mrb[0].mxu0
        %v5742 = vadd.f32 %v5453, %v5741
        %v5743 = vpop.f32.mrb[0].mxu0
        %5744 = vmatprep.mubr.f32.mxu0 0.0
        %5745 = vmatmul.mubr.f32.gmra.mrb[0].mxu0 %v4212
        %v5746 = vpop.f32.mrb[0].mxu0
        %v5747 = vadd.f32 %v5458, %v5746
        %v5748 = vpop.f32.mrb[0].mxu0
        %5749 = vmatprep.mubr.f32.mxu0 0.0
        %5750 = vmatmul.mubr.f32.gmra.mrb[0].mxu0 %v4211
        %v5751 = vpop.f32.mrb[0].mxu0
        %v5752 = vpop.f32.mrb[0].mxu0
        %5753 = vmatprep.mubr.f32.mxu0 0.0
        %5754 = vmatmul.mubr.f32.gmra.mrb[0].mxu0 %v4210
        %v5755 = vpop.f32.mrb[0].mxu0
        %v5756 = vadd.f32 %v5467, %v5755
        %v5757 = vpop.f32.mrb[0].mxu0
        %5758 = vmatprep.mubr.f32.mxu0 0.0
        %5759 = vmatmul.mubr.f32.gmra.mrb[0].mxu0 %v4209
        %v5760 = vpop.f32.mrb[0].mxu0
        %v5761 = vadd.f32 %v5472, %v5760
        %v5762 = vpop.f32.mrb[0].mxu0
        %5763 = vmatprep.mubr.f32.mxu0 0.0
        %5764 = vmatmul.mubr.f32.gmra.mrb[0].mxu0 %v4208
        %v5765 = vpop.f32.mrb[0].mxu0
        %v5766 = vpop.f32.mrb[0].mxu0
        %5767 = vmatprep.mubr.f32.mxu0 0.0
        %5768 = vmatmul.mubr.f32.gmra.mrb[0].mxu0 %v4207
        %v5769 = vpop.f32.mrb[0].mxu0
        %v5770 = vadd.f32 %v5481, %v5769
        %v5771 = vpop.f32.mrb[0].mxu0
        %5772 = vmatprep.mubr.f32.mxu0 0.0
        %5773 = vmatmul.mubr.f32.gmra.mrb[0].mxu0 %v4206
        %v5774 = vpop.f32.mrb[0].mxu0
        %v5775 = vadd.f32 %v5486, %v5774
        %v5776 = vpop.f32.mrb[0].mxu0
        %5777 = vmatprep.mubr.f32.mxu0 0.0
        %5778 = vmatmul.mubr.f32.gmra.mrb[0].mxu0 %v4205
        %v5779 = vpop.f32.mrb[0].mxu0
        %v5780 = vpop.f32.mrb[0].mxu0
        %5781 = vmatprep.mubr.f32.mxu0 0.0
        %5782 = vmatmul.mubr.f32.gmra.mrb[0].mxu0 %v4204
        %v5783 = vpop.f32.mrb[0].mxu0
        %v5784 = vadd.f32 %v5495, %v5783
        %v5785 = vpop.f32.mrb[0].mxu0
        %5786 = vmatprep.mubr.f32.mxu0 0.0
        %5787 = vmatmul.mubr.f32.gmra.mrb[0].mxu0 %v4203
        %v5788 = vpop.f32.mrb[0].mxu0
        %v5789 = vadd.f32 %v5500, %v5788
        %v5790 = vpop.f32.mrb[0].mxu0
        %5791 = vmatprep.mubr.f32.mxu0 0.0
        %5792 = vmatmul.mubr.f32.gmra.mrb[0].mxu0 %v4202
        %v5793 = vpop.f32.mrb[0].mxu0
        %v5794 = vpop.f32.mrb[0].mxu0
        %5795 = vmatprep.mubr.f32.mxu0 0.0
        %5796 = vmatmul.mubr.f32.gmra.mrb[0].mxu0 %v4201
        %v5797 = vpop.f32.mrb[0].mxu0
        %v5798 = vadd.f32 %v5509, %v5797
        %v5799 = vpop.f32.mrb[0].mxu0
        %5800 = vmatprep.mubr.f32.mxu0 0.0
        %5801 = vmatmul.mubr.f32.gmra.mrb[0].mxu0 %v4200
        %v5802 = vpop.f32.mrb[0].mxu0
        %v5803 = vadd.f32 %v5514, %v5802
        %v5804 = vpop.f32.mrb[0].mxu0
        %5805 = vmatprep.mubr.f32.mxu0 0.0
        %5806 = vmatmul.mubr.f32.gmra.mrb[0].mxu0 %v4199
        %v5807 = vpop.f32.mrb[0].mxu0
        %v5808 = vpop.f32.mrb[0].mxu0
        %5809 = vmatprep.mubr.f32.mxu0 0.0
        %5810 = vmatmul.mubr.f32.gmra.mrb[0].mxu0 %v4198
        %v5811 = vpop.f32.mrb[0].mxu0
        %v5812 = vadd.f32 %v5523, %v5811
        %v5813 = vpop.f32.mrb[0].mxu0
        %5814 = vmatprep.mubr.f32.mxu0 0.0
        %5815 = vmatmul.mubr.f32.gmra.mrb[0].mxu0 %v4197
        %v5816 = vpop.f32.mrb[0].mxu0
        %v5817 = vadd.f32 %v5528, %v5816
        %v5818 = vpop.f32.mrb[0].mxu0
        %5819 = vmatprep.mubr.f32.mxu0 0.0
        %5820 = vmatmul.mubr.f32.gmra.mrb[0].mxu0 %v4196
        %v5821 = vpop.f32.mrb[0].mxu0
        %v5822 = vpop.f32.mrb[0].mxu0
        %5823 = vmatprep.mubr.f32.mxu0 0.0
        %5824 = vmatmul.mubr.f32.gmra.mrb[0].mxu0 %v4195
        %v5825 = vpop.f32.mrb[0].mxu0
        %v5826 = vadd.f32 %v5537, %v5825
        %v5827 = vpop.f32.mrb[0].mxu0
        %5828 = vmatprep.mubr.f32.mxu0 0.0
        %5829 = vmatmul.mubr.f32.gmra.mrb[0].mxu0 %v4194
        %v5830 = vpop.f32.mrb[0].mxu0
        %v5831 = vadd.f32 %v5542, %v5830
        %v5832 = vpop.f32.mrb[0].mxu0
        %5833 = vmatprep.mubr.f32.mxu0 0.0
        %5834 = vmatmul.mubr.f32.gmra.mrb[0].mxu0 %v4241
        %v5835 = vpop.f32.mrb[0].mxu0
        %v5836 = vpop.f32.mrb[0].mxu0
        %5837 = vdwg.mxu0
        %v5838 = vmax.f32 %v5616, 0.0
        %v5839 = vmax.f32 %v5621, 0.0
        %v5840 = vmax.f32 %v5630, 0.0
        %v5841 = vmax.f32 %v5635, 0.0
        %v5842 = vmax.f32 %v5644, 0.0
        %v5843 = vmax.f32 %v5649, 0.0
        %v5844 = vmax.f32 %v5658, 0.0
        %v5845 = vmax.f32 %v5663, 0.0
        %v5846 = vmax.f32 %v5672, 0.0
        %v5847 = vmax.f32 %v5677, 0.0
        %v5848 = vmax.f32 %v5686, 0.0
        %v5849 = vmax.f32 %v5691, 0.0
        %v5850 = vmax.f32 %v5700, 0.0
        %v5851 = vmax.f32 %v5705, 0.0
        %v5852 = vmax.f32 %v5714, 0.0
        %v5853 = vmax.f32 %v5719, 0.0
        %v5854 = vmax.f32 %v5728, 0.0
        %v5855 = vmax.f32 %v5733, 0.0
        %v5856 = vmax.f32 %v5742, 0.0
        %v5857 = vmax.f32 %v5747, 0.0
        %v5858 = vmax.f32 %v5756, 0.0
        %v5859 = vmax.f32 %v5761, 0.0
        %v5860 = vmax.f32 %v5770, 0.0
        %v5861 = vmax.f32 %v5775, 0.0
        %v5862 = vmax.f32 %v5784, 0.0
        %v5863 = vmax.f32 %v5789, 0.0
        %v5864 = vmax.f32 %v5798, 0.0
        %v5865 = vmax.f32 %v5803, 0.0
        %v5866 = vmax.f32 %v5812, 0.0
        %v5867 = vmax.f32 %v5817, 0.0
        %v5868 = vmax.f32 %v5826, 0.0
        %v5869 = vmax.f32 %v5831, 0.0
        %5870 = vst [vmem:[%s232] sm:$0xff] %v5838
        %5871 = vst [vmem:[%s232 + $0x8] sm:$0xff] %v5839
        %5872 = vst [vmem:[%s232 + $0x10] sm:$0xff] %v5840
        %5873 = vst [vmem:[%s232 + $0x18] sm:$0xff] %v5841
        %5874 = vst [vmem:[%s232 + $0x20] sm:$0xff] %v5842
        %5875 = vst [vmem:[%s232 + $0x28] sm:$0xff] %v5843
        %5876 = vst [vmem:[%s232 + $0x30] sm:$0xff] %v5844
        %5877 = vst [vmem:[%s232 + $0x38] sm:$0xff] %v5845
        %5878 = vst [vmem:[%s232 + $0x40] sm:$0xff] %v5846
        %5879 = vst [vmem:[%s232 + $0x48] sm:$0xff] %v5847
        %5880 = vst [vmem:[%s232 + $0x50] sm:$0xff] %v5848
        %5881 = vst [vmem:[%s232 + $0x58] sm:$0xff] %v5849
        %5882 = vst [vmem:[%s232 + $0x60] sm:$0xff] %v5850
        %5883 = vst [vmem:[%s232 + $0x68] sm:$0xff] %v5851
        %5884 = vst [vmem:[%s232 + $0x70] sm:$0xff] %v5852
        %5885 = vst [vmem:[%s232 + $0x78] sm:$0xff] %v5853
        %5886 = vst [vmem:[%s232 + $0x80] sm:$0xff] %v5854
        %5887 = vst [vmem:[%s232 + $0x88] sm:$0xff] %v5855
        %5888 = vst [vmem:[%s232 + $0x90] sm:$0xff] %v5856
        %5889 = vst [vmem:[%s232 + $0x98] sm:$0xff] %v5857
        %5890 = vst [vmem:[%s232 + $0xa0] sm:$0xff] %v5858
        %5891 = vst [vmem:[%s232 + $0xa8] sm:$0xff] %v5859
        %5892 = vst [vmem:[%s232 + $0xb0] sm:$0xff] %v5860
        %5893 = vst [vmem:[%s232 + $0xb8] sm:$0xff] %v5861
        %5894 = vst [vmem:[%s232 + $0xc0] sm:$0xff] %v5862
        %5895 = vst [vmem:[%s232 + $0xc8] sm:$0xff] %v5863
        %5896 = vst [vmem:[%s232 + $0xd0] sm:$0xff] %v5864
        %5897 = vst [vmem:[%s232 + $0xd8] sm:$0xff] %v5865
        %5898 = vst [vmem:[%s232 + $0xe0] sm:$0xff] %v5866
        %5899 = vst [vmem:[%s232 + $0xe8] sm:$0xff] %v5867
        %5900 = vst [vmem:[%s232 + $0xf0] sm:$0xff] %v5868
        %5901 = vst [vmem:[%s232 + $0xf8] sm:$0xff] %v5869
        %s5902 = sand.u32 %s138, 1
        %s5903 = scalar_lea.sflag [#allocation6], %s5902
        %s5904 = sand.u32 %s138, 1
        %s5905 = smul.addr %s5904, 256
        %s5906 = scalar_lea.vmem [#allocation7], %s5905
        // Predicated region
        $region45: #{tpu_custom_call.1} parent=39 // pred_check
          %p5907 = pneg %p148
        $region46: #{tpu_custom_call.1} parent=39 // pred_check_branch
          %5909 = sbr.rel (%p5907) target = $region48
        $region47: #{tpu_custom_call.1} parent=39 // pred_region
          %s5911 = ssub.s32 4096, 4096
          %5912 = vsyncadd %s5903, %s5911
          %s5913 = smul.addr %s20, 32
          %s5914 = smul.addr %s5913, 128
          %s5915 = scalar_lea.hbm %s5, %s5914
          %s5916 = sshll.u32 %s5906, 4
          %s5917 = int_to_ptr.vmem [resolvable:$true] %s5916
          %5922 = dma.vmem_to_hbm [thread:$0]  %s5917, 4096, %s5915, %s5903, 128, 128, 8
        $region48: #{tpu_custom_call.1} parent=39 // pred_fallthru
          _
      $region40: #{tpu_custom_call.1} parent=5 // pred_fallthru
        _
      %p5923 = scmp.le.s32.totalorder 2, %s15
      // Predicated region
      $region49: #{tpu_custom_call.1} parent=5 // pred_check
        %p5924 = pneg %p5923
      $region50: #{tpu_custom_call.1} parent=5 // pred_check_branch
        %5926 = sbr.rel (%p5924) target = $region52
      $region51: #{tpu_custom_call.1} parent=5 // pred_region
        %s5927 = ssub.s32 %s15, 2
        // Predicated region
        $region53: #{tpu_custom_call.1} parent=51 // pred_check
          %p5928 = pneg %p154
        $region54: #{tpu_custom_call.1} parent=51 // pred_check_branch
          %5930 = sbr.rel (%p5928) target = $region56
        $region55: #{tpu_custom_call.1} parent=51 // pred_region
          %s5931 = sand.u32 %s139, 1
          %s5932 = scalar_lea.sflag [#allocation6], %s5931
          %s5933 = sand.u32 %s139, 1
          %s5934 = smul.addr %s5933, 256
          %s5935 = scalar_lea.vmem [#allocation7], %s5934
          %5936 = dma.done %s5932, 4096
        $region56: #{tpu_custom_call.1} parent=51 // pred_fallthru
          _
      $region52: #{tpu_custom_call.1} parent=5 // pred_fallthru
        _
    $region6: #{tpu_custom_call.1} parent=1 // loop_footer
      %s19 = sadd.s32 1, %s15
    $region7: #{tpu_custom_call.1} parent=1 // loop_footer_branch
      %14 = sbr.rel target = $region3
    $region8: #{tpu_custom_call.1} parent=1 // loop_exit
      _
    %5937 = vsyncpa [#allocation5], 1
    %s5938 = scalar_lea.sflag [#allocation5], 1
    %5939 = vsyncpa %s5938, 1
    %5940 = vsyncpa [#allocation6], 1
    %s5941 = scalar_lea.sflag [#allocation6], 1
    %5942 = vsyncpa %s5941, 1

</llo_original>
